<compile_context>
chip_gen: v5e
topology: v5e:2x2
jax: 0.10.0
libtpu: 0.0.40
codegen_flags: <defaults>
</compile_context>

<pallas_src>
import numpy as np
import jax
import jax.numpy as jnp
from jax.experimental import pallas as pl
from jax.experimental.pallas import tpu as pltpu

LEAKY_SLOPE = 0.01   # nn.LeakyReLU() default negative_slope
BN_EPS = 1e-5        # nn.BatchNorm2d default eps
TAPS = [(ki, kj) for ki in range(3) for kj in range(3)]


def _leaky(x):
    return jnp.where(x > 0, x, LEAKY_SLOPE * x)


def _build_tap_selectors(n_out, gw_out, n_in, gw_in, h_in, w_in, pad):
    """Host-side constant 0/1 gather matrices, one per 3x3 tap.

    Row r of selector t picks the input row (on the padded row grid) that the
    stride-2 conv tap (ki,kj) needs for output position r; out-of-bounds taps
    select nothing (zero padding)."""
    sel = np.zeros((9, n_out, n_in), np.float32)
    for t, (ki, kj) in enumerate(TAPS):
        for r in range(n_out):
            oh, ow = divmod(r, gw_out)
            th = 2 * oh + ki - pad
            tw = 2 * ow + kj - pad
            if 0 <= th < h_in and 0 <= tw < w_in:
                sel[t, r, th * gw_in + tw] = 1.0
    return jnp.asarray(sel)


def _disc_kernel(patch_ref, sel2_ref, sel3_ref,
                 w1_ref, b1_ref,
                 w2_ref, b2_ref, g2_ref, be2_ref,
                 w3_ref, b3_ref, g3_ref, be3_ref,
                 wd_ref, bd_ref, out_ref):
    f32 = jnp.float32
    B = out_ref.shape[0]

    # ---- layer 1: Conv(2->64, s2, p1) + LeakyReLU; all batches in ONE matmul.
    # Rows live on a per-image 14x16 grid (2 zero phantom columns).
    y1_all = _leaky(
        jnp.dot(patch_ref[...], w1_ref[...], preferred_element_type=f32)
        + b1_ref[...])                                         # [B*224, 64]
    y1 = [y1_all[b * 224:(b + 1) * 224, :] for b in range(B)]

    # ---- layer 2: Conv(64->64, s2, p1); output rows on a 7x8 grid ----
    acc2 = [None] * B
    for t in range(9):
        sel = sel2_ref[t]                                      # [56, 224] 0/1
        w_t = w2_ref[t]                                        # [64, 64]
        for b in range(B):
            v = jnp.dot(sel, y1[b], preferred_element_type=f32)
            c = jnp.dot(v, w_t, preferred_element_type=f32)
            acc2[b] = c if acc2[b] is None else acc2[b] + c

    # BatchNorm2d(64) with batch statistics (training mode), single masked
    # pass (sum x, sum x^2 over the 49 real positions / image) + LeakyReLU.
    b2 = b2_ref[...]
    r2 = jax.lax.broadcasted_iota(jnp.int32, (56, 1), 0)
    mask2 = jnp.where((r2 & 7) < 7, 1.0, 0.0).astype(f32)      # real cols only
    inv_n2 = 1.0 / (49.0 * B)
    y2raw = []
    s2 = None
    q2 = None
    for b in range(B):
        yb = acc2[b] + b2                                      # [56, 64]
        y2raw.append(yb)
        ym = yb * mask2
        ps = jnp.sum(ym, axis=0, keepdims=True)
        pq = jnp.sum(ym * yb, axis=0, keepdims=True)           # mask * y^2
        s2 = ps if s2 is None else s2 + ps
        q2 = pq if q2 is None else q2 + pq
    mean2 = s2 * inv_n2                                        # [1, 64]
    var2 = jnp.maximum(q2 * inv_n2 - mean2 * mean2, 0.0)       # biased (BN)
    scale2 = g2_ref[...] * jax.lax.rsqrt(var2 + BN_EPS)
    shift2 = be2_ref[...] - mean2 * scale2
    y2 = [_leaky(y2raw[b] * scale2 + shift2) for b in range(B)]

    # ---- layer 3: Conv(64->128, s2, p0); output rows on a 4x4 grid ----
    acc3 = [None] * B
    for t in range(9):
        sel = sel3_ref[t]                                      # [16, 56] 0/1
        w_t = w3_ref[t]                                        # [64, 128]
        for b in range(B):
            v = jnp.dot(sel, y2[b], preferred_element_type=f32)
            c = jnp.dot(v, w_t, preferred_element_type=f32)
            acc3[b] = c if acc3[b] is None else acc3[b] + c

    b3 = b3_ref[...]
    r3 = jax.lax.broadcasted_iota(jnp.int32, (16, 1), 0)
    mask3 = jnp.where(((r3 >> 2) < 3) & ((r3 & 3) < 3), 1.0, 0.0).astype(f32)
    inv_n3 = 1.0 / (9.0 * B)
    y3raw = []
    s3 = None
    q3 = None
    for b in range(B):
        yb = acc3[b] + b3                                      # [16, 128]
        y3raw.append(yb)
        ym = yb * mask3
        ps = jnp.sum(ym, axis=0, keepdims=True)
        pq = jnp.sum(ym * yb, axis=0, keepdims=True)
        s3 = ps if s3 is None else s3 + ps
        q3 = pq if q3 is None else q3 + pq
    mean3 = s3 * inv_n3                                        # [1, 128]
    var3 = jnp.maximum(q3 * inv_n3 - mean3 * mean3, 0.0)
    scale3 = g3_ref[...] * jax.lax.rsqrt(var3 + BN_EPS)
    shift3 = be3_ref[...] - mean3 * scale3
    y3 = [_leaky(y3raw[b] * scale3 + shift3) for b in range(B)]

    # ---- dense: Flatten + Linear(1152, 1) + Sigmoid ----
    wd = wd_ref[...]                       # [16, 128], zeros on phantom rows
    bd = bd_ref[...]                       # [1, 1]
    for b in range(B):
        prod = y3[b] * wd
        rowsum = jnp.sum(prod, axis=1, keepdims=True)          # [16, 1]
        logit = jnp.sum(rowsum, axis=0, keepdims=True) + bd    # [1, 1]
        out_ref[pl.ds(b, 1), :] = 1.0 / (1.0 + jnp.exp(-logit))


def _full_spec(shape):
    nd = len(shape)
    return pl.BlockSpec(shape, lambda i, _nd=nd: (0,) * _nd)


def discriminator_forward(params, x_nchw, label):
    B = x_nchw.shape[0]
    # Embedding lookup + channel concat (NHWC): tiny XLA glue.
    emb = params["embed"][label].reshape(B, 28, 28, 1)
    x = jnp.transpose(x_nchw, (0, 2, 3, 1))                    # [B,28,28,1]
    x = jnp.concatenate([x, emb], axis=-1)                     # [B,28,28,2]

    # Layer-1 im2col (~32 KB) stays in XLA glue; columns ordered (ki,kj,cin),
    # rows laid out on the kernel's 14x16 grid (2 zero phantom columns),
    # batches stacked along rows for one batched layer-1 matmul.
    xp = jnp.pad(x, ((0, 0), (1, 1), (1, 1), (0, 0)))          # [B,30,30,2]
    cols = [xp[:, ki:ki + 28:2, kj:kj + 28:2, :]
            for ki in range(3) for kj in range(3)]             # 9 x [B,14,14,2]
    patches = jnp.stack(cols, axis=3).reshape(B, 14, 14, 18)
    patches = jnp.pad(patches, ((0, 0), (0, 0), (0, 2), (0, 0)))
    patches = patches.reshape(B * 14 * 16, 18)                 # [B*224, 18]

    operands = (
        patches, params["sel2"], params["sel3"],
        params["w1m"], params["b1r"],
        params["w2t"], params["b2r"], params["g2r"], params["be2r"],
        params["w3t"], params["b3r"], params["g3r"], params["be3r"],
        params["wdg"], params["bdr"],
    )
    return pl.pallas_call(
        _disc_kernel,
        out_shape=jax.ShapeDtypeStruct((B, 1), jnp.float32),
        grid=(1,),
        in_specs=[_full_spec(op.shape) for op in operands],
        out_specs=_full_spec((B, 1)),
        compiler_params=pltpu.CompilerParams(
            dimension_semantics=("arbitrary",)),
    )(*operands)


# ---------------------------------------------------------------------------
# Parameters (shapes from Discriminator.__init__) and one-time re-layout.
# ---------------------------------------------------------------------------
def init_params(key, num_classes):
    ks = jax.random.split(key, 12)
    p = {}
    p["embed"] = 0.10 * jax.random.normal(ks[0], (num_classes, 28 * 28), jnp.float32)
    p["w1"] = 0.10 * jax.random.normal(ks[1], (64, 2, 3, 3), jnp.float32)
    p["b1"] = 0.01 * jax.random.normal(ks[2], (64,), jnp.float32)
    p["w2"] = 0.05 * jax.random.normal(ks[3], (64, 64, 3, 3), jnp.float32)
    p["b2"] = 0.01 * jax.random.normal(ks[4], (64,), jnp.float32)
    p["g2"] = 1.0 + 0.1 * jax.random.normal(ks[5], (64,), jnp.float32)
    p["beta2"] = 0.1 * jax.random.normal(ks[6], (64,), jnp.float32)
    p["w3"] = 0.05 * jax.random.normal(ks[7], (128, 64, 3, 3), jnp.float32)
    p["b3"] = 0.01 * jax.random.normal(ks[8], (128,), jnp.float32)
    p["g3"] = 1.0 + 0.1 * jax.random.normal(ks[9], (128,), jnp.float32)
    p["beta3"] = 0.1 * jax.random.normal(ks[10], (128,), jnp.float32)
    p["wd"] = 0.02 * jax.random.normal(ks[11], (1, 3 * 3 * 128), jnp.float32)
    p["bd"] = jnp.zeros((1,), jnp.float32)
    return p


def prepare_params(p):
    """One-time weight re-layout + constant tables (hoisted out of the forward)."""
    q = {"embed": p["embed"]}
    q["w1m"] = jnp.transpose(p["w1"], (2, 3, 1, 0)).reshape(18, 64)
    q["b1r"] = p["b1"].reshape(1, 64)
    q["w2t"] = jnp.transpose(p["w2"], (2, 3, 1, 0)).reshape(9, 64, 64)
    q["b2r"] = p["b2"].reshape(1, 64)
    q["g2r"] = p["g2"].reshape(1, 64)
    q["be2r"] = p["beta2"].reshape(1, 64)
    q["w3t"] = jnp.transpose(p["w3"], (2, 3, 1, 0)).reshape(9, 64, 128)
    q["b3r"] = p["b3"].reshape(1, 128)
    q["g3r"] = p["g3"].reshape(1, 128)
    q["be3r"] = p["beta3"].reshape(1, 128)
    # Dense weight: PyTorch flatten order (c, h, w) -> kernel's (4x4 grid, c),
    # zeros on the phantom grid rows.
    wd = p["wd"].reshape(128, 3, 3)
    wdg = jnp.zeros((4, 4, 128), jnp.float32).at[:3, :3, :].set(
        jnp.transpose(wd, (1, 2, 0)))
    q["wdg"] = wdg.reshape(16, 128)
    q["bdr"] = p["bd"].reshape(1, 1)
    # Constant 0/1 gather matrices for the stride-2 3x3 conv taps (layer 2:
    # 14x16 input grid -> 7x8 output grid; layer 3: 7x8 -> 4x4, no padding).
    q["sel2"] = _build_tap_selectors(56, 8, 224, 16, 14, 14, pad=1)
    q["sel3"] = _build_tap_selectors(16, 4, 56, 8, 7, 7, pad=0)
    return q


if __name__ == "__main__":
    key = jax.random.PRNGKey(0)
    pkey, xkey, lkey = jax.random.split(key, 3)

    num_classes = 10
    B = 2
    raw_params = init_params(pkey, num_classes)
    params = prepare_params(raw_params)                 # one-time re-layout
    x = jax.random.normal(xkey, (B, 1, 28, 28), jnp.float32)   # MNIST-sized
    label = jax.random.randint(lkey, (B,), 0, num_classes)

    fwd = jax.jit(discriminator_forward)
    out = jax.block_until_ready(fwd(params, x, label))
    assert out.shape == (B, 1), out.shape
    assert bool(jnp.all((out >= 0.0) & (out <= 1.0)))   # sigmoid range
    print("KERNEL_OK")
</pallas_src>

<mosaic_0001>
module attributes {stable_mosaic.version = 11 : i64} {
  func.func @_disc_kernel(%arg0: i32, %arg1: memref<448x18xf32, #tpu.memory_space<vmem>>, %arg2: memref<9x56x224xf32, #tpu.memory_space<vmem>>, %arg3: memref<9x16x56xf32, #tpu.memory_space<vmem>>, %arg4: memref<18x64xf32, #tpu.memory_space<vmem>>, %arg5: memref<1x64xf32, #tpu.memory_space<vmem>>, %arg6: memref<9x64x64xf32, #tpu.memory_space<vmem>>, %arg7: memref<1x64xf32, #tpu.memory_space<vmem>>, %arg8: memref<1x64xf32, #tpu.memory_space<vmem>>, %arg9: memref<1x64xf32, #tpu.memory_space<vmem>>, %arg10: memref<9x64x128xf32, #tpu.memory_space<vmem>>, %arg11: memref<1x128xf32, #tpu.memory_space<vmem>>, %arg12: memref<1x128xf32, #tpu.memory_space<vmem>>, %arg13: memref<1x128xf32, #tpu.memory_space<vmem>>, %arg14: memref<16x128xf32, #tpu.memory_space<vmem>>, %arg15: memref<1x1xf32, #tpu.memory_space<vmem>>, %arg16: memref<2x1xf32, #tpu.memory_space<vmem>>) attributes {dimension_semantics = [#tpu.dimension_semantics<arbitrary>], iteration_bounds = array<i64: 1>, scalar_prefetch = 0 : i64, scratch_operands = 0 : i64, tpu.core_type = #tpu.core_type<tc>, window_params = [{pipeline_mode = #tpu.pipeline_mode<synchronous>, transform_indices = @transform_0, window_bounds = array<i64: 448, 18>}, {pipeline_mode = #tpu.pipeline_mode<synchronous>, transform_indices = @transform_1, window_bounds = array<i64: 9, 56, 224>}, {pipeline_mode = #tpu.pipeline_mode<synchronous>, transform_indices = @transform_2, window_bounds = array<i64: 9, 16, 56>}, {pipeline_mode = #tpu.pipeline_mode<synchronous>, transform_indices = @transform_3, window_bounds = array<i64: 18, 64>}, {pipeline_mode = #tpu.pipeline_mode<synchronous>, transform_indices = @transform_4, window_bounds = array<i64: 1, 64>}, {pipeline_mode = #tpu.pipeline_mode<synchronous>, transform_indices = @transform_5, window_bounds = array<i64: 9, 64, 64>}, {pipeline_mode = #tpu.pipeline_mode<synchronous>, transform_indices = @transform_6, window_bounds = array<i64: 1, 64>}, {pipeline_mode = #tpu.pipeline_mode<synchronous>, transform_indices = @transform_7, window_bounds = array<i64: 1, 64>}, {pipeline_mode = #tpu.pipeline_mode<synchronous>, transform_indices = @transform_8, window_bounds = array<i64: 1, 64>}, {pipeline_mode = #tpu.pipeline_mode<synchronous>, transform_indices = @transform_9, window_bounds = array<i64: 9, 64, 128>}, {pipeline_mode = #tpu.pipeline_mode<synchronous>, transform_indices = @transform_10, window_bounds = array<i64: 1, 128>}, {pipeline_mode = #tpu.pipeline_mode<synchronous>, transform_indices = @transform_11, window_bounds = array<i64: 1, 128>}, {pipeline_mode = #tpu.pipeline_mode<synchronous>, transform_indices = @transform_12, window_bounds = array<i64: 1, 128>}, {pipeline_mode = #tpu.pipeline_mode<synchronous>, transform_indices = @transform_13, window_bounds = array<i64: 16, 128>}, {pipeline_mode = #tpu.pipeline_mode<synchronous>, transform_indices = @transform_14, window_bounds = array<i64: 1, 1>}, {pipeline_mode = #tpu.pipeline_mode<synchronous>, transform_indices = @transform_15, window_bounds = array<i64: 2, 1>}]} {
    %c0 = arith.constant 0 : index
    %c0_0 = arith.constant 0 : index
    %0 = vector.load %arg1[%c0, %c0_0] : memref<448x18xf32, #tpu.memory_space<vmem>>, vector<448x18xf32>
    %c0_1 = arith.constant 0 : index
    %c0_2 = arith.constant 0 : index
    %1 = vector.load %arg4[%c0_1, %c0_2] : memref<18x64xf32, #tpu.memory_space<vmem>>, vector<18x64xf32>
    %cst = arith.constant dense<0.000000e+00> : vector<448x64xf32>
    %2 = tpu.matmul %0, %1, %cst {dimension_numbers = #tpu.dot_dimension_numbers<[1], [0], [0], [1], [0, 0, 1, 1], [], []>} : vector<448x18xf32>, vector<18x64xf32>, vector<448x64xf32> -> vector<448x64xf32>
    %c0_3 = arith.constant 0 : index
    %c0_4 = arith.constant 0 : index
    %3 = vector.load %arg5[%c0_3, %c0_4] : memref<1x64xf32, #tpu.memory_space<vmem>>, vector<1x64xf32>
    %4 = vector.broadcast %3 : vector<1x64xf32> to vector<448x64xf32>
    %5 = arith.addf %2, %4 : vector<448x64xf32>
    %cst_5 = arith.constant 0.000000e+00 : f32
    %6 = vector.broadcast %cst_5 : f32 to vector<448x64xf32>
    %7 = arith.cmpf ogt, %5, %6 : vector<448x64xf32>
    %cst_6 = arith.constant 0.00999999977 : f32
    %8 = vector.broadcast %cst_6 : f32 to vector<448x64xf32>
    %9 = arith.mulf %8, %5 : vector<448x64xf32>
    %10 = arith.select %7, %5, %9 : vector<448x64xi1>, vector<448x64xf32>
    %11 = vector.extract_strided_slice %10 {offsets = [0, 0], sizes = [224, 64], strides = [1, 1]} : vector<448x64xf32> to vector<224x64xf32>
    %12 = vector.extract_strided_slice %10 {offsets = [224, 0], sizes = [224, 64], strides = [1, 1]} : vector<448x64xf32> to vector<224x64xf32>
    %c0_7 = arith.constant 0 : index
    %c0_8 = arith.constant 0 : index
    %c0_9 = arith.constant 0 : index
    %13 = vector.load %arg2[%c0_7, %c0_8, %c0_9] : memref<9x56x224xf32, #tpu.memory_space<vmem>>, vector<1x56x224xf32>
    %14 = vector.shape_cast %13 : vector<1x56x224xf32> to vector<56x224xf32>
    %c0_10 = arith.constant 0 : index
    %c0_11 = arith.constant 0 : index
    %c0_12 = arith.constant 0 : index
    %15 = vector.load %arg6[%c0_10, %c0_11, %c0_12] : memref<9x64x64xf32, #tpu.memory_space<vmem>>, vector<1x64x64xf32>
    %16 = vector.shape_cast %15 : vector<1x64x64xf32> to vector<64x64xf32>
    %cst_13 = arith.constant dense<0.000000e+00> : vector<56x64xf32>
    %17 = tpu.matmul %14, %11, %cst_13 {dimension_numbers = #tpu.dot_dimension_numbers<[1], [0], [0], [1], [0, 0, 1, 1], [], []>} : vector<56x224xf32>, vector<224x64xf32>, vector<56x64xf32> -> vector<56x64xf32>
    %cst_14 = arith.constant dense<0.000000e+00> : vector<56x64xf32>
    %18 = tpu.matmul %17, %16, %cst_14 {dimension_numbers = #tpu.dot_dimension_numbers<[1], [0], [0], [1], [0, 0, 1, 1], [], []>} : vector<56x64xf32>, vector<64x64xf32>, vector<56x64xf32> -> vector<56x64xf32>
    %cst_15 = arith.constant dense<0.000000e+00> : vector<56x64xf32>
    %19 = tpu.matmul %14, %12, %cst_15 {dimension_numbers = #tpu.dot_dimension_numbers<[1], [0], [0], [1], [0, 0, 1, 1], [], []>} : vector<56x224xf32>, vector<224x64xf32>, vector<56x64xf32> -> vector<56x64xf32>
    %cst_16 = arith.constant dense<0.000000e+00> : vector<56x64xf32>
    %20 = tpu.matmul %19, %16, %cst_16 {dimension_numbers = #tpu.dot_dimension_numbers<[1], [0], [0], [1], [0, 0, 1, 1], [], []>} : vector<56x64xf32>, vector<64x64xf32>, vector<56x64xf32> -> vector<56x64xf32>
    %c1 = arith.constant 1 : index
    %c0_17 = arith.constant 0 : index
    %c0_18 = arith.constant 0 : index
    %21 = vector.load %arg2[%c1, %c0_17, %c0_18] : memref<9x56x224xf32, #tpu.memory_space<vmem>>, vector<1x56x224xf32>
    %22 = vector.shape_cast %21 : vector<1x56x224xf32> to vector<56x224xf32>
    %c1_19 = arith.constant 1 : index
    %c0_20 = arith.constant 0 : index
    %c0_21 = arith.constant 0 : index
    %23 = vector.load %arg6[%c1_19, %c0_20, %c0_21] : memref<9x64x64xf32, #tpu.memory_space<vmem>>, vector<1x64x64xf32>
    %24 = vector.shape_cast %23 : vector<1x64x64xf32> to vector<64x64xf32>
    %cst_22 = arith.constant dense<0.000000e+00> : vector<56x64xf32>
    %25 = tpu.matmul %22, %11, %cst_22 {dimension_numbers = #tpu.dot_dimension_numbers<[1], [0], [0], [1], [0, 0, 1, 1], [], []>} : vector<56x224xf32>, vector<224x64xf32>, vector<56x64xf32> -> vector<56x64xf32>
    %cst_23 = arith.constant dense<0.000000e+00> : vector<56x64xf32>
    %26 = tpu.matmul %25, %24, %cst_23 {dimension_numbers = #tpu.dot_dimension_numbers<[1], [0], [0], [1], [0, 0, 1, 1], [], []>} : vector<56x64xf32>, vector<64x64xf32>, vector<56x64xf32> -> vector<56x64xf32>
    %27 = arith.addf %18, %26 : vector<56x64xf32>
    %cst_24 = arith.constant dense<0.000000e+00> : vector<56x64xf32>
    %28 = tpu.matmul %22, %12, %cst_24 {dimension_numbers = #tpu.dot_dimension_numbers<[1], [0], [0], [1], [0, 0, 1, 1], [], []>} : vector<56x224xf32>, vector<224x64xf32>, vector<56x64xf32> -> vector<56x64xf32>
    %cst_25 = arith.constant dense<0.000000e+00> : vector<56x64xf32>
    %29 = tpu.matmul %28, %24, %cst_25 {dimension_numbers = #tpu.dot_dimension_numbers<[1], [0], [0], [1], [0, 0, 1, 1], [], []>} : vector<56x64xf32>, vector<64x64xf32>, vector<56x64xf32> -> vector<56x64xf32>
    %30 = arith.addf %20, %29 : vector<56x64xf32>
    %c2 = arith.constant 2 : index
    %c0_26 = arith.constant 0 : index
    %c0_27 = arith.constant 0 : index
    %31 = vector.load %arg2[%c2, %c0_26, %c0_27] : memref<9x56x224xf32, #tpu.memory_space<vmem>>, vector<1x56x224xf32>
    %32 = vector.shape_cast %31 : vector<1x56x224xf32> to vector<56x224xf32>
    %c2_28 = arith.constant 2 : index
    %c0_29 = arith.constant 0 : index
    %c0_30 = arith.constant 0 : index
    %33 = vector.load %arg6[%c2_28, %c0_29, %c0_30] : memref<9x64x64xf32, #tpu.memory_space<vmem>>, vector<1x64x64xf32>
    %34 = vector.shape_cast %33 : vector<1x64x64xf32> to vector<64x64xf32>
    %cst_31 = arith.constant dense<0.000000e+00> : vector<56x64xf32>
    %35 = tpu.matmul %32, %11, %cst_31 {dimension_numbers = #tpu.dot_dimension_numbers<[1], [0], [0], [1], [0, 0, 1, 1], [], []>} : vector<56x224xf32>, vector<224x64xf32>, vector<56x64xf32> -> vector<56x64xf32>
    %cst_32 = arith.constant dense<0.000000e+00> : vector<56x64xf32>
    %36 = tpu.matmul %35, %34, %cst_32 {dimension_numbers = #tpu.dot_dimension_numbers<[1], [0], [0], [1], [0, 0, 1, 1], [], []>} : vector<56x64xf32>, vector<64x64xf32>, vector<56x64xf32> -> vector<56x64xf32>
    %37 = arith.addf %27, %36 : vector<56x64xf32>
    %cst_33 = arith.constant dense<0.000000e+00> : vector<56x64xf32>
    %38 = tpu.matmul %32, %12, %cst_33 {dimension_numbers = #tpu.dot_dimension_numbers<[1], [0], [0], [1], [0, 0, 1, 1], [], []>} : vector<56x224xf32>, vector<224x64xf32>, vector<56x64xf32> -> vector<56x64xf32>
    %cst_34 = arith.constant dense<0.000000e+00> : vector<56x64xf32>
    %39 = tpu.matmul %38, %34, %cst_34 {dimension_numbers = #tpu.dot_dimension_numbers<[1], [0], [0], [1], [0, 0, 1, 1], [], []>} : vector<56x64xf32>, vector<64x64xf32>, vector<56x64xf32> -> vector<56x64xf32>
    %40 = arith.addf %30, %39 : vector<56x64xf32>
    %c3 = arith.constant 3 : index
    %c0_35 = arith.constant 0 : index
    %c0_36 = arith.constant 0 : index
    %41 = vector.load %arg2[%c3, %c0_35, %c0_36] : memref<9x56x224xf32, #tpu.memory_space<vmem>>, vector<1x56x224xf32>
    %42 = vector.shape_cast %41 : vector<1x56x224xf32> to vector<56x224xf32>
    %c3_37 = arith.constant 3 : index
    %c0_38 = arith.constant 0 : index
    %c0_39 = arith.constant 0 : index
    %43 = vector.load %arg6[%c3_37, %c0_38, %c0_39] : memref<9x64x64xf32, #tpu.memory_space<vmem>>, vector<1x64x64xf32>
    %44 = vector.shape_cast %43 : vector<1x64x64xf32> to vector<64x64xf32>
    %cst_40 = arith.constant dense<0.000000e+00> : vector<56x64xf32>
    %45 = tpu.matmul %42, %11, %cst_40 {dimension_numbers = #tpu.dot_dimension_numbers<[1], [0], [0], [1], [0, 0, 1, 1], [], []>} : vector<56x224xf32>, vector<224x64xf32>, vector<56x64xf32> -> vector<56x64xf32>
    %cst_41 = arith.constant dense<0.000000e+00> : vector<56x64xf32>
    %46 = tpu.matmul %45, %44, %cst_41 {dimension_numbers = #tpu.dot_dimension_numbers<[1], [0], [0], [1], [0, 0, 1, 1], [], []>} : vector<56x64xf32>, vector<64x64xf32>, vector<56x64xf32> -> vector<56x64xf32>
    %47 = arith.addf %37, %46 : vector<56x64xf32>
    %cst_42 = arith.constant dense<0.000000e+00> : vector<56x64xf32>
    %48 = tpu.matmul %42, %12, %cst_42 {dimension_numbers = #tpu.dot_dimension_numbers<[1], [0], [0], [1], [0, 0, 1, 1], [], []>} : vector<56x224xf32>, vector<224x64xf32>, vector<56x64xf32> -> vector<56x64xf32>
    %cst_43 = arith.constant dense<0.000000e+00> : vector<56x64xf32>
    %49 = tpu.matmul %48, %44, %cst_43 {dimension_numbers = #tpu.dot_dimension_numbers<[1], [0], [0], [1], [0, 0, 1, 1], [], []>} : vector<56x64xf32>, vector<64x64xf32>, vector<56x64xf32> -> vector<56x64xf32>
    %50 = arith.addf %40, %49 : vector<56x64xf32>
    %c4 = arith.constant 4 : index
    %c0_44 = arith.constant 0 : index
    %c0_45 = arith.constant 0 : index
    %51 = vector.load %arg2[%c4, %c0_44, %c0_45] : memref<9x56x224xf32, #tpu.memory_space<vmem>>, vector<1x56x224xf32>
    %52 = vector.shape_cast %51 : vector<1x56x224xf32> to vector<56x224xf32>
    %c4_46 = arith.constant 4 : index
    %c0_47 = arith.constant 0 : index
    %c0_48 = arith.constant 0 : index
    %53 = vector.load %arg6[%c4_46, %c0_47, %c0_48] : memref<9x64x64xf32, #tpu.memory_space<vmem>>, vector<1x64x64xf32>
    %54 = vector.shape_cast %53 : vector<1x64x64xf32> to vector<64x64xf32>
    %cst_49 = arith.constant dense<0.000000e+00> : vector<56x64xf32>
    %55 = tpu.matmul %52, %11, %cst_49 {dimension_numbers = #tpu.dot_dimension_numbers<[1], [0], [0], [1], [0, 0, 1, 1], [], []>} : vector<56x224xf32>, vector<224x64xf32>, vector<56x64xf32> -> vector<56x64xf32>
    %cst_50 = arith.constant dense<0.000000e+00> : vector<56x64xf32>
    %56 = tpu.matmul %55, %54, %cst_50 {dimension_numbers = #tpu.dot_dimension_numbers<[1], [0], [0], [1], [0, 0, 1, 1], [], []>} : vector<56x64xf32>, vector<64x64xf32>, vector<56x64xf32> -> vector<56x64xf32>
    %57 = arith.addf %47, %56 : vector<56x64xf32>
    %cst_51 = arith.constant dense<0.000000e+00> : vector<56x64xf32>
    %58 = tpu.matmul %52, %12, %cst_51 {dimension_numbers = #tpu.dot_dimension_numbers<[1], [0], [0], [1], [0, 0, 1, 1], [], []>} : vector<56x224xf32>, vector<224x64xf32>, vector<56x64xf32> -> vector<56x64xf32>
    %cst_52 = arith.constant dense<0.000000e+00> : vector<56x64xf32>
    %59 = tpu.matmul %58, %54, %cst_52 {dimension_numbers = #tpu.dot_dimension_numbers<[1], [0], [0], [1], [0, 0, 1, 1], [], []>} : vector<56x64xf32>, vector<64x64xf32>, vector<56x64xf32> -> vector<56x64xf32>
    %60 = arith.addf %50, %59 : vector<56x64xf32>
    %c5 = arith.constant 5 : index
    %c0_53 = arith.constant 0 : index
    %c0_54 = arith.constant 0 : index
    %61 = vector.load %arg2[%c5, %c0_53, %c0_54] : memref<9x56x224xf32, #tpu.memory_space<vmem>>, vector<1x56x224xf32>
    %62 = vector.shape_cast %61 : vector<1x56x224xf32> to vector<56x224xf32>
    %c5_55 = arith.constant 5 : index
    %c0_56 = arith.constant 0 : index
    %c0_57 = arith.constant 0 : index
    %63 = vector.load %arg6[%c5_55, %c0_56, %c0_57] : memref<9x64x64xf32, #tpu.memory_space<vmem>>, vector<1x64x64xf32>
    %64 = vector.shape_cast %63 : vector<1x64x64xf32> to vector<64x64xf32>
    %cst_58 = arith.constant dense<0.000000e+00> : vector<56x64xf32>
    %65 = tpu.matmul %62, %11, %cst_58 {dimension_numbers = #tpu.dot_dimension_numbers<[1], [0], [0], [1], [0, 0, 1, 1], [], []>} : vector<56x224xf32>, vector<224x64xf32>, vector<56x64xf32> -> vector<56x64xf32>
    %cst_59 = arith.constant dense<0.000000e+00> : vector<56x64xf32>
    %66 = tpu.matmul %65, %64, %cst_59 {dimension_numbers = #tpu.dot_dimension_numbers<[1], [0], [0], [1], [0, 0, 1, 1], [], []>} : vector<56x64xf32>, vector<64x64xf32>, vector<56x64xf32> -> vector<56x64xf32>
    %67 = arith.addf %57, %66 : vector<56x64xf32>
    %cst_60 = arith.constant dense<0.000000e+00> : vector<56x64xf32>
    %68 = tpu.matmul %62, %12, %cst_60 {dimension_numbers = #tpu.dot_dimension_numbers<[1], [0], [0], [1], [0, 0, 1, 1], [], []>} : vector<56x224xf32>, vector<224x64xf32>, vector<56x64xf32> -> vector<56x64xf32>
    %cst_61 = arith.constant dense<0.000000e+00> : vector<56x64xf32>
    %69 = tpu.matmul %68, %64, %cst_61 {dimension_numbers = #tpu.dot_dimension_numbers<[1], [0], [0], [1], [0, 0, 1, 1], [], []>} : vector<56x64xf32>, vector<64x64xf32>, vector<56x64xf32> -> vector<56x64xf32>
    %70 = arith.addf %60, %69 : vector<56x64xf32>
    %c6 = arith.constant 6 : index
    %c0_62 = arith.constant 0 : index
    %c0_63 = arith.constant 0 : index
    %71 = vector.load %arg2[%c6, %c0_62, %c0_63] : memref<9x56x224xf32, #tpu.memory_space<vmem>>, vector<1x56x224xf32>
    %72 = vector.shape_cast %71 : vector<1x56x224xf32> to vector<56x224xf32>
    %c6_64 = arith.constant 6 : index
    %c0_65 = arith.constant 0 : index
    %c0_66 = arith.constant 0 : index
    %73 = vector.load %arg6[%c6_64, %c0_65, %c0_66] : memref<9x64x64xf32, #tpu.memory_space<vmem>>, vector<1x64x64xf32>
    %74 = vector.shape_cast %73 : vector<1x64x64xf32> to vector<64x64xf32>
    %cst_67 = arith.constant dense<0.000000e+00> : vector<56x64xf32>
    %75 = tpu.matmul %72, %11, %cst_67 {dimension_numbers = #tpu.dot_dimension_numbers<[1], [0], [0], [1], [0, 0, 1, 1], [], []>} : vector<56x224xf32>, vector<224x64xf32>, vector<56x64xf32> -> vector<56x64xf32>
    %cst_68 = arith.constant dense<0.000000e+00> : vector<56x64xf32>
    %76 = tpu.matmul %75, %74, %cst_68 {dimension_numbers = #tpu.dot_dimension_numbers<[1], [0], [0], [1], [0, 0, 1, 1], [], []>} : vector<56x64xf32>, vector<64x64xf32>, vector<56x64xf32> -> vector<56x64xf32>
    %77 = arith.addf %67, %76 : vector<56x64xf32>
    %cst_69 = arith.constant dense<0.000000e+00> : vector<56x64xf32>
    %78 = tpu.matmul %72, %12, %cst_69 {dimension_numbers = #tpu.dot_dimension_numbers<[1], [0], [0], [1], [0, 0, 1, 1], [], []>} : vector<56x224xf32>, vector<224x64xf32>, vector<56x64xf32> -> vector<56x64xf32>
    %cst_70 = arith.constant dense<0.000000e+00> : vector<56x64xf32>
    %79 = tpu.matmul %78, %74, %cst_70 {dimension_numbers = #tpu.dot_dimension_numbers<[1], [0], [0], [1], [0, 0, 1, 1], [], []>} : vector<56x64xf32>, vector<64x64xf32>, vector<56x64xf32> -> vector<56x64xf32>
    %80 = arith.addf %70, %79 : vector<56x64xf32>
    %c7 = arith.constant 7 : index
    %c0_71 = arith.constant 0 : index
    %c0_72 = arith.constant 0 : index
    %81 = vector.load %arg2[%c7, %c0_71, %c0_72] : memref<9x56x224xf32, #tpu.memory_space<vmem>>, vector<1x56x224xf32>
    %82 = vector.shape_cast %81 : vector<1x56x224xf32> to vector<56x224xf32>
    %c7_73 = arith.constant 7 : index
    %c0_74 = arith.constant 0 : index
    %c0_75 = arith.constant 0 : index
    %83 = vector.load %arg6[%c7_73, %c0_74, %c0_75] : memref<9x64x64xf32, #tpu.memory_space<vmem>>, vector<1x64x64xf32>
    %84 = vector.shape_cast %83 : vector<1x64x64xf32> to vector<64x64xf32>
    %cst_76 = arith.constant dense<0.000000e+00> : vector<56x64xf32>
    %85 = tpu.matmul %82, %11, %cst_76 {dimension_numbers = #tpu.dot_dimension_numbers<[1], [0], [0], [1], [0, 0, 1, 1], [], []>} : vector<56x224xf32>, vector<224x64xf32>, vector<56x64xf32> -> vector<56x64xf32>
    %cst_77 = arith.constant dense<0.000000e+00> : vector<56x64xf32>
    %86 = tpu.matmul %85, %84, %cst_77 {dimension_numbers = #tpu.dot_dimension_numbers<[1], [0], [0], [1], [0, 0, 1, 1], [], []>} : vector<56x64xf32>, vector<64x64xf32>, vector<56x64xf32> -> vector<56x64xf32>
    %87 = arith.addf %77, %86 : vector<56x64xf32>
    %cst_78 = arith.constant dense<0.000000e+00> : vector<56x64xf32>
    %88 = tpu.matmul %82, %12, %cst_78 {dimension_numbers = #tpu.dot_dimension_numbers<[1], [0], [0], [1], [0, 0, 1, 1], [], []>} : vector<56x224xf32>, vector<224x64xf32>, vector<56x64xf32> -> vector<56x64xf32>
    %cst_79 = arith.constant dense<0.000000e+00> : vector<56x64xf32>
    %89 = tpu.matmul %88, %84, %cst_79 {dimension_numbers = #tpu.dot_dimension_numbers<[1], [0], [0], [1], [0, 0, 1, 1], [], []>} : vector<56x64xf32>, vector<64x64xf32>, vector<56x64xf32> -> vector<56x64xf32>
    %90 = arith.addf %80, %89 : vector<56x64xf32>
    %c8 = arith.constant 8 : index
    %c0_80 = arith.constant 0 : index
    %c0_81 = arith.constant 0 : index
    %91 = vector.load %arg2[%c8, %c0_80, %c0_81] : memref<9x56x224xf32, #tpu.memory_space<vmem>>, vector<1x56x224xf32>
    %92 = vector.shape_cast %91 : vector<1x56x224xf32> to vector<56x224xf32>
    %c8_82 = arith.constant 8 : index
    %c0_83 = arith.constant 0 : index
    %c0_84 = arith.constant 0 : index
    %93 = vector.load %arg6[%c8_82, %c0_83, %c0_84] : memref<9x64x64xf32, #tpu.memory_space<vmem>>, vector<1x64x64xf32>
    %94 = vector.shape_cast %93 : vector<1x64x64xf32> to vector<64x64xf32>
    %cst_85 = arith.constant dense<0.000000e+00> : vector<56x64xf32>
    %95 = tpu.matmul %92, %11, %cst_85 {dimension_numbers = #tpu.dot_dimension_numbers<[1], [0], [0], [1], [0, 0, 1, 1], [], []>} : vector<56x224xf32>, vector<224x64xf32>, vector<56x64xf32> -> vector<56x64xf32>
    %cst_86 = arith.constant dense<0.000000e+00> : vector<56x64xf32>
    %96 = tpu.matmul %95, %94, %cst_86 {dimension_numbers = #tpu.dot_dimension_numbers<[1], [0], [0], [1], [0, 0, 1, 1], [], []>} : vector<56x64xf32>, vector<64x64xf32>, vector<56x64xf32> -> vector<56x64xf32>
    %97 = arith.addf %87, %96 : vector<56x64xf32>
    %cst_87 = arith.constant dense<0.000000e+00> : vector<56x64xf32>
    %98 = tpu.matmul %92, %12, %cst_87 {dimension_numbers = #tpu.dot_dimension_numbers<[1], [0], [0], [1], [0, 0, 1, 1], [], []>} : vector<56x224xf32>, vector<224x64xf32>, vector<56x64xf32> -> vector<56x64xf32>
    %cst_88 = arith.constant dense<0.000000e+00> : vector<56x64xf32>
    %99 = tpu.matmul %98, %94, %cst_88 {dimension_numbers = #tpu.dot_dimension_numbers<[1], [0], [0], [1], [0, 0, 1, 1], [], []>} : vector<56x64xf32>, vector<64x64xf32>, vector<56x64xf32> -> vector<56x64xf32>
    %100 = arith.addf %90, %99 : vector<56x64xf32>
    %c0_89 = arith.constant 0 : index
    %c0_90 = arith.constant 0 : index
    %101 = vector.load %arg7[%c0_89, %c0_90] : memref<1x64xf32, #tpu.memory_space<vmem>>, vector<1x64xf32>
    %102 = tpu.iota {dimensions = array<i32: 0>} : vector<56x1xi32>
    %c7_i32 = arith.constant 7 : i32
    %103 = vector.broadcast %c7_i32 : i32 to vector<56x1xi32>
    %104 = arith.andi %102, %103 : vector<56x1xi32>
    %c7_i32_91 = arith.constant 7 : i32
    %105 = vector.broadcast %c7_i32_91 : i32 to vector<56x1xi32>
    %106 = arith.cmpi slt, %104, %105 : vector<56x1xi32>
    %cst_92 = arith.constant 1.000000e+00 : f32
    %cst_93 = arith.constant 0.000000e+00 : f32
    %107 = vector.broadcast %cst_92 : f32 to vector<56x1xf32>
    %108 = vector.broadcast %cst_93 : f32 to vector<56x1xf32>
    %109 = arith.select %106, %107, %108 : vector<56x1xi1>, vector<56x1xf32>
    %110 = vector.broadcast %101 : vector<1x64xf32> to vector<56x64xf32>
    %111 = arith.addf %97, %110 : vector<56x64xf32>
    %112 = vector.broadcast %109 : vector<56x1xf32> to vector<56x64xf32>
    %113 = arith.mulf %111, %112 : vector<56x64xf32>
    %cst_94 = arith.constant dense<0.000000e+00> : vector<64xf32>
    %114 = vector.multi_reduction <add>, %113, %cst_94 [0] : vector<56x64xf32> to vector<64xf32>
    %115 = vector.shape_cast %114 : vector<64xf32> to vector<1x64xf32>
    %116 = arith.mulf %113, %111 : vector<56x64xf32>
    %cst_95 = arith.constant dense<0.000000e+00> : vector<64xf32>
    %117 = vector.multi_reduction <add>, %116, %cst_95 [0] : vector<56x64xf32> to vector<64xf32>
    %118 = vector.shape_cast %117 : vector<64xf32> to vector<1x64xf32>
    %119 = vector.broadcast %101 : vector<1x64xf32> to vector<56x64xf32>
    %120 = arith.addf %100, %119 : vector<56x64xf32>
    %121 = vector.broadcast %109 : vector<56x1xf32> to vector<56x64xf32>
    %122 = arith.mulf %120, %121 : vector<56x64xf32>
    %cst_96 = arith.constant dense<0.000000e+00> : vector<64xf32>
    %123 = vector.multi_reduction <add>, %122, %cst_96 [0] : vector<56x64xf32> to vector<64xf32>
    %124 = vector.shape_cast %123 : vector<64xf32> to vector<1x64xf32>
    %125 = arith.mulf %122, %120 : vector<56x64xf32>
    %cst_97 = arith.constant dense<0.000000e+00> : vector<64xf32>
    %126 = vector.multi_reduction <add>, %125, %cst_97 [0] : vector<56x64xf32> to vector<64xf32>
    %127 = vector.shape_cast %126 : vector<64xf32> to vector<1x64xf32>
    %128 = arith.addf %115, %124 : vector<1x64xf32>
    %129 = arith.addf %118, %127 : vector<1x64xf32>
    %cst_98 = arith.constant 0.0102040814 : f32
    %130 = vector.broadcast %cst_98 : f32 to vector<1x64xf32>
    %131 = arith.mulf %128, %130 : vector<1x64xf32>
    %cst_99 = arith.constant 0.0102040814 : f32
    %132 = vector.broadcast %cst_99 : f32 to vector<1x64xf32>
    %133 = arith.mulf %129, %132 : vector<1x64xf32>
    %134 = arith.mulf %131, %131 : vector<1x64xf32>
    %135 = arith.subf %133, %134 : vector<1x64xf32>
    %cst_100 = arith.constant 0.000000e+00 : f32
    %136 = vector.broadcast %cst_100 : f32 to vector<1x64xf32>
    %137 = arith.maximumf %135, %136 : vector<1x64xf32>
    %c0_101 = arith.constant 0 : index
    %c0_102 = arith.constant 0 : index
    %138 = vector.load %arg8[%c0_101, %c0_102] : memref<1x64xf32, #tpu.memory_space<vmem>>, vector<1x64xf32>
    %cst_103 = arith.constant 9.99999974E-6 : f32
    %139 = vector.broadcast %cst_103 : f32 to vector<1x64xf32>
    %140 = arith.addf %137, %139 : vector<1x64xf32>
    %141 = math.rsqrt %140 : vector<1x64xf32>
    %142 = arith.mulf %138, %141 : vector<1x64xf32>
    %c0_104 = arith.constant 0 : index
    %c0_105 = arith.constant 0 : index
    %143 = vector.load %arg9[%c0_104, %c0_105] : memref<1x64xf32, #tpu.memory_space<vmem>>, vector<1x64xf32>
    %144 = arith.mulf %131, %142 : vector<1x64xf32>
    %145 = arith.subf %143, %144 : vector<1x64xf32>
    %146 = vector.broadcast %142 : vector<1x64xf32> to vector<56x64xf32>
    %147 = arith.mulf %111, %146 : vector<56x64xf32>
    %148 = vector.broadcast %145 : vector<1x64xf32> to vector<56x64xf32>
    %149 = arith.addf %147, %148 : vector<56x64xf32>
    %cst_106 = arith.constant 0.000000e+00 : f32
    %150 = vector.broadcast %cst_106 : f32 to vector<56x64xf32>
    %151 = arith.cmpf ogt, %149, %150 : vector<56x64xf32>
    %cst_107 = arith.constant 0.00999999977 : f32
    %152 = vector.broadcast %cst_107 : f32 to vector<56x64xf32>
    %153 = arith.mulf %152, %149 : vector<56x64xf32>
    %154 = arith.select %151, %149, %153 : vector<56x64xi1>, vector<56x64xf32>
    %155 = vector.broadcast %142 : vector<1x64xf32> to vector<56x64xf32>
    %156 = arith.mulf %120, %155 : vector<56x64xf32>
    %157 = vector.broadcast %145 : vector<1x64xf32> to vector<56x64xf32>
    %158 = arith.addf %156, %157 : vector<56x64xf32>
    %cst_108 = arith.constant 0.000000e+00 : f32
    %159 = vector.broadcast %cst_108 : f32 to vector<56x64xf32>
    %160 = arith.cmpf ogt, %158, %159 : vector<56x64xf32>
    %cst_109 = arith.constant 0.00999999977 : f32
    %161 = vector.broadcast %cst_109 : f32 to vector<56x64xf32>
    %162 = arith.mulf %161, %158 : vector<56x64xf32>
    %163 = arith.select %160, %158, %162 : vector<56x64xi1>, vector<56x64xf32>
    %c0_110 = arith.constant 0 : index
    %c0_111 = arith.constant 0 : index
    %c0_112 = arith.constant 0 : index
    %164 = vector.load %arg3[%c0_110, %c0_111, %c0_112] : memref<9x16x56xf32, #tpu.memory_space<vmem>>, vector<1x16x56xf32>
    %165 = vector.shape_cast %164 : vector<1x16x56xf32> to vector<16x56xf32>
    %c0_113 = arith.constant 0 : index
    %c0_114 = arith.constant 0 : index
    %c0_115 = arith.constant 0 : index
    %166 = vector.load %arg10[%c0_113, %c0_114, %c0_115] : memref<9x64x128xf32, #tpu.memory_space<vmem>>, vector<1x64x128xf32>
    %167 = vector.shape_cast %166 : vector<1x64x128xf32> to vector<64x128xf32>
    %cst_116 = arith.constant dense<0.000000e+00> : vector<16x64xf32>
    %168 = tpu.matmul %165, %154, %cst_116 {dimension_numbers = #tpu.dot_dimension_numbers<[1], [0], [0], [1], [0, 0, 1, 1], [], []>} : vector<16x56xf32>, vector<56x64xf32>, vector<16x64xf32> -> vector<16x64xf32>
    %cst_117 = arith.constant dense<0.000000e+00> : vector<16x128xf32>
    %169 = tpu.matmul %168, %167, %cst_117 {dimension_numbers = #tpu.dot_dimension_numbers<[1], [0], [0], [1], [0, 0, 1, 1], [], []>} : vector<16x64xf32>, vector<64x128xf32>, vector<16x128xf32> -> vector<16x128xf32>
    %cst_118 = arith.constant dense<0.000000e+00> : vector<16x64xf32>
    %170 = tpu.matmul %165, %163, %cst_118 {dimension_numbers = #tpu.dot_dimension_numbers<[1], [0], [0], [1], [0, 0, 1, 1], [], []>} : vector<16x56xf32>, vector<56x64xf32>, vector<16x64xf32> -> vector<16x64xf32>
    %cst_119 = arith.constant dense<0.000000e+00> : vector<16x128xf32>
    %171 = tpu.matmul %170, %167, %cst_119 {dimension_numbers = #tpu.dot_dimension_numbers<[1], [0], [0], [1], [0, 0, 1, 1], [], []>} : vector<16x64xf32>, vector<64x128xf32>, vector<16x128xf32> -> vector<16x128xf32>
    %c1_120 = arith.constant 1 : index
    %c0_121 = arith.constant 0 : index
    %c0_122 = arith.constant 0 : index
    %172 = vector.load %arg3[%c1_120, %c0_121, %c0_122] : memref<9x16x56xf32, #tpu.memory_space<vmem>>, vector<1x16x56xf32>
    %173 = vector.shape_cast %172 : vector<1x16x56xf32> to vector<16x56xf32>
    %c1_123 = arith.constant 1 : index
    %c0_124 = arith.constant 0 : index
    %c0_125 = arith.constant 0 : index
    %174 = vector.load %arg10[%c1_123, %c0_124, %c0_125] : memref<9x64x128xf32, #tpu.memory_space<vmem>>, vector<1x64x128xf32>
    %175 = vector.shape_cast %174 : vector<1x64x128xf32> to vector<64x128xf32>
    %cst_126 = arith.constant dense<0.000000e+00> : vector<16x64xf32>
    %176 = tpu.matmul %173, %154, %cst_126 {dimension_numbers = #tpu.dot_dimension_numbers<[1], [0], [0], [1], [0, 0, 1, 1], [], []>} : vector<16x56xf32>, vector<56x64xf32>, vector<16x64xf32> -> vector<16x64xf32>
    %cst_127 = arith.constant dense<0.000000e+00> : vector<16x128xf32>
    %177 = tpu.matmul %176, %175, %cst_127 {dimension_numbers = #tpu.dot_dimension_numbers<[1], [0], [0], [1], [0, 0, 1, 1], [], []>} : vector<16x64xf32>, vector<64x128xf32>, vector<16x128xf32> -> vector<16x128xf32>
    %178 = arith.addf %169, %177 : vector<16x128xf32>
    %cst_128 = arith.constant dense<0.000000e+00> : vector<16x64xf32>
    %179 = tpu.matmul %173, %163, %cst_128 {dimension_numbers = #tpu.dot_dimension_numbers<[1], [0], [0], [1], [0, 0, 1, 1], [], []>} : vector<16x56xf32>, vector<56x64xf32>, vector<16x64xf32> -> vector<16x64xf32>
    %cst_129 = arith.constant dense<0.000000e+00> : vector<16x128xf32>
    %180 = tpu.matmul %179, %175, %cst_129 {dimension_numbers = #tpu.dot_dimension_numbers<[1], [0], [0], [1], [0, 0, 1, 1], [], []>} : vector<16x64xf32>, vector<64x128xf32>, vector<16x128xf32> -> vector<16x128xf32>
    %181 = arith.addf %171, %180 : vector<16x128xf32>
    %c2_130 = arith.constant 2 : index
    %c0_131 = arith.constant 0 : index
    %c0_132 = arith.constant 0 : index
    %182 = vector.load %arg3[%c2_130, %c0_131, %c0_132] : memref<9x16x56xf32, #tpu.memory_space<vmem>>, vector<1x16x56xf32>
    %183 = vector.shape_cast %182 : vector<1x16x56xf32> to vector<16x56xf32>
    %c2_133 = arith.constant 2 : index
    %c0_134 = arith.constant 0 : index
    %c0_135 = arith.constant 0 : index
    %184 = vector.load %arg10[%c2_133, %c0_134, %c0_135] : memref<9x64x128xf32, #tpu.memory_space<vmem>>, vector<1x64x128xf32>
    %185 = vector.shape_cast %184 : vector<1x64x128xf32> to vector<64x128xf32>
    %cst_136 = arith.constant dense<0.000000e+00> : vector<16x64xf32>
    %186 = tpu.matmul %183, %154, %cst_136 {dimension_numbers = #tpu.dot_dimension_numbers<[1], [0], [0], [1], [0, 0, 1, 1], [], []>} : vector<16x56xf32>, vector<56x64xf32>, vector<16x64xf32> -> vector<16x64xf32>
    %cst_137 = arith.constant dense<0.000000e+00> : vector<16x128xf32>
    %187 = tpu.matmul %186, %185, %cst_137 {dimension_numbers = #tpu.dot_dimension_numbers<[1], [0], [0], [1], [0, 0, 1, 1], [], []>} : vector<16x64xf32>, vector<64x128xf32>, vector<16x128xf32> -> vector<16x128xf32>
    %188 = arith.addf %178, %187 : vector<16x128xf32>
    %cst_138 = arith.constant dense<0.000000e+00> : vector<16x64xf32>
    %189 = tpu.matmul %183, %163, %cst_138 {dimension_numbers = #tpu.dot_dimension_numbers<[1], [0], [0], [1], [0, 0, 1, 1], [], []>} : vector<16x56xf32>, vector<56x64xf32>, vector<16x64xf32> -> vector<16x64xf32>
    %cst_139 = arith.constant dense<0.000000e+00> : vector<16x128xf32>
    %190 = tpu.matmul %189, %185, %cst_139 {dimension_numbers = #tpu.dot_dimension_numbers<[1], [0], [0], [1], [0, 0, 1, 1], [], []>} : vector<16x64xf32>, vector<64x128xf32>, vector<16x128xf32> -> vector<16x128xf32>
    %191 = arith.addf %181, %190 : vector<16x128xf32>
    %c3_140 = arith.constant 3 : index
    %c0_141 = arith.constant 0 : index
    %c0_142 = arith.constant 0 : index
    %192 = vector.load %arg3[%c3_140, %c0_141, %c0_142] : memref<9x16x56xf32, #tpu.memory_space<vmem>>, vector<1x16x56xf32>
    %193 = vector.shape_cast %192 : vector<1x16x56xf32> to vector<16x56xf32>
    %c3_143 = arith.constant 3 : index
    %c0_144 = arith.constant 0 : index
    %c0_145 = arith.constant 0 : index
    %194 = vector.load %arg10[%c3_143, %c0_144, %c0_145] : memref<9x64x128xf32, #tpu.memory_space<vmem>>, vector<1x64x128xf32>
    %195 = vector.shape_cast %194 : vector<1x64x128xf32> to vector<64x128xf32>
    %cst_146 = arith.constant dense<0.000000e+00> : vector<16x64xf32>
    %196 = tpu.matmul %193, %154, %cst_146 {dimension_numbers = #tpu.dot_dimension_numbers<[1], [0], [0], [1], [0, 0, 1, 1], [], []>} : vector<16x56xf32>, vector<56x64xf32>, vector<16x64xf32> -> vector<16x64xf32>
    %cst_147 = arith.constant dense<0.000000e+00> : vector<16x128xf32>
    %197 = tpu.matmul %196, %195, %cst_147 {dimension_numbers = #tpu.dot_dimension_numbers<[1], [0], [0], [1], [0, 0, 1, 1], [], []>} : vector<16x64xf32>, vector<64x128xf32>, vector<16x128xf32> -> vector<16x128xf32>
    %198 = arith.addf %188, %197 : vector<16x128xf32>
    %cst_148 = arith.constant dense<0.000000e+00> : vector<16x64xf32>
    %199 = tpu.matmul %193, %163, %cst_148 {dimension_numbers = #tpu.dot_dimension_numbers<[1], [0], [0], [1], [0, 0, 1, 1], [], []>} : vector<16x56xf32>, vector<56x64xf32>, vector<16x64xf32> -> vector<16x64xf32>
    %cst_149 = arith.constant dense<0.000000e+00> : vector<16x128xf32>
    %200 = tpu.matmul %199, %195, %cst_149 {dimension_numbers = #tpu.dot_dimension_numbers<[1], [0], [0], [1], [0, 0, 1, 1], [], []>} : vector<16x64xf32>, vector<64x128xf32>, vector<16x128xf32> -> vector<16x128xf32>
    %201 = arith.addf %191, %200 : vector<16x128xf32>
    %c4_150 = arith.constant 4 : index
    %c0_151 = arith.constant 0 : index
    %c0_152 = arith.constant 0 : index
    %202 = vector.load %arg3[%c4_150, %c0_151, %c0_152] : memref<9x16x56xf32, #tpu.memory_space<vmem>>, vector<1x16x56xf32>
    %203 = vector.shape_cast %202 : vector<1x16x56xf32> to vector<16x56xf32>
    %c4_153 = arith.constant 4 : index
    %c0_154 = arith.constant 0 : index
    %c0_155 = arith.constant 0 : index
    %204 = vector.load %arg10[%c4_153, %c0_154, %c0_155] : memref<9x64x128xf32, #tpu.memory_space<vmem>>, vector<1x64x128xf32>
    %205 = vector.shape_cast %204 : vector<1x64x128xf32> to vector<64x128xf32>
    %cst_156 = arith.constant dense<0.000000e+00> : vector<16x64xf32>
    %206 = tpu.matmul %203, %154, %cst_156 {dimension_numbers = #tpu.dot_dimension_numbers<[1], [0], [0], [1], [0, 0, 1, 1], [], []>} : vector<16x56xf32>, vector<56x64xf32>, vector<16x64xf32> -> vector<16x64xf32>
    %cst_157 = arith.constant dense<0.000000e+00> : vector<16x128xf32>
    %207 = tpu.matmul %206, %205, %cst_157 {dimension_numbers = #tpu.dot_dimension_numbers<[1], [0], [0], [1], [0, 0, 1, 1], [], []>} : vector<16x64xf32>, vector<64x128xf32>, vector<16x128xf32> -> vector<16x128xf32>
    %208 = arith.addf %198, %207 : vector<16x128xf32>
    %cst_158 = arith.constant dense<0.000000e+00> : vector<16x64xf32>
    %209 = tpu.matmul %203, %163, %cst_158 {dimension_numbers = #tpu.dot_dimension_numbers<[1], [0], [0], [1], [0, 0, 1, 1], [], []>} : vector<16x56xf32>, vector<56x64xf32>, vector<16x64xf32> -> vector<16x64xf32>
    %cst_159 = arith.constant dense<0.000000e+00> : vector<16x128xf32>
    %210 = tpu.matmul %209, %205, %cst_159 {dimension_numbers = #tpu.dot_dimension_numbers<[1], [0], [0], [1], [0, 0, 1, 1], [], []>} : vector<16x64xf32>, vector<64x128xf32>, vector<16x128xf32> -> vector<16x128xf32>
    %211 = arith.addf %201, %210 : vector<16x128xf32>
    %c5_160 = arith.constant 5 : index
    %c0_161 = arith.constant 0 : index
    %c0_162 = arith.constant 0 : index
    %212 = vector.load %arg3[%c5_160, %c0_161, %c0_162] : memref<9x16x56xf32, #tpu.memory_space<vmem>>, vector<1x16x56xf32>
    %213 = vector.shape_cast %212 : vector<1x16x56xf32> to vector<16x56xf32>
    %c5_163 = arith.constant 5 : index
    %c0_164 = arith.constant 0 : index
    %c0_165 = arith.constant 0 : index
    %214 = vector.load %arg10[%c5_163, %c0_164, %c0_165] : memref<9x64x128xf32, #tpu.memory_space<vmem>>, vector<1x64x128xf32>
    %215 = vector.shape_cast %214 : vector<1x64x128xf32> to vector<64x128xf32>
    %cst_166 = arith.constant dense<0.000000e+00> : vector<16x64xf32>
    %216 = tpu.matmul %213, %154, %cst_166 {dimension_numbers = #tpu.dot_dimension_numbers<[1], [0], [0], [1], [0, 0, 1, 1], [], []>} : vector<16x56xf32>, vector<56x64xf32>, vector<16x64xf32> -> vector<16x64xf32>
    %cst_167 = arith.constant dense<0.000000e+00> : vector<16x128xf32>
    %217 = tpu.matmul %216, %215, %cst_167 {dimension_numbers = #tpu.dot_dimension_numbers<[1], [0], [0], [1], [0, 0, 1, 1], [], []>} : vector<16x64xf32>, vector<64x128xf32>, vector<16x128xf32> -> vector<16x128xf32>
    %218 = arith.addf %208, %217 : vector<16x128xf32>
    %cst_168 = arith.constant dense<0.000000e+00> : vector<16x64xf32>
    %219 = tpu.matmul %213, %163, %cst_168 {dimension_numbers = #tpu.dot_dimension_numbers<[1], [0], [0], [1], [0, 0, 1, 1], [], []>} : vector<16x56xf32>, vector<56x64xf32>, vector<16x64xf32> -> vector<16x64xf32>
    %cst_169 = arith.constant dense<0.000000e+00> : vector<16x128xf32>
    %220 = tpu.matmul %219, %215, %cst_169 {dimension_numbers = #tpu.dot_dimension_numbers<[1], [0], [0], [1], [0, 0, 1, 1], [], []>} : vector<16x64xf32>, vector<64x128xf32>, vector<16x128xf32> -> vector<16x128xf32>
    %221 = arith.addf %211, %220 : vector<16x128xf32>
    %c6_170 = arith.constant 6 : index
    %c0_171 = arith.constant 0 : index
    %c0_172 = arith.constant 0 : index
    %222 = vector.load %arg3[%c6_170, %c0_171, %c0_172] : memref<9x16x56xf32, #tpu.memory_space<vmem>>, vector<1x16x56xf32>
    %223 = vector.shape_cast %222 : vector<1x16x56xf32> to vector<16x56xf32>
    %c6_173 = arith.constant 6 : index
    %c0_174 = arith.constant 0 : index
    %c0_175 = arith.constant 0 : index
    %224 = vector.load %arg10[%c6_173, %c0_174, %c0_175] : memref<9x64x128xf32, #tpu.memory_space<vmem>>, vector<1x64x128xf32>
    %225 = vector.shape_cast %224 : vector<1x64x128xf32> to vector<64x128xf32>
    %cst_176 = arith.constant dense<0.000000e+00> : vector<16x64xf32>
    %226 = tpu.matmul %223, %154, %cst_176 {dimension_numbers = #tpu.dot_dimension_numbers<[1], [0], [0], [1], [0, 0, 1, 1], [], []>} : vector<16x56xf32>, vector<56x64xf32>, vector<16x64xf32> -> vector<16x64xf32>
    %cst_177 = arith.constant dense<0.000000e+00> : vector<16x128xf32>
    %227 = tpu.matmul %226, %225, %cst_177 {dimension_numbers = #tpu.dot_dimension_numbers<[1], [0], [0], [1], [0, 0, 1, 1], [], []>} : vector<16x64xf32>, vector<64x128xf32>, vector<16x128xf32> -> vector<16x128xf32>
    %228 = arith.addf %218, %227 : vector<16x128xf32>
    %cst_178 = arith.constant dense<0.000000e+00> : vector<16x64xf32>
    %229 = tpu.matmul %223, %163, %cst_178 {dimension_numbers = #tpu.dot_dimension_numbers<[1], [0], [0], [1], [0, 0, 1, 1], [], []>} : vector<16x56xf32>, vector<56x64xf32>, vector<16x64xf32> -> vector<16x64xf32>
    %cst_179 = arith.constant dense<0.000000e+00> : vector<16x128xf32>
    %230 = tpu.matmul %229, %225, %cst_179 {dimension_numbers = #tpu.dot_dimension_numbers<[1], [0], [0], [1], [0, 0, 1, 1], [], []>} : vector<16x64xf32>, vector<64x128xf32>, vector<16x128xf32> -> vector<16x128xf32>
    %231 = arith.addf %221, %230 : vector<16x128xf32>
    %c7_180 = arith.constant 7 : index
    %c0_181 = arith.constant 0 : index
    %c0_182 = arith.constant 0 : index
    %232 = vector.load %arg3[%c7_180, %c0_181, %c0_182] : memref<9x16x56xf32, #tpu.memory_space<vmem>>, vector<1x16x56xf32>
    %233 = vector.shape_cast %232 : vector<1x16x56xf32> to vector<16x56xf32>
    %c7_183 = arith.constant 7 : index
    %c0_184 = arith.constant 0 : index
    %c0_185 = arith.constant 0 : index
    %234 = vector.load %arg10[%c7_183, %c0_184, %c0_185] : memref<9x64x128xf32, #tpu.memory_space<vmem>>, vector<1x64x128xf32>
    %235 = vector.shape_cast %234 : vector<1x64x128xf32> to vector<64x128xf32>
    %cst_186 = arith.constant dense<0.000000e+00> : vector<16x64xf32>
    %236 = tpu.matmul %233, %154, %cst_186 {dimension_numbers = #tpu.dot_dimension_numbers<[1], [0], [0], [1], [0, 0, 1, 1], [], []>} : vector<16x56xf32>, vector<56x64xf32>, vector<16x64xf32> -> vector<16x64xf32>
    %cst_187 = arith.constant dense<0.000000e+00> : vector<16x128xf32>
    %237 = tpu.matmul %236, %235, %cst_187 {dimension_numbers = #tpu.dot_dimension_numbers<[1], [0], [0], [1], [0, 0, 1, 1], [], []>} : vector<16x64xf32>, vector<64x128xf32>, vector<16x128xf32> -> vector<16x128xf32>
    %238 = arith.addf %228, %237 : vector<16x128xf32>
    %cst_188 = arith.constant dense<0.000000e+00> : vector<16x64xf32>
    %239 = tpu.matmul %233, %163, %cst_188 {dimension_numbers = #tpu.dot_dimension_numbers<[1], [0], [0], [1], [0, 0, 1, 1], [], []>} : vector<16x56xf32>, vector<56x64xf32>, vector<16x64xf32> -> vector<16x64xf32>
    %cst_189 = arith.constant dense<0.000000e+00> : vector<16x128xf32>
    %240 = tpu.matmul %239, %235, %cst_189 {dimension_numbers = #tpu.dot_dimension_numbers<[1], [0], [0], [1], [0, 0, 1, 1], [], []>} : vector<16x64xf32>, vector<64x128xf32>, vector<16x128xf32> -> vector<16x128xf32>
    %241 = arith.addf %231, %240 : vector<16x128xf32>
    %c8_190 = arith.constant 8 : index
    %c0_191 = arith.constant 0 : index
    %c0_192 = arith.constant 0 : index
    %242 = vector.load %arg3[%c8_190, %c0_191, %c0_192] : memref<9x16x56xf32, #tpu.memory_space<vmem>>, vector<1x16x56xf32>
    %243 = vector.shape_cast %242 : vector<1x16x56xf32> to vector<16x56xf32>
    %c8_193 = arith.constant 8 : index
    %c0_194 = arith.constant 0 : index
    %c0_195 = arith.constant 0 : index
    %244 = vector.load %arg10[%c8_193, %c0_194, %c0_195] : memref<9x64x128xf32, #tpu.memory_space<vmem>>, vector<1x64x128xf32>
    %245 = vector.shape_cast %244 : vector<1x64x128xf32> to vector<64x128xf32>
    %cst_196 = arith.constant dense<0.000000e+00> : vector<16x64xf32>
    %246 = tpu.matmul %243, %154, %cst_196 {dimension_numbers = #tpu.dot_dimension_numbers<[1], [0], [0], [1], [0, 0, 1, 1], [], []>} : vector<16x56xf32>, vector<56x64xf32>, vector<16x64xf32> -> vector<16x64xf32>
    %cst_197 = arith.constant dense<0.000000e+00> : vector<16x128xf32>
    %247 = tpu.matmul %246, %245, %cst_197 {dimension_numbers = #tpu.dot_dimension_numbers<[1], [0], [0], [1], [0, 0, 1, 1], [], []>} : vector<16x64xf32>, vector<64x128xf32>, vector<16x128xf32> -> vector<16x128xf32>
    %248 = arith.addf %238, %247 : vector<16x128xf32>
    %cst_198 = arith.constant dense<0.000000e+00> : vector<16x64xf32>
    %249 = tpu.matmul %243, %163, %cst_198 {dimension_numbers = #tpu.dot_dimension_numbers<[1], [0], [0], [1], [0, 0, 1, 1], [], []>} : vector<16x56xf32>, vector<56x64xf32>, vector<16x64xf32> -> vector<16x64xf32>
    %cst_199 = arith.constant dense<0.000000e+00> : vector<16x128xf32>
    %250 = tpu.matmul %249, %245, %cst_199 {dimension_numbers = #tpu.dot_dimension_numbers<[1], [0], [0], [1], [0, 0, 1, 1], [], []>} : vector<16x64xf32>, vector<64x128xf32>, vector<16x128xf32> -> vector<16x128xf32>
    %251 = arith.addf %241, %250 : vector<16x128xf32>
    %c0_200 = arith.constant 0 : index
    %c0_201 = arith.constant 0 : index
    %252 = vector.load %arg11[%c0_200, %c0_201] : memref<1x128xf32, #tpu.memory_space<vmem>>, vector<1x128xf32>
    %253 = tpu.iota {dimensions = array<i32: 0>} : vector<16x1xi32>
    %c2_i32 = arith.constant 2 : i32
    %254 = vector.broadcast %c2_i32 : i32 to vector<16x1xi32>
    %255 = arith.shrsi %253, %254 : vector<16x1xi32>
    %c3_i32 = arith.constant 3 : i32
    %256 = vector.broadcast %c3_i32 : i32 to vector<16x1xi32>
    %257 = arith.cmpi slt, %255, %256 : vector<16x1xi32>
    %c3_i32_202 = arith.constant 3 : i32
    %258 = vector.broadcast %c3_i32_202 : i32 to vector<16x1xi32>
    %259 = arith.andi %253, %258 : vector<16x1xi32>
    %c3_i32_203 = arith.constant 3 : i32
    %260 = vector.broadcast %c3_i32_203 : i32 to vector<16x1xi32>
    %261 = arith.cmpi slt, %259, %260 : vector<16x1xi32>
    %262 = arith.andi %257, %261 : vector<16x1xi1>
    %cst_204 = arith.constant 1.000000e+00 : f32
    %cst_205 = arith.constant 0.000000e+00 : f32
    %263 = vector.broadcast %cst_204 : f32 to vector<16x1xf32>
    %264 = vector.broadcast %cst_205 : f32 to vector<16x1xf32>
    %265 = arith.select %262, %263, %264 : vector<16x1xi1>, vector<16x1xf32>
    %266 = vector.broadcast %252 : vector<1x128xf32> to vector<16x128xf32>
    %267 = arith.addf %248, %266 : vector<16x128xf32>
    %268 = vector.broadcast %265 : vector<16x1xf32> to vector<16x128xf32>
    %269 = arith.mulf %267, %268 : vector<16x128xf32>
    %cst_206 = arith.constant dense<0.000000e+00> : vector<128xf32>
    %270 = vector.multi_reduction <add>, %269, %cst_206 [0] : vector<16x128xf32> to vector<128xf32>
    %271 = vector.shape_cast %270 : vector<128xf32> to vector<1x128xf32>
    %272 = arith.mulf %269, %267 : vector<16x128xf32>
    %cst_207 = arith.constant dense<0.000000e+00> : vector<128xf32>
    %273 = vector.multi_reduction <add>, %272, %cst_207 [0] : vector<16x128xf32> to vector<128xf32>
    %274 = vector.shape_cast %273 : vector<128xf32> to vector<1x128xf32>
    %275 = vector.broadcast %252 : vector<1x128xf32> to vector<16x128xf32>
    %276 = arith.addf %251, %275 : vector<16x128xf32>
    %277 = vector.broadcast %265 : vector<16x1xf32> to vector<16x128xf32>
    %278 = arith.mulf %276, %277 : vector<16x128xf32>
    %cst_208 = arith.constant dense<0.000000e+00> : vector<128xf32>
    %279 = vector.multi_reduction <add>, %278, %cst_208 [0] : vector<16x128xf32> to vector<128xf32>
    %280 = vector.shape_cast %279 : vector<128xf32> to vector<1x128xf32>
    %281 = arith.mulf %278, %276 : vector<16x128xf32>
    %cst_209 = arith.constant dense<0.000000e+00> : vector<128xf32>
    %282 = vector.multi_reduction <add>, %281, %cst_209 [0] : vector<16x128xf32> to vector<128xf32>
    %283 = vector.shape_cast %282 : vector<128xf32> to vector<1x128xf32>
    %284 = arith.addf %271, %280 : vector<1x128xf32>
    %285 = arith.addf %274, %283 : vector<1x128xf32>
    %cst_210 = arith.constant 0.055555556 : f32
    %286 = vector.broadcast %cst_210 : f32 to vector<1x128xf32>
    %287 = arith.mulf %284, %286 : vector<1x128xf32>
    %cst_211 = arith.constant 0.055555556 : f32
    %288 = vector.broadcast %cst_211 : f32 to vector<1x128xf32>
    %289 = arith.mulf %285, %288 : vector<1x128xf32>
    %290 = arith.mulf %287, %287 : vector<1x128xf32>
    %291 = arith.subf %289, %290 : vector<1x128xf32>
    %cst_212 = arith.constant 0.000000e+00 : f32
    %292 = vector.broadcast %cst_212 : f32 to vector<1x128xf32>
    %293 = arith.maximumf %291, %292 : vector<1x128xf32>
    %c0_213 = arith.constant 0 : index
    %c0_214 = arith.constant 0 : index
    %294 = vector.load %arg12[%c0_213, %c0_214] : memref<1x128xf32, #tpu.memory_space<vmem>>, vector<1x128xf32>
    %cst_215 = arith.constant 9.99999974E-6 : f32
    %295 = vector.broadcast %cst_215 : f32 to vector<1x128xf32>
    %296 = arith.addf %293, %295 : vector<1x128xf32>
    %297 = math.rsqrt %296 : vector<1x128xf32>
    %298 = arith.mulf %294, %297 : vector<1x128xf32>
    %c0_216 = arith.constant 0 : index
    %c0_217 = arith.constant 0 : index
    %299 = vector.load %arg13[%c0_216, %c0_217] : memref<1x128xf32, #tpu.memory_space<vmem>>, vector<1x128xf32>
    %300 = arith.mulf %287, %298 : vector<1x128xf32>
    %301 = arith.subf %299, %300 : vector<1x128xf32>
    %302 = vector.broadcast %298 : vector<1x128xf32> to vector<16x128xf32>
    %303 = arith.mulf %267, %302 : vector<16x128xf32>
    %304 = vector.broadcast %301 : vector<1x128xf32> to vector<16x128xf32>
    %305 = arith.addf %303, %304 : vector<16x128xf32>
    %cst_218 = arith.constant 0.000000e+00 : f32
    %306 = vector.broadcast %cst_218 : f32 to vector<16x128xf32>
    %307 = arith.cmpf ogt, %305, %306 : vector<16x128xf32>
    %cst_219 = arith.constant 0.00999999977 : f32
    %308 = vector.broadcast %cst_219 : f32 to vector<16x128xf32>
    %309 = arith.mulf %308, %305 : vector<16x128xf32>
    %310 = arith.select %307, %305, %309 : vector<16x128xi1>, vector<16x128xf32>
    %311 = vector.broadcast %298 : vector<1x128xf32> to vector<16x128xf32>
    %312 = arith.mulf %276, %311 : vector<16x128xf32>
    %313 = vector.broadcast %301 : vector<1x128xf32> to vector<16x128xf32>
    %314 = arith.addf %312, %313 : vector<16x128xf32>
    %cst_220 = arith.constant 0.000000e+00 : f32
    %315 = vector.broadcast %cst_220 : f32 to vector<16x128xf32>
    %316 = arith.cmpf ogt, %314, %315 : vector<16x128xf32>
    %cst_221 = arith.constant 0.00999999977 : f32
    %317 = vector.broadcast %cst_221 : f32 to vector<16x128xf32>
    %318 = arith.mulf %317, %314 : vector<16x128xf32>
    %319 = arith.select %316, %314, %318 : vector<16x128xi1>, vector<16x128xf32>
    %c0_222 = arith.constant 0 : index
    %c0_223 = arith.constant 0 : index
    %320 = vector.load %arg14[%c0_222, %c0_223] : memref<16x128xf32, #tpu.memory_space<vmem>>, vector<16x128xf32>
    %c0_224 = arith.constant 0 : index
    %c0_225 = arith.constant 0 : index
    %321 = vector.load %arg15[%c0_224, %c0_225] : memref<1x1xf32, #tpu.memory_space<vmem>>, vector<1x1xf32>
    %322 = arith.mulf %310, %320 : vector<16x128xf32>
    %cst_226 = arith.constant dense<0.000000e+00> : vector<16xf32>
    %323 = vector.multi_reduction <add>, %322, %cst_226 [1] : vector<16x128xf32> to vector<16xf32>
    %324 = vector.shape_cast %323 : vector<16xf32> to vector<16x1xf32>
    %cst_227 = arith.constant dense<0.000000e+00> : vector<1xf32>
    %325 = vector.multi_reduction <add>, %324, %cst_227 [0] : vector<16x1xf32> to vector<1xf32>
    %326 = vector.shape_cast %325 : vector<1xf32> to vector<1x1xf32>
    %327 = arith.addf %326, %321 : vector<1x1xf32>
    %cst_228 = arith.constant 0.000000e+00 : f32
    %328 = vector.broadcast %cst_228 : f32 to vector<1x1xf32>
    %329 = arith.subf %328, %327 : vector<1x1xf32>
    %330 = math.exp %329 : vector<1x1xf32>
    %cst_229 = arith.constant 1.000000e+00 : f32
    %331 = vector.broadcast %cst_229 : f32 to vector<1x1xf32>
    %332 = arith.addf %331, %330 : vector<1x1xf32>
    %cst_230 = arith.constant 1.000000e+00 : f32
    %333 = vector.broadcast %cst_230 : f32 to vector<1x1xf32>
    %334 = arith.divf %333, %332 : vector<1x1xf32>
    %c0_231 = arith.constant 0 : index
    %c0_232 = arith.constant 0 : index
    %335 = vector.load %arg16[%c0_231, %c0_232] : memref<2x1xf32, #tpu.memory_space<vmem>>, vector<1x1xf32>
    tpu.vector_store %arg16[%c0_231, %c0_232], %334 {strides = array<i32>} : memref<2x1xf32, #tpu.memory_space<vmem>>, vector<1x1xf32>,
    %336 = arith.mulf %319, %320 : vector<16x128xf32>
    %cst_233 = arith.constant dense<0.000000e+00> : vector<16xf32>
    %337 = vector.multi_reduction <add>, %336, %cst_233 [1] : vector<16x128xf32> to vector<16xf32>
    %338 = vector.shape_cast %337 : vector<16xf32> to vector<16x1xf32>
    %cst_234 = arith.constant dense<0.000000e+00> : vector<1xf32>
    %339 = vector.multi_reduction <add>, %338, %cst_234 [0] : vector<16x1xf32> to vector<1xf32>
    %340 = vector.shape_cast %339 : vector<1xf32> to vector<1x1xf32>
    %341 = arith.addf %340, %321 : vector<1x1xf32>
    %cst_235 = arith.constant 0.000000e+00 : f32
    %342 = vector.broadcast %cst_235 : f32 to vector<1x1xf32>
    %343 = arith.subf %342, %341 : vector<1x1xf32>
    %344 = math.exp %343 : vector<1x1xf32>
    %cst_236 = arith.constant 1.000000e+00 : f32
    %345 = vector.broadcast %cst_236 : f32 to vector<1x1xf32>
    %346 = arith.addf %345, %344 : vector<1x1xf32>
    %cst_237 = arith.constant 1.000000e+00 : f32
    %347 = vector.broadcast %cst_237 : f32 to vector<1x1xf32>
    %348 = arith.divf %347, %346 : vector<1x1xf32>
    %c1_238 = arith.constant 1 : index
    %c0_239 = arith.constant 0 : index
    %349 = vector.load %arg16[%c1_238, %c0_239] : memref<2x1xf32, #tpu.memory_space<vmem>>, vector<1x1xf32>
    tpu.vector_store %arg16[%c1_238, %c0_239], %348 {strides = array<i32>} : memref<2x1xf32, #tpu.memory_space<vmem>>, vector<1x1xf32>,
    return
  }
  func.func @transform_0(%arg0: i32) -> (i32, i32) {
    %c0_i32 = arith.constant 0 : i32
    %c0_i32_0 = arith.constant 0 : i32
    %c0_i32_1 = arith.constant 0 : i32
    return %c0_i32, %c0_i32_0 : i32, i32
  }
  func.func @transform_1(%arg0: i32) -> (i32, i32, i32) {
    %c0_i32 = arith.constant 0 : i32
    %c0_i32_0 = arith.constant 0 : i32
    %c0_i32_1 = arith.constant 0 : i32
    %c0_i32_2 = arith.constant 0 : i32
    return %c0_i32, %c0_i32_0, %c0_i32_1 : i32, i32, i32
  }
  func.func @transform_2(%arg0: i32) -> (i32, i32, i32) {
    %c0_i32 = arith.constant 0 : i32
    %c0_i32_0 = arith.constant 0 : i32
    %c0_i32_1 = arith.constant 0 : i32
    %c0_i32_2 = arith.constant 0 : i32
    return %c0_i32, %c0_i32_0, %c0_i32_1 : i32, i32, i32
  }
  func.func @transform_3(%arg0: i32) -> (i32, i32) {
    %c0_i32 = arith.constant 0 : i32
    %c0_i32_0 = arith.constant 0 : i32
    %c0_i32_1 = arith.constant 0 : i32
    return %c0_i32, %c0_i32_0 : i32, i32
  }
  func.func @transform_4(%arg0: i32) -> (i32, i32) {
    %c0_i32 = arith.constant 0 : i32
    %c0_i32_0 = arith.constant 0 : i32
    %c0_i32_1 = arith.constant 0 : i32
    return %c0_i32, %c0_i32_0 : i32, i32
  }
  func.func @transform_5(%arg0: i32) -> (i32, i32, i32) {
    %c0_i32 = arith.constant 0 : i32
    %c0_i32_0 = arith.constant 0 : i32
    %c0_i32_1 = arith.constant 0 : i32
    %c0_i32_2 = arith.constant 0 : i32
    return %c0_i32, %c0_i32_0, %c0_i32_1 : i32, i32, i32
  }
  func.func @transform_6(%arg0: i32) -> (i32, i32) {
    %c0_i32 = arith.constant 0 : i32
    %c0_i32_0 = arith.constant 0 : i32
    %c0_i32_1 = arith.constant 0 : i32
    return %c0_i32, %c0_i32_0 : i32, i32
  }
  func.func @transform_7(%arg0: i32) -> (i32, i32) {
    %c0_i32 = arith.constant 0 : i32
    %c0_i32_0 = arith.constant 0 : i32
    %c0_i32_1 = arith.constant 0 : i32
    return %c0_i32, %c0_i32_0 : i32, i32
  }
  func.func @transform_8(%arg0: i32) -> (i32, i32) {
    %c0_i32 = arith.constant 0 : i32
    %c0_i32_0 = arith.constant 0 : i32
    %c0_i32_1 = arith.constant 0 : i32
    return %c0_i32, %c0_i32_0 : i32, i32
  }
  func.func @transform_9(%arg0: i32) -> (i32, i32, i32) {
    %c0_i32 = arith.constant 0 : i32
    %c0_i32_0 = arith.constant 0 : i32
    %c0_i32_1 = arith.constant 0 : i32
    %c0_i32_2 = arith.constant 0 : i32
    return %c0_i32, %c0_i32_0, %c0_i32_1 : i32, i32, i32
  }
  func.func @transform_10(%arg0: i32) -> (i32, i32) {
    %c0_i32 = arith.constant 0 : i32
    %c0_i32_0 = arith.constant 0 : i32
    %c0_i32_1 = arith.constant 0 : i32
    return %c0_i32, %c0_i32_0 : i32, i32
  }
  func.func @transform_11(%arg0: i32) -> (i32, i32) {
    %c0_i32 = arith.constant 0 : i32
    %c0_i32_0 = arith.constant 0 : i32
    %c0_i32_1 = arith.constant 0 : i32
    return %c0_i32, %c0_i32_0 : i32, i32
  }
  func.func @transform_12(%arg0: i32) -> (i32, i32) {
    %c0_i32 = arith.constant 0 : i32
    %c0_i32_0 = arith.constant 0 : i32
    %c0_i32_1 = arith.constant 0 : i32
    return %c0_i32, %c0_i32_0 : i32, i32
  }
  func.func @transform_13(%arg0: i32) -> (i32, i32) {
    %c0_i32 = arith.constant 0 : i32
    %c0_i32_0 = arith.constant 0 : i32
    %c0_i32_1 = arith.constant 0 : i32
    return %c0_i32, %c0_i32_0 : i32, i32
  }
  func.func @transform_14(%arg0: i32) -> (i32, i32) {
    %c0_i32 = arith.constant 0 : i32
    %c0_i32_0 = arith.constant 0 : i32
    %c0_i32_1 = arith.constant 0 : i32
    return %c0_i32, %c0_i32_0 : i32, i32
  }
  func.func @transform_15(%arg0: i32) -> (i32, i32) {
    %c0_i32 = arith.constant 0 : i32
    %c0_i32_0 = arith.constant 0 : i32
    %c0_i32_1 = arith.constant 0 : i32
    return %c0_i32, %c0_i32_0 : i32, i32
  }
}

</mosaic_0001>

<llo_original>
// kernel: discriminator_forward.1
$region0: #{discriminator_forward.1}
  #allocation0 [shape = 'u32[]', space=smem, size = 0x4, offset = 0x4, fixed_abs, tag = 'smem constant byte address 0x4 - core index']
  #allocation1 [shape = 'u32[72,128]{1,0:T(1,128)}', space=vmem, size = 0x9000, scoped, tag = 'internal scratch']
  #allocation2 [shape = 'f32[1,1]{1,0:T(1,128)S(1)}', space=vmem, size = 0x200, scoped, tag = 'scoped memory for discriminator_forward.1']
  %s0 = inlined_call_operand.vmem [shape: f32[448,18], index: 0, kind: input, shape index: {}]
  %s1 = inlined_call_operand.vmem [shape: f32[9,56,224], index: 1, kind: input, shape index: {}]
  %s2 = inlined_call_operand.vmem [shape: f32[9,16,56], index: 2, kind: input, shape index: {}]
  %s3 = inlined_call_operand.vmem [shape: f32[18,64], index: 3, kind: input, shape index: {}]
  %s4 = inlined_call_operand.vmem [shape: f32[1,64], index: 4, kind: input, shape index: {}]
  %s5 = inlined_call_operand.vmem [shape: f32[9,64,64], index: 5, kind: input, shape index: {}]
  %s6 = inlined_call_operand.vmem [shape: f32[1,64], index: 6, kind: input, shape index: {}]
  %s7 = inlined_call_operand.vmem [shape: f32[1,64], index: 7, kind: input, shape index: {}]
  %s8 = inlined_call_operand.vmem [shape: f32[1,64], index: 8, kind: input, shape index: {}]
  %s9 = inlined_call_operand.vmem [shape: f32[9,64,128], index: 9, kind: input, shape index: {}]
  %s10 = inlined_call_operand.vmem [shape: f32[1,128], index: 10, kind: input, shape index: {}]
  %s11 = inlined_call_operand.vmem [shape: f32[1,128], index: 11, kind: input, shape index: {}]
  %s12 = inlined_call_operand.vmem [shape: f32[1,128], index: 12, kind: input, shape index: {}]
  %s13 = inlined_call_operand.vmem [shape: f32[16,128], index: 13, kind: input, shape index: {}]
  %s14 = inlined_call_operand.<no memory space> [shape: f32[1,1], index: 14, kind: input, shape index: {}]
  %s15 = inlined_call_operand.vmem [shape: f32[2,1], index: 15, kind: output, shape index: {}]
  %s16 = sld [smem:[#allocation0]]
  $region70: #{discriminator_forward.1} parent=0
    _
  %s18 = ssub.s32 1, %s16
  %s19 = scalar_select 0, %s18, %s16
  %v20 = vstv %s14
  %21 = vst [vmem:[#allocation2] sm:$0x1] %v20
  // Predicated region
  $region2: #{discriminator_forward.1} parent=0 // pred_check
    _
  $region3: #{discriminator_forward.1} parent=0 // pred_check_branch
    %23 = sbr.rel (0) target = $region5
  $region4: #{discriminator_forward.1} parent=0 // pred_region
    _
  $region5: #{discriminator_forward.1} parent=0 // pred_fallthru
    _
  // Predicated region
  $region6: #{discriminator_forward.1} parent=0 // pred_check
    _
  $region7: #{discriminator_forward.1} parent=0 // pred_check_branch
    %25 = sbr.rel (0) target = $region9
  $region8: #{discriminator_forward.1} parent=0 // pred_region
    _
  $region9: #{discriminator_forward.1} parent=0 // pred_fallthru
    _
  // Predicated region
  $region10: #{discriminator_forward.1} parent=0 // pred_check
    _
  $region11: #{discriminator_forward.1} parent=0 // pred_check_branch
    %27 = sbr.rel (0) target = $region13
  $region12: #{discriminator_forward.1} parent=0 // pred_region
    _
  $region13: #{discriminator_forward.1} parent=0 // pred_fallthru
    _
  // Predicated region
  $region14: #{discriminator_forward.1} parent=0 // pred_check
    _
  $region15: #{discriminator_forward.1} parent=0 // pred_check_branch
    %29 = sbr.rel (0) target = $region17
  $region16: #{discriminator_forward.1} parent=0 // pred_region
    _
  $region17: #{discriminator_forward.1} parent=0 // pred_fallthru
    _
  // Predicated region
  $region18: #{discriminator_forward.1} parent=0 // pred_check
    _
  $region19: #{discriminator_forward.1} parent=0 // pred_check_branch
    %31 = sbr.rel (0) target = $region21
  $region20: #{discriminator_forward.1} parent=0 // pred_region
    _
  $region21: #{discriminator_forward.1} parent=0 // pred_fallthru
    _
  // Predicated region
  $region22: #{discriminator_forward.1} parent=0 // pred_check
    _
  $region23: #{discriminator_forward.1} parent=0 // pred_check_branch
    %33 = sbr.rel (0) target = $region25
  $region24: #{discriminator_forward.1} parent=0 // pred_region
    _
  $region25: #{discriminator_forward.1} parent=0 // pred_fallthru
    _
  // Predicated region
  $region26: #{discriminator_forward.1} parent=0 // pred_check
    _
  $region27: #{discriminator_forward.1} parent=0 // pred_check_branch
    %35 = sbr.rel (0) target = $region29
  $region28: #{discriminator_forward.1} parent=0 // pred_region
    _
  $region29: #{discriminator_forward.1} parent=0 // pred_fallthru
    _
  // Predicated region
  $region30: #{discriminator_forward.1} parent=0 // pred_check
    _
  $region31: #{discriminator_forward.1} parent=0 // pred_check_branch
    %37 = sbr.rel (0) target = $region33
  $region32: #{discriminator_forward.1} parent=0 // pred_region
    _
  $region33: #{discriminator_forward.1} parent=0 // pred_fallthru
    _
  // Predicated region
  $region34: #{discriminator_forward.1} parent=0 // pred_check
    _
  $region35: #{discriminator_forward.1} parent=0 // pred_check_branch
    %39 = sbr.rel (0) target = $region37
  $region36: #{discriminator_forward.1} parent=0 // pred_region
    _
  $region37: #{discriminator_forward.1} parent=0 // pred_fallthru
    _
  // Predicated region
  $region38: #{discriminator_forward.1} parent=0 // pred_check
    _
  $region39: #{discriminator_forward.1} parent=0 // pred_check_branch
    %41 = sbr.rel (0) target = $region41
  $region40: #{discriminator_forward.1} parent=0 // pred_region
    _
  $region41: #{discriminator_forward.1} parent=0 // pred_fallthru
    _
  // Predicated region
  $region42: #{discriminator_forward.1} parent=0 // pred_check
    _
  $region43: #{discriminator_forward.1} parent=0 // pred_check_branch
    %43 = sbr.rel (0) target = $region45
  $region44: #{discriminator_forward.1} parent=0 // pred_region
    _
  $region45: #{discriminator_forward.1} parent=0 // pred_fallthru
    _
  // Predicated region
  $region46: #{discriminator_forward.1} parent=0 // pred_check
    _
  $region47: #{discriminator_forward.1} parent=0 // pred_check_branch
    %45 = sbr.rel (0) target = $region49
  $region48: #{discriminator_forward.1} parent=0 // pred_region
    _
  $region49: #{discriminator_forward.1} parent=0 // pred_fallthru
    _
  // Predicated region
  $region50: #{discriminator_forward.1} parent=0 // pred_check
    _
  $region51: #{discriminator_forward.1} parent=0 // pred_check_branch
    %47 = sbr.rel (0) target = $region53
  $region52: #{discriminator_forward.1} parent=0 // pred_region
    _
  $region53: #{discriminator_forward.1} parent=0 // pred_fallthru
    _
  // Predicated region
  $region54: #{discriminator_forward.1} parent=0 // pred_check
    _
  $region55: #{discriminator_forward.1} parent=0 // pred_check_branch
    %49 = sbr.rel (0) target = $region57
  $region56: #{discriminator_forward.1} parent=0 // pred_region
    _
  $region57: #{discriminator_forward.1} parent=0 // pred_fallthru
    _
  // Predicated region
  $region58: #{discriminator_forward.1} parent=0 // pred_check
    _
  $region59: #{discriminator_forward.1} parent=0 // pred_check_branch
    %51 = sbr.rel (0) target = $region61
  $region60: #{discriminator_forward.1} parent=0 // pred_region
    _
  $region61: #{discriminator_forward.1} parent=0 // pred_fallthru
    _
  %v52 = vld [vmem:[%s0] sm:$0xff]
  %v53 = vld [vmem:[%s0 + $0x8] sm:$0xff]
  %v54 = vld [vmem:[%s0 + $0x10] sm:$0xff]
  %v55 = vld [vmem:[%s0 + $0x18] sm:$0xff]
  %v56 = vld [vmem:[%s0 + $0x20] sm:$0xff]
  %v57 = vld [vmem:[%s0 + $0x28] sm:$0xff]
  %v58 = vld [vmem:[%s0 + $0x30] sm:$0xff]
  %v59 = vld [vmem:[%s0 + $0x38] sm:$0xff]
  %v60 = vld [vmem:[%s0 + $0x40] sm:$0xff]
  %v61 = vld [vmem:[%s0 + $0x48] sm:$0xff]
  %v62 = vld [vmem:[%s0 + $0x50] sm:$0xff]
  %v63 = vld [vmem:[%s0 + $0x58] sm:$0xff]
  %v64 = vld [vmem:[%s0 + $0x60] sm:$0xff]
  %v65 = vld [vmem:[%s0 + $0x68] sm:$0xff]
  %v66 = vld [vmem:[%s0 + $0x70] sm:$0xff]
  %v67 = vld [vmem:[%s0 + $0x78] sm:$0xff]
  %v68 = vld [vmem:[%s0 + $0x80] sm:$0xff]
  %v69 = vld [vmem:[%s0 + $0x88] sm:$0xff]
  %v70 = vld [vmem:[%s0 + $0x90] sm:$0xff]
  %v71 = vld [vmem:[%s0 + $0x98] sm:$0xff]
  %v72 = vld [vmem:[%s0 + $0xa0] sm:$0xff]
  %v73 = vld [vmem:[%s0 + $0xa8] sm:$0xff]
  %v74 = vld [vmem:[%s0 + $0xb0] sm:$0xff]
  %v75 = vld [vmem:[%s0 + $0xb8] sm:$0xff]
  %v76 = vld [vmem:[%s0 + $0xc0] sm:$0xff]
  %v77 = vld [vmem:[%s0 + $0xc8] sm:$0xff]
  %v78 = vld [vmem:[%s0 + $0xd0] sm:$0xff]
  %v79 = vld [vmem:[%s0 + $0xd8] sm:$0xff]
  %v80 = vld [vmem:[%s0 + $0xe0] sm:$0xff]
  %v81 = vld [vmem:[%s0 + $0xe8] sm:$0xff]
  %v82 = vld [vmem:[%s0 + $0xf0] sm:$0xff]
  %v83 = vld [vmem:[%s0 + $0xf8] sm:$0xff]
  %v84 = vld [vmem:[%s0 + $0x100] sm:$0xff]
  %v85 = vld [vmem:[%s0 + $0x108] sm:$0xff]
  %v86 = vld [vmem:[%s0 + $0x110] sm:$0xff]
  %v87 = vld [vmem:[%s0 + $0x118] sm:$0xff]
  %v88 = vld [vmem:[%s0 + $0x120] sm:$0xff]
  %v89 = vld [vmem:[%s0 + $0x128] sm:$0xff]
  %v90 = vld [vmem:[%s0 + $0x130] sm:$0xff]
  %v91 = vld [vmem:[%s0 + $0x138] sm:$0xff]
  %v92 = vld [vmem:[%s0 + $0x140] sm:$0xff]
  %v93 = vld [vmem:[%s0 + $0x148] sm:$0xff]
  %v94 = vld [vmem:[%s0 + $0x150] sm:$0xff]
  %v95 = vld [vmem:[%s0 + $0x158] sm:$0xff]
  %v96 = vld [vmem:[%s0 + $0x160] sm:$0xff]
  %v97 = vld [vmem:[%s0 + $0x168] sm:$0xff]
  %v98 = vld [vmem:[%s0 + $0x170] sm:$0xff]
  %v99 = vld [vmem:[%s0 + $0x178] sm:$0xff]
  %v100 = vld [vmem:[%s0 + $0x180] sm:$0xff]
  %v101 = vld [vmem:[%s0 + $0x188] sm:$0xff]
  %v102 = vld [vmem:[%s0 + $0x190] sm:$0xff]
  %v103 = vld [vmem:[%s0 + $0x198] sm:$0xff]
  %v104 = vld [vmem:[%s0 + $0x1a0] sm:$0xff]
  %v105 = vld [vmem:[%s0 + $0x1a8] sm:$0xff]
  %v106 = vld [vmem:[%s0 + $0x1b0] sm:$0xff]
  %v107 = vld [vmem:[%s0 + $0x1b8] sm:$0xff]
  %v108 = vld [vmem:[%s3] sm:$0xff]
  %v109 = vld [vmem:[%s3 + $0x8] sm:$0xff]
  %v110 = vld [vmem:[%s3 + $0x10] sm:$0x3]
  %v111 = vld [vmem:[%s4] sm:$0x1]
  %v113 = vperm.slane %v111, 0
  %vm115 = vcmask 146432
  %v117 = vsel %vm115, %v52, 0
  %v120 = vsel %vm115, %v53, 0
  %v123 = vsel %vm115, %v54, 0
  %v126 = vsel %vm115, %v55, 0
  %v129 = vsel %vm115, %v56, 0
  %v132 = vsel %vm115, %v57, 0
  %v135 = vsel %vm115, %v58, 0
  %v138 = vsel %vm115, %v59, 0
  %v141 = vsel %vm115, %v60, 0
  %v144 = vsel %vm115, %v61, 0
  %v147 = vsel %vm115, %v62, 0
  %v150 = vsel %vm115, %v63, 0
  %v153 = vsel %vm115, %v64, 0
  %v156 = vsel %vm115, %v65, 0
  %v159 = vsel %vm115, %v66, 0
  %v162 = vsel %vm115, %v67, 0
  %v165 = vsel %vm115, %v68, 0
  %v168 = vsel %vm115, %v69, 0
  %v171 = vsel %vm115, %v70, 0
  %v174 = vsel %vm115, %v71, 0
  %v177 = vsel %vm115, %v72, 0
  %v180 = vsel %vm115, %v73, 0
  %v183 = vsel %vm115, %v74, 0
  %v186 = vsel %vm115, %v75, 0
  %v189 = vsel %vm115, %v76, 0
  %v192 = vsel %vm115, %v77, 0
  %v195 = vsel %vm115, %v78, 0
  %v198 = vsel %vm115, %v79, 0
  %v201 = vsel %vm115, %v80, 0
  %v204 = vsel %vm115, %v81, 0
  %v207 = vsel %vm115, %v82, 0
  %v210 = vsel %vm115, %v83, 0
  %v213 = vsel %vm115, %v84, 0
  %v216 = vsel %vm115, %v85, 0
  %v219 = vsel %vm115, %v86, 0
  %v222 = vsel %vm115, %v87, 0
  %v225 = vsel %vm115, %v88, 0
  %v228 = vsel %vm115, %v89, 0
  %v231 = vsel %vm115, %v90, 0
  %v234 = vsel %vm115, %v91, 0
  %v237 = vsel %vm115, %v92, 0
  %v240 = vsel %vm115, %v93, 0
  %v243 = vsel %vm115, %v94, 0
  %v246 = vsel %vm115, %v95, 0
  %v249 = vsel %vm115, %v96, 0
  %v252 = vsel %vm115, %v97, 0
  %v255 = vsel %vm115, %v98, 0
  %v258 = vsel %vm115, %v99, 0
  %v261 = vsel %vm115, %v100, 0
  %v264 = vsel %vm115, %v101, 0
  %v267 = vsel %vm115, %v102, 0
  %v270 = vsel %vm115, %v103, 0
  %v273 = vsel %vm115, %v104, 0
  %v276 = vsel %vm115, %v105, 0
  %v279 = vsel %vm115, %v106, 0
  %v282 = vsel %vm115, %v107, 0
  %vm284 = vcmask 1041408
  %v286 = vsel %vm284, %v110, 0
  %288 = vmatpush.msra.mxu0 0.0
  %289 = vmatpush.msra.mxu0 0.0
  %290 = vmatpush.msra.mxu0 0.0
  %291 = vmatpush.msra.mxu0 0.0
  %292 = vmatpush.msra.mxu0 0.0
  %293 = vmatpush.msra.mxu0 0.0
  %294 = vmatpush.msra.mxu0 0.0
  %295 = vmatpush.msra.mxu0 0.0
  %296 = vmatpush.msra.mxu0 0.0
  %297 = vmatpush.msra.mxu0 0.0
  %298 = vmatpush.msra.mxu0 0.0
  %299 = vmatpush.msra.mxu0 0.0
  %300 = vmatpush.msra.mxu0 0.0
  %301 = vmatpush.msra.mxu0 %v286
  %302 = vmatpush.msra.mxu0 %v109
  %303 = vmatpush.msra.mxu0 %v108
  %304 = vmatmul.f32.gmra.mxu0 %v117
  %v305 = vpop.f32.mrf.mxu0
  %v306 = vadd.f32 %v113, %v305
  %307 = vmatmul.f32.gmra.mxu0 %v120
  %v308 = vpop.f32.mrf.mxu0
  %v309 = vadd.f32 %v113, %v308
  %310 = vmatmul.f32.gmra.mxu0 %v123
  %v311 = vpop.f32.mrf.mxu0
  %v312 = vadd.f32 %v113, %v311
  %313 = vmatmul.f32.gmra.mxu0 %v126
  %v314 = vpop.f32.mrf.mxu0
  %v315 = vadd.f32 %v113, %v314
  %316 = vmatmul.f32.gmra.mxu0 %v129
  %v317 = vpop.f32.mrf.mxu0
  %v318 = vadd.f32 %v113, %v317
  %319 = vmatmul.f32.gmra.mxu0 %v132
  %v320 = vpop.f32.mrf.mxu0
  %v321 = vadd.f32 %v113, %v320
  %322 = vmatmul.f32.gmra.mxu0 %v135
  %v323 = vpop.f32.mrf.mxu0
  %v324 = vadd.f32 %v113, %v323
  %325 = vmatmul.f32.gmra.mxu0 %v138
  %v326 = vpop.f32.mrf.mxu0
  %v327 = vadd.f32 %v113, %v326
  %328 = vmatmul.f32.gmra.mxu0 %v141
  %v329 = vpop.f32.mrf.mxu0
  %v330 = vadd.f32 %v113, %v329
  %331 = vmatmul.f32.gmra.mxu0 %v144
  %v332 = vpop.f32.mrf.mxu0
  %v333 = vadd.f32 %v113, %v332
  %334 = vmatmul.f32.gmra.mxu0 %v147
  %v335 = vpop.f32.mrf.mxu0
  %v336 = vadd.f32 %v113, %v335
  %337 = vmatmul.f32.gmra.mxu0 %v150
  %v338 = vpop.f32.mrf.mxu0
  %v339 = vadd.f32 %v113, %v338
  %340 = vmatmul.f32.gmra.mxu0 %v153
  %v341 = vpop.f32.mrf.mxu0
  %v342 = vadd.f32 %v113, %v341
  %343 = vmatmul.f32.gmra.mxu0 %v156
  %v344 = vpop.f32.mrf.mxu0
  %v345 = vadd.f32 %v113, %v344
  %346 = vmatmul.f32.gmra.mxu0 %v159
  %v347 = vpop.f32.mrf.mxu0
  %v348 = vadd.f32 %v113, %v347
  %349 = vmatmul.f32.gmra.mxu0 %v162
  %v350 = vpop.f32.mrf.mxu0
  %v351 = vadd.f32 %v113, %v350
  %352 = vmatmul.f32.gmra.mxu0 %v165
  %v353 = vpop.f32.mrf.mxu0
  %v354 = vadd.f32 %v113, %v353
  %355 = vmatmul.f32.gmra.mxu0 %v168
  %v356 = vpop.f32.mrf.mxu0
  %v357 = vadd.f32 %v113, %v356
  %358 = vmatmul.f32.gmra.mxu0 %v171
  %v359 = vpop.f32.mrf.mxu0
  %v360 = vadd.f32 %v113, %v359
  %361 = vmatmul.f32.gmra.mxu0 %v174
  %v362 = vpop.f32.mrf.mxu0
  %v363 = vadd.f32 %v113, %v362
  %364 = vmatmul.f32.gmra.mxu0 %v177
  %v365 = vpop.f32.mrf.mxu0
  %v366 = vadd.f32 %v113, %v365
  %367 = vmatmul.f32.gmra.mxu0 %v180
  %v368 = vpop.f32.mrf.mxu0
  %v369 = vadd.f32 %v113, %v368
  %370 = vmatmul.f32.gmra.mxu0 %v183
  %v371 = vpop.f32.mrf.mxu0
  %v372 = vadd.f32 %v113, %v371
  %373 = vmatmul.f32.gmra.mxu0 %v186
  %v374 = vpop.f32.mrf.mxu0
  %v375 = vadd.f32 %v113, %v374
  %376 = vmatmul.f32.gmra.mxu0 %v189
  %v377 = vpop.f32.mrf.mxu0
  %v378 = vadd.f32 %v113, %v377
  %379 = vmatmul.f32.gmra.mxu0 %v192
  %v380 = vpop.f32.mrf.mxu0
  %v381 = vadd.f32 %v113, %v380
  %382 = vmatmul.f32.gmra.mxu0 %v195
  %v383 = vpop.f32.mrf.mxu0
  %v384 = vadd.f32 %v113, %v383
  %385 = vmatmul.f32.gmra.mxu0 %v198
  %v386 = vpop.f32.mrf.mxu0
  %v387 = vadd.f32 %v113, %v386
  %388 = vmatmul.f32.gmra.mxu0 %v201
  %v389 = vpop.f32.mrf.mxu0
  %v390 = vadd.f32 %v113, %v389
  %391 = vmatmul.f32.gmra.mxu0 %v204
  %v392 = vpop.f32.mrf.mxu0
  %v393 = vadd.f32 %v113, %v392
  %394 = vmatmul.f32.gmra.mxu0 %v207
  %v395 = vpop.f32.mrf.mxu0
  %v396 = vadd.f32 %v113, %v395
  %397 = vmatmul.f32.gmra.mxu0 %v210
  %v398 = vpop.f32.mrf.mxu0
  %v399 = vadd.f32 %v113, %v398
  %400 = vmatmul.f32.gmra.mxu0 %v213
  %v401 = vpop.f32.mrf.mxu0
  %v402 = vadd.f32 %v113, %v401
  %403 = vmatmul.f32.gmra.mxu0 %v216
  %v404 = vpop.f32.mrf.mxu0
  %v405 = vadd.f32 %v113, %v404
  %406 = vmatmul.f32.gmra.mxu0 %v219
  %v407 = vpop.f32.mrf.mxu0
  %v408 = vadd.f32 %v113, %v407
  %409 = vmatmul.f32.gmra.mxu0 %v222
  %v410 = vpop.f32.mrf.mxu0
  %v411 = vadd.f32 %v113, %v410
  %412 = vmatmul.f32.gmra.mxu0 %v225
  %v413 = vpop.f32.mrf.mxu0
  %v414 = vadd.f32 %v113, %v413
  %415 = vmatmul.f32.gmra.mxu0 %v228
  %v416 = vpop.f32.mrf.mxu0
  %v417 = vadd.f32 %v113, %v416
  %418 = vmatmul.f32.gmra.mxu0 %v231
  %v419 = vpop.f32.mrf.mxu0
  %v420 = vadd.f32 %v113, %v419
  %421 = vmatmul.f32.gmra.mxu0 %v234
  %v422 = vpop.f32.mrf.mxu0
  %v423 = vadd.f32 %v113, %v422
  %424 = vmatmul.f32.gmra.mxu0 %v237
  %v425 = vpop.f32.mrf.mxu0
  %v426 = vadd.f32 %v113, %v425
  %427 = vmatmul.f32.gmra.mxu0 %v240
  %v428 = vpop.f32.mrf.mxu0
  %v429 = vadd.f32 %v113, %v428
  %430 = vmatmul.f32.gmra.mxu0 %v243
  %v431 = vpop.f32.mrf.mxu0
  %v432 = vadd.f32 %v113, %v431
  %433 = vmatmul.f32.gmra.mxu0 %v246
  %v434 = vpop.f32.mrf.mxu0
  %v435 = vadd.f32 %v113, %v434
  %436 = vmatmul.f32.gmra.mxu0 %v249
  %v437 = vpop.f32.mrf.mxu0
  %v438 = vadd.f32 %v113, %v437
  %439 = vmatmul.f32.gmra.mxu0 %v252
  %v440 = vpop.f32.mrf.mxu0
  %v441 = vadd.f32 %v113, %v440
  %442 = vmatmul.f32.gmra.mxu0 %v255
  %v443 = vpop.f32.mrf.mxu0
  %v444 = vadd.f32 %v113, %v443
  %445 = vmatmul.f32.gmra.mxu0 %v258
  %v446 = vpop.f32.mrf.mxu0
  %v447 = vadd.f32 %v113, %v446
  %448 = vmatmul.f32.gmra.mxu0 %v261
  %v449 = vpop.f32.mrf.mxu0
  %v450 = vadd.f32 %v113, %v449
  %451 = vmatmul.f32.gmra.mxu0 %v264
  %v452 = vpop.f32.mrf.mxu0
  %v453 = vadd.f32 %v113, %v452
  %454 = vmatmul.f32.gmra.mxu0 %v267
  %v455 = vpop.f32.mrf.mxu0
  %v456 = vadd.f32 %v113, %v455
  %457 = vmatmul.f32.gmra.mxu0 %v270
  %v458 = vpop.f32.mrf.mxu0
  %v459 = vadd.f32 %v113, %v458
  %460 = vmatmul.f32.gmra.mxu0 %v273
  %v461 = vpop.f32.mrf.mxu0
  %v462 = vadd.f32 %v113, %v461
  %463 = vmatmul.f32.gmra.mxu0 %v276
  %v464 = vpop.f32.mrf.mxu0
  %v465 = vadd.f32 %v113, %v464
  %466 = vmatmul.f32.gmra.mxu0 %v279
  %v467 = vpop.f32.mrf.mxu0
  %v468 = vadd.f32 %v113, %v467
  %469 = vmatmul.f32.gmra.mxu0 %v282
  %v470 = vpop.f32.mrf.mxu0
  %v471 = vadd.f32 %v113, %v470
  %472 = vdwg.mxu0
  %vm473 = vcmp.gt.f32.partialorder %v306, 0.0
  %vm474 = vcmp.gt.f32.partialorder %v309, 0.0
  %vm475 = vcmp.gt.f32.partialorder %v312, 0.0
  %vm476 = vcmp.gt.f32.partialorder %v315, 0.0
  %vm477 = vcmp.gt.f32.partialorder %v318, 0.0
  %vm478 = vcmp.gt.f32.partialorder %v321, 0.0
  %vm479 = vcmp.gt.f32.partialorder %v324, 0.0
  %vm480 = vcmp.gt.f32.partialorder %v327, 0.0
  %vm481 = vcmp.gt.f32.partialorder %v330, 0.0
  %vm482 = vcmp.gt.f32.partialorder %v333, 0.0
  %vm483 = vcmp.gt.f32.partialorder %v336, 0.0
  %vm484 = vcmp.gt.f32.partialorder %v339, 0.0
  %vm485 = vcmp.gt.f32.partialorder %v342, 0.0
  %vm486 = vcmp.gt.f32.partialorder %v345, 0.0
  %vm487 = vcmp.gt.f32.partialorder %v348, 0.0
  %vm488 = vcmp.gt.f32.partialorder %v351, 0.0
  %vm489 = vcmp.gt.f32.partialorder %v354, 0.0
  %vm490 = vcmp.gt.f32.partialorder %v357, 0.0
  %vm491 = vcmp.gt.f32.partialorder %v360, 0.0
  %vm492 = vcmp.gt.f32.partialorder %v363, 0.0
  %vm493 = vcmp.gt.f32.partialorder %v366, 0.0
  %vm494 = vcmp.gt.f32.partialorder %v369, 0.0
  %vm495 = vcmp.gt.f32.partialorder %v372, 0.0
  %vm496 = vcmp.gt.f32.partialorder %v375, 0.0
  %vm497 = vcmp.gt.f32.partialorder %v378, 0.0
  %vm498 = vcmp.gt.f32.partialorder %v381, 0.0
  %vm499 = vcmp.gt.f32.partialorder %v384, 0.0
  %vm500 = vcmp.gt.f32.partialorder %v387, 0.0
  %vm501 = vcmp.gt.f32.partialorder %v390, 0.0
  %vm502 = vcmp.gt.f32.partialorder %v393, 0.0
  %vm503 = vcmp.gt.f32.partialorder %v396, 0.0
  %vm504 = vcmp.gt.f32.partialorder %v399, 0.0
  %vm505 = vcmp.gt.f32.partialorder %v402, 0.0
  %vm506 = vcmp.gt.f32.partialorder %v405, 0.0
  %vm507 = vcmp.gt.f32.partialorder %v408, 0.0
  %vm508 = vcmp.gt.f32.partialorder %v411, 0.0
  %vm509 = vcmp.gt.f32.partialorder %v414, 0.0
  %vm510 = vcmp.gt.f32.partialorder %v417, 0.0
  %vm511 = vcmp.gt.f32.partialorder %v420, 0.0
  %vm512 = vcmp.gt.f32.partialorder %v423, 0.0
  %vm513 = vcmp.gt.f32.partialorder %v426, 0.0
  %vm514 = vcmp.gt.f32.partialorder %v429, 0.0
  %vm515 = vcmp.gt.f32.partialorder %v432, 0.0
  %vm516 = vcmp.gt.f32.partialorder %v435, 0.0
  %vm517 = vcmp.gt.f32.partialorder %v438, 0.0
  %vm518 = vcmp.gt.f32.partialorder %v441, 0.0
  %vm519 = vcmp.gt.f32.partialorder %v444, 0.0
  %vm520 = vcmp.gt.f32.partialorder %v447, 0.0
  %vm521 = vcmp.gt.f32.partialorder %v450, 0.0
  %vm522 = vcmp.gt.f32.partialorder %v453, 0.0
  %vm523 = vcmp.gt.f32.partialorder %v456, 0.0
  %vm524 = vcmp.gt.f32.partialorder %v459, 0.0
  %vm525 = vcmp.gt.f32.partialorder %v462, 0.0
  %vm526 = vcmp.gt.f32.partialorder %v465, 0.0
  %vm527 = vcmp.gt.f32.partialorder %v468, 0.0
  %vm528 = vcmp.gt.f32.partialorder %v471, 0.0
  %v529 = vmul.f32 %v306, 0.01
  %v530 = vmul.f32 %v309, 0.01
  %v531 = vmul.f32 %v312, 0.01
  %v532 = vmul.f32 %v315, 0.01
  %v533 = vmul.f32 %v318, 0.01
  %v534 = vmul.f32 %v321, 0.01
  %v535 = vmul.f32 %v324, 0.01
  %v536 = vmul.f32 %v327, 0.01
  %v537 = vmul.f32 %v330, 0.01
  %v538 = vmul.f32 %v333, 0.01
  %v539 = vmul.f32 %v336, 0.01
  %v540 = vmul.f32 %v339, 0.01
  %v541 = vmul.f32 %v342, 0.01
  %v542 = vmul.f32 %v345, 0.01
  %v543 = vmul.f32 %v348, 0.01
  %v544 = vmul.f32 %v351, 0.01
  %v545 = vmul.f32 %v354, 0.01
  %v546 = vmul.f32 %v357, 0.01
  %v547 = vmul.f32 %v360, 0.01
  %v548 = vmul.f32 %v363, 0.01
  %v549 = vmul.f32 %v366, 0.01
  %v550 = vmul.f32 %v369, 0.01
  %v551 = vmul.f32 %v372, 0.01
  %v552 = vmul.f32 %v375, 0.01
  %v553 = vmul.f32 %v378, 0.01
  %v554 = vmul.f32 %v381, 0.01
  %v555 = vmul.f32 %v384, 0.01
  %v556 = vmul.f32 %v387, 0.01
  %v557 = vmul.f32 %v390, 0.01
  %v558 = vmul.f32 %v393, 0.01
  %v559 = vmul.f32 %v396, 0.01
  %v560 = vmul.f32 %v399, 0.01
  %v561 = vmul.f32 %v402, 0.01
  %v562 = vmul.f32 %v405, 0.01
  %v563 = vmul.f32 %v408, 0.01
  %v564 = vmul.f32 %v411, 0.01
  %v565 = vmul.f32 %v414, 0.01
  %v566 = vmul.f32 %v417, 0.01
  %v567 = vmul.f32 %v420, 0.01
  %v568 = vmul.f32 %v423, 0.01
  %v569 = vmul.f32 %v426, 0.01
  %v570 = vmul.f32 %v429, 0.01
  %v571 = vmul.f32 %v432, 0.01
  %v572 = vmul.f32 %v435, 0.01
  %v573 = vmul.f32 %v438, 0.01
  %v574 = vmul.f32 %v441, 0.01
  %v575 = vmul.f32 %v444, 0.01
  %v576 = vmul.f32 %v447, 0.01
  %v577 = vmul.f32 %v450, 0.01
  %v578 = vmul.f32 %v453, 0.01
  %v579 = vmul.f32 %v456, 0.01
  %v580 = vmul.f32 %v459, 0.01
  %v581 = vmul.f32 %v462, 0.01
  %v582 = vmul.f32 %v465, 0.01
  %v583 = vmul.f32 %v468, 0.01
  %v584 = vmul.f32 %v471, 0.01
  %v585 = vsel %vm473, %v306, %v529
  %v586 = vsel %vm474, %v309, %v530
  %v587 = vsel %vm475, %v312, %v531
  %v588 = vsel %vm476, %v315, %v532
  %v589 = vsel %vm477, %v318, %v533
  %v590 = vsel %vm478, %v321, %v534
  %v591 = vsel %vm479, %v324, %v535
  %v592 = vsel %vm480, %v327, %v536
  %v593 = vsel %vm481, %v330, %v537
  %v594 = vsel %vm482, %v333, %v538
  %v595 = vsel %vm483, %v336, %v539
  %v596 = vsel %vm484, %v339, %v540
  %v597 = vsel %vm485, %v342, %v541
  %v598 = vsel %vm486, %v345, %v542
  %v599 = vsel %vm487, %v348, %v543
  %v600 = vsel %vm488, %v351, %v544
  %v601 = vsel %vm489, %v354, %v545
  %v602 = vsel %vm490, %v357, %v546
  %v603 = vsel %vm491, %v360, %v547
  %v604 = vsel %vm492, %v363, %v548
  %v605 = vsel %vm493, %v366, %v549
  %v606 = vsel %vm494, %v369, %v550
  %v607 = vsel %vm495, %v372, %v551
  %v608 = vsel %vm496, %v375, %v552
  %v609 = vsel %vm497, %v378, %v553
  %v610 = vsel %vm498, %v381, %v554
  %v611 = vsel %vm499, %v384, %v555
  %v612 = vsel %vm500, %v387, %v556
  %v613 = vsel %vm501, %v390, %v557
  %v614 = vsel %vm502, %v393, %v558
  %v615 = vsel %vm503, %v396, %v559
  %v616 = vsel %vm504, %v399, %v560
  %v617 = vsel %vm505, %v402, %v561
  %v618 = vsel %vm506, %v405, %v562
  %v619 = vsel %vm507, %v408, %v563
  %v620 = vsel %vm508, %v411, %v564
  %v621 = vsel %vm509, %v414, %v565
  %v622 = vsel %vm510, %v417, %v566
  %v623 = vsel %vm511, %v420, %v567
  %v624 = vsel %vm512, %v423, %v568
  %v625 = vsel %vm513, %v426, %v569
  %v626 = vsel %vm514, %v429, %v570
  %v627 = vsel %vm515, %v432, %v571
  %v628 = vsel %vm516, %v435, %v572
  %v629 = vsel %vm517, %v438, %v573
  %v630 = vsel %vm518, %v441, %v574
  %v631 = vsel %vm519, %v444, %v575
  %v632 = vsel %vm520, %v447, %v576
  %v633 = vsel %vm521, %v450, %v577
  %v634 = vsel %vm522, %v453, %v578
  %v635 = vsel %vm523, %v456, %v579
  %v636 = vsel %vm524, %v459, %v580
  %v637 = vsel %vm525, %v462, %v581
  %v638 = vsel %vm526, %v465, %v582
  %v639 = vsel %vm527, %v468, %v583
  %v640 = vsel %vm528, %v471, %v584
  %v641 = vld [vmem:[%s1] sm:$0xff]
  %v642 = vld [vmem:[%s1 + $0x8] sm:$0xff]
  %v643 = vld [vmem:[%s1 + $0x10] sm:$0xff]
  %v644 = vld [vmem:[%s1 + $0x18] sm:$0xff]
  %v645 = vld [vmem:[%s1 + $0x20] sm:$0xff]
  %v646 = vld [vmem:[%s1 + $0x28] sm:$0xff]
  %v647 = vld [vmem:[%s1 + $0x30] sm:$0xff]
  %v648 = vld [vmem:[%s1 + $0x38] sm:$0xff]
  %v649 = vld [vmem:[%s1 + $0x40] sm:$0xff]
  %v650 = vld [vmem:[%s1 + $0x48] sm:$0xff]
  %v651 = vld [vmem:[%s1 + $0x50] sm:$0xff]
  %v652 = vld [vmem:[%s1 + $0x58] sm:$0xff]
  %v653 = vld [vmem:[%s1 + $0x60] sm:$0xff]
  %v654 = vld [vmem:[%s1 + $0x68] sm:$0xff]
  %v655 = vld [vmem:[%s5] sm:$0xff]
  %v656 = vld [vmem:[%s5 + $0x8] sm:$0xff]
  %v657 = vld [vmem:[%s5 + $0x10] sm:$0xff]
  %v658 = vld [vmem:[%s5 + $0x18] sm:$0xff]
  %v659 = vld [vmem:[%s5 + $0x20] sm:$0xff]
  %v660 = vld [vmem:[%s5 + $0x28] sm:$0xff]
  %v661 = vld [vmem:[%s5 + $0x30] sm:$0xff]
  %v662 = vld [vmem:[%s5 + $0x38] sm:$0xff]
  %vm663 = vcmask 785408
  %v665 = vsel %vm663, %v642, 0
  %v668 = vsel %vm663, %v644, 0
  %v671 = vsel %vm663, %v646, 0
  %v674 = vsel %vm663, %v648, 0
  %v677 = vsel %vm663, %v650, 0
  %v680 = vsel %vm663, %v652, 0
  %v683 = vsel %vm663, %v654, 0
  %685 = vmatpush.msra.mxu0 %v600
  %686 = vmatpush.msra.mxu0 %v599
  %687 = vmatpush.msra.mxu0 %v598
  %688 = vmatpush.msra.mxu0 %v597
  %689 = vmatpush.msra.mxu0 %v596
  %690 = vmatpush.msra.mxu0 %v595
  %691 = vmatpush.msra.mxu0 %v594
  %692 = vmatpush.msra.mxu0 %v593
  %693 = vmatpush.msra.mxu0 %v592
  %694 = vmatpush.msra.mxu0 %v591
  %695 = vmatpush.msra.mxu0 %v590
  %696 = vmatpush.msra.mxu0 %v589
  %697 = vmatpush.msra.mxu0 %v588
  %698 = vmatpush.msra.mxu0 %v587
  %699 = vmatpush.msra.mxu0 %v586
  %700 = vmatpush.msra.mxu0 %v585
  %701 = vmatmul.f32.gmra.mxu0 %v641
  %v702 = vpop.f32.mrf.mxu0
  %v703 = vadd.f32 0.0, %v702
  %704 = vmatmul.f32.gmra.mxu0 %v643
  %v705 = vpop.f32.mrf.mxu0
  %v706 = vadd.f32 0.0, %v705
  %707 = vmatmul.f32.gmra.mxu0 %v645
  %v708 = vpop.f32.mrf.mxu0
  %v709 = vadd.f32 0.0, %v708
  %710 = vmatmul.f32.gmra.mxu0 %v647
  %v711 = vpop.f32.mrf.mxu0
  %v712 = vadd.f32 0.0, %v711
  %713 = vmatmul.f32.gmra.mxu0 %v649
  %v714 = vpop.f32.mrf.mxu0
  %v715 = vadd.f32 0.0, %v714
  %716 = vmatmul.f32.gmra.mxu0 %v651
  %v717 = vpop.f32.mrf.mxu0
  %v718 = vadd.f32 0.0, %v717
  %719 = vmatmul.f32.gmra.mxu0 %v653
  %v720 = vpop.f32.mrf.mxu0
  %v721 = vadd.f32 0.0, %v720
  %722 = vdwg.mxu0
  %723 = vmatpush.msra.mxu0 0.0
  %724 = vmatpush.msra.mxu0 0.0
  %725 = vmatpush.msra.mxu0 0.0
  %726 = vmatpush.msra.mxu0 0.0
  %727 = vmatpush.msra.mxu0 %v612
  %728 = vmatpush.msra.mxu0 %v611
  %729 = vmatpush.msra.mxu0 %v610
  %730 = vmatpush.msra.mxu0 %v609
  %731 = vmatpush.msra.mxu0 %v608
  %732 = vmatpush.msra.mxu0 %v607
  %733 = vmatpush.msra.mxu0 %v606
  %734 = vmatpush.msra.mxu0 %v605
  %735 = vmatpush.msra.mxu0 %v604
  %736 = vmatpush.msra.mxu0 %v603
  %737 = vmatpush.msra.mxu0 %v602
  %738 = vmatpush.msra.mxu0 %v601
  %739 = vmatmul.f32.gmra.mxu0 %v665
  %v740 = vpop.f32.mrf.mxu0
  %v741 = vadd.f32 %v703, %v740
  %742 = vmatmul.f32.gmra.mxu0 %v668
  %v743 = vpop.f32.mrf.mxu0
  %v744 = vadd.f32 %v706, %v743
  %745 = vmatmul.f32.gmra.mxu0 %v671
  %v746 = vpop.f32.mrf.mxu0
  %v747 = vadd.f32 %v709, %v746
  %748 = vmatmul.f32.gmra.mxu0 %v674
  %v749 = vpop.f32.mrf.mxu0
  %v750 = vadd.f32 %v712, %v749
  %751 = vmatmul.f32.gmra.mxu0 %v677
  %v752 = vpop.f32.mrf.mxu0
  %v753 = vadd.f32 %v715, %v752
  %754 = vmatmul.f32.gmra.mxu0 %v680
  %v755 = vpop.f32.mrf.mxu0
  %v756 = vadd.f32 %v718, %v755
  %757 = vmatmul.f32.gmra.mxu0 %v683
  %v758 = vpop.f32.mrf.mxu0
  %v759 = vadd.f32 %v721, %v758
  %760 = vdwg.mxu0
  %761 = vmatpush.msra.mxu0 %v628
  %762 = vmatpush.msra.mxu0 %v627
  %763 = vmatpush.msra.mxu0 %v626
  %764 = vmatpush.msra.mxu0 %v625
  %765 = vmatpush.msra.mxu0 %v624
  %766 = vmatpush.msra.mxu0 %v623
  %767 = vmatpush.msra.mxu0 %v622
  %768 = vmatpush.msra.mxu0 %v621
  %769 = vmatpush.msra.mxu0 %v620
  %770 = vmatpush.msra.mxu0 %v619
  %771 = vmatpush.msra.mxu0 %v618
  %772 = vmatpush.msra.mxu0 %v617
  %773 = vmatpush.msra.mxu0 %v616
  %774 = vmatpush.msra.mxu0 %v615
  %775 = vmatpush.msra.mxu0 %v614
  %776 = vmatpush.msra.mxu0 %v613
  %777 = vmatmul.f32.gmra.mxu0 %v641
  %v778 = vpop.f32.mrf.mxu0
  %v779 = vadd.f32 0.0, %v778
  %780 = vmatmul.f32.gmra.mxu0 %v643
  %v781 = vpop.f32.mrf.mxu0
  %v782 = vadd.f32 0.0, %v781
  %783 = vmatmul.f32.gmra.mxu0 %v645
  %v784 = vpop.f32.mrf.mxu0
  %v785 = vadd.f32 0.0, %v784
  %786 = vmatmul.f32.gmra.mxu0 %v647
  %v787 = vpop.f32.mrf.mxu0
  %v788 = vadd.f32 0.0, %v787
  %789 = vmatmul.f32.gmra.mxu0 %v649
  %v790 = vpop.f32.mrf.mxu0
  %v791 = vadd.f32 0.0, %v790
  %792 = vmatmul.f32.gmra.mxu0 %v651
  %v793 = vpop.f32.mrf.mxu0
  %v794 = vadd.f32 0.0, %v793
  %795 = vmatmul.f32.gmra.mxu0 %v653
  %v796 = vpop.f32.mrf.mxu0
  %v797 = vadd.f32 0.0, %v796
  %798 = vdwg.mxu0
  %799 = vmatpush.msra.mxu0 0.0
  %800 = vmatpush.msra.mxu0 0.0
  %801 = vmatpush.msra.mxu0 0.0
  %802 = vmatpush.msra.mxu0 0.0
  %803 = vmatpush.msra.mxu0 %v640
  %804 = vmatpush.msra.mxu0 %v639
  %805 = vmatpush.msra.mxu0 %v638
  %806 = vmatpush.msra.mxu0 %v637
  %807 = vmatpush.msra.mxu0 %v636
  %808 = vmatpush.msra.mxu0 %v635
  %809 = vmatpush.msra.mxu0 %v634
  %810 = vmatpush.msra.mxu0 %v633
  %811 = vmatpush.msra.mxu0 %v632
  %812 = vmatpush.msra.mxu0 %v631
  %813 = vmatpush.msra.mxu0 %v630
  %814 = vmatpush.msra.mxu0 %v629
  %815 = vmatmul.f32.gmra.mxu0 %v665
  %v816 = vpop.f32.mrf.mxu0
  %v817 = vadd.f32 %v779, %v816
  %818 = vmatmul.f32.gmra.mxu0 %v668
  %v819 = vpop.f32.mrf.mxu0
  %v820 = vadd.f32 %v782, %v819
  %821 = vmatmul.f32.gmra.mxu0 %v671
  %v822 = vpop.f32.mrf.mxu0
  %v823 = vadd.f32 %v785, %v822
  %824 = vmatmul.f32.gmra.mxu0 %v674
  %v825 = vpop.f32.mrf.mxu0
  %v826 = vadd.f32 %v788, %v825
  %827 = vmatmul.f32.gmra.mxu0 %v677
  %v828 = vpop.f32.mrf.mxu0
  %v829 = vadd.f32 %v791, %v828
  %830 = vmatmul.f32.gmra.mxu0 %v680
  %v831 = vpop.f32.mrf.mxu0
  %v832 = vadd.f32 %v794, %v831
  %833 = vmatmul.f32.gmra.mxu0 %v683
  %v834 = vpop.f32.mrf.mxu0
  %v835 = vadd.f32 %v797, %v834
  %836 = vdwg.mxu0
  %s837 = scalar_lea.vmem %s1, 112
  %v838 = vld [vmem:[%s837] sm:$0xff]
  %v839 = vld [vmem:[%s837 + $0x8] sm:$0xff]
  %v840 = vld [vmem:[%s837 + $0x10] sm:$0xff]
  %v841 = vld [vmem:[%s837 + $0x18] sm:$0xff]
  %v842 = vld [vmem:[%s837 + $0x20] sm:$0xff]
  %v843 = vld [vmem:[%s837 + $0x28] sm:$0xff]
  %v844 = vld [vmem:[%s837 + $0x30] sm:$0xff]
  %v845 = vld [vmem:[%s837 + $0x38] sm:$0xff]
  %v846 = vld [vmem:[%s837 + $0x40] sm:$0xff]
  %v847 = vld [vmem:[%s837 + $0x48] sm:$0xff]
  %v848 = vld [vmem:[%s837 + $0x50] sm:$0xff]
  %v849 = vld [vmem:[%s837 + $0x58] sm:$0xff]
  %v850 = vld [vmem:[%s837 + $0x60] sm:$0xff]
  %v851 = vld [vmem:[%s837 + $0x68] sm:$0xff]
  %s852 = scalar_lea.vmem %s5, 64
  %v853 = vld [vmem:[%s852] sm:$0xff]
  %v854 = vld [vmem:[%s852 + $0x8] sm:$0xff]
  %v855 = vld [vmem:[%s852 + $0x10] sm:$0xff]
  %v856 = vld [vmem:[%s852 + $0x18] sm:$0xff]
  %v857 = vld [vmem:[%s852 + $0x20] sm:$0xff]
  %v858 = vld [vmem:[%s852 + $0x28] sm:$0xff]
  %v859 = vld [vmem:[%s852 + $0x30] sm:$0xff]
  %v860 = vld [vmem:[%s852 + $0x38] sm:$0xff]
  %v862 = vsel %vm663, %v839, 0
  %v865 = vsel %vm663, %v841, 0
  %v868 = vsel %vm663, %v843, 0
  %v871 = vsel %vm663, %v845, 0
  %v874 = vsel %vm663, %v847, 0
  %v877 = vsel %vm663, %v849, 0
  %v880 = vsel %vm663, %v851, 0
  %882 = vmatpush.msra.mxu0 %v600
  %883 = vmatpush.msra.mxu0 %v599
  %884 = vmatpush.msra.mxu0 %v598
  %885 = vmatpush.msra.mxu0 %v597
  %886 = vmatpush.msra.mxu0 %v596
  %887 = vmatpush.msra.mxu0 %v595
  %888 = vmatpush.msra.mxu0 %v594
  %889 = vmatpush.msra.mxu0 %v593
  %890 = vmatpush.msra.mxu0 %v592
  %891 = vmatpush.msra.mxu0 %v591
  %892 = vmatpush.msra.mxu0 %v590
  %893 = vmatpush.msra.mxu0 %v589
  %894 = vmatpush.msra.mxu0 %v588
  %895 = vmatpush.msra.mxu0 %v587
  %896 = vmatpush.msra.mxu0 %v586
  %897 = vmatpush.msra.mxu0 %v585
  %898 = vmatmul.f32.gmra.mxu0 %v838
  %v899 = vpop.f32.mrf.mxu0
  %v900 = vadd.f32 0.0, %v899
  %901 = vmatmul.f32.gmra.mxu0 %v840
  %v902 = vpop.f32.mrf.mxu0
  %v903 = vadd.f32 0.0, %v902
  %904 = vmatmul.f32.gmra.mxu0 %v842
  %v905 = vpop.f32.mrf.mxu0
  %v906 = vadd.f32 0.0, %v905
  %907 = vmatmul.f32.gmra.mxu0 %v844
  %v908 = vpop.f32.mrf.mxu0
  %v909 = vadd.f32 0.0, %v908
  %910 = vmatmul.f32.gmra.mxu0 %v846
  %v911 = vpop.f32.mrf.mxu0
  %v912 = vadd.f32 0.0, %v911
  %913 = vmatmul.f32.gmra.mxu0 %v848
  %v914 = vpop.f32.mrf.mxu0
  %v915 = vadd.f32 0.0, %v914
  %916 = vmatmul.f32.gmra.mxu0 %v850
  %v917 = vpop.f32.mrf.mxu0
  %v918 = vadd.f32 0.0, %v917
  %919 = vdwg.mxu0
  %920 = vmatpush.msra.mxu0 0.0
  %921 = vmatpush.msra.mxu0 0.0
  %922 = vmatpush.msra.mxu0 0.0
  %923 = vmatpush.msra.mxu0 0.0
  %924 = vmatpush.msra.mxu0 %v612
  %925 = vmatpush.msra.mxu0 %v611
  %926 = vmatpush.msra.mxu0 %v610
  %927 = vmatpush.msra.mxu0 %v609
  %928 = vmatpush.msra.mxu0 %v608
  %929 = vmatpush.msra.mxu0 %v607
  %930 = vmatpush.msra.mxu0 %v606
  %931 = vmatpush.msra.mxu0 %v605
  %932 = vmatpush.msra.mxu0 %v604
  %933 = vmatpush.msra.mxu0 %v603
  %934 = vmatpush.msra.mxu0 %v602
  %935 = vmatpush.msra.mxu0 %v601
  %936 = vmatmul.f32.gmra.mxu0 %v862
  %v937 = vpop.f32.mrf.mxu0
  %v938 = vadd.f32 %v900, %v937
  %939 = vmatmul.f32.gmra.mxu0 %v865
  %v940 = vpop.f32.mrf.mxu0
  %v941 = vadd.f32 %v903, %v940
  %942 = vmatmul.f32.gmra.mxu0 %v868
  %v943 = vpop.f32.mrf.mxu0
  %v944 = vadd.f32 %v906, %v943
  %945 = vmatmul.f32.gmra.mxu0 %v871
  %v946 = vpop.f32.mrf.mxu0
  %v947 = vadd.f32 %v909, %v946
  %948 = vmatmul.f32.gmra.mxu0 %v874
  %v949 = vpop.f32.mrf.mxu0
  %v950 = vadd.f32 %v912, %v949
  %951 = vmatmul.f32.gmra.mxu0 %v877
  %v952 = vpop.f32.mrf.mxu0
  %v953 = vadd.f32 %v915, %v952
  %954 = vmatmul.f32.gmra.mxu0 %v880
  %v955 = vpop.f32.mrf.mxu0
  %v956 = vadd.f32 %v918, %v955
  %957 = vdwg.mxu0
  %vm958 = vcmask 523264
  %v960 = vsel %vm958, %v938, 0
  %v963 = vsel %vm958, %v941, 0
  %v966 = vsel %vm958, %v944, 0
  %v969 = vsel %vm958, %v947, 0
  %v972 = vsel %vm958, %v950, 0
  %v975 = vsel %vm958, %v953, 0
  %v978 = vsel %vm958, %v956, 0
  %980 = vmatpush.msra.mxu0 0.0
  %981 = vmatpush.msra.mxu0 0.0
  %982 = vmatpush.msra.mxu0 0.0
  %983 = vmatpush.msra.mxu0 0.0
  %984 = vmatpush.msra.mxu0 0.0
  %985 = vmatpush.msra.mxu0 0.0
  %986 = vmatpush.msra.mxu0 0.0
  %987 = vmatpush.msra.mxu0 0.0
  %988 = vmatpush.msra.mxu0 %v860
  %989 = vmatpush.msra.mxu0 %v859
  %990 = vmatpush.msra.mxu0 %v858
  %991 = vmatpush.msra.mxu0 %v857
  %992 = vmatpush.msra.mxu0 %v856
  %993 = vmatpush.msra.mxu0 %v855
  %994 = vmatpush.msra.mxu0 %v854
  %995 = vmatpush.msra.mxu0 %v853
  %996 = vmatmul.f32.gmra.mxu0 %v960
  %v997 = vpop.f32.mrf.mxu0
  %v998 = vadd.f32 0.0, %v997
  %999 = vmatmul.f32.gmra.mxu0 %v963
  %v1000 = vpop.f32.mrf.mxu0
  %v1001 = vadd.f32 0.0, %v1000
  %1002 = vmatmul.f32.gmra.mxu0 %v966
  %v1003 = vpop.f32.mrf.mxu0
  %v1004 = vadd.f32 0.0, %v1003
  %1005 = vmatmul.f32.gmra.mxu0 %v969
  %v1006 = vpop.f32.mrf.mxu0
  %v1007 = vadd.f32 0.0, %v1006
  %1008 = vmatmul.f32.gmra.mxu0 %v972
  %v1009 = vpop.f32.mrf.mxu0
  %v1010 = vadd.f32 0.0, %v1009
  %1011 = vmatmul.f32.gmra.mxu0 %v975
  %v1012 = vpop.f32.mrf.mxu0
  %v1013 = vadd.f32 0.0, %v1012
  %1014 = vmatmul.f32.gmra.mxu0 %v978
  %v1015 = vpop.f32.mrf.mxu0
  %v1016 = vadd.f32 0.0, %v1015
  %1017 = vdwg.mxu0
  %v1019 = vsel %vm958, %v741, 0
  %v1022 = vsel %vm958, %v744, 0
  %v1025 = vsel %vm958, %v747, 0
  %v1028 = vsel %vm958, %v750, 0
  %v1031 = vsel %vm958, %v753, 0
  %v1034 = vsel %vm958, %v756, 0
  %v1037 = vsel %vm958, %v759, 0
  %1039 = vmatpush.msra.mxu0 0.0
  %1040 = vmatpush.msra.mxu0 0.0
  %1041 = vmatpush.msra.mxu0 0.0
  %1042 = vmatpush.msra.mxu0 0.0
  %1043 = vmatpush.msra.mxu0 0.0
  %1044 = vmatpush.msra.mxu0 0.0
  %1045 = vmatpush.msra.mxu0 0.0
  %1046 = vmatpush.msra.mxu0 0.0
  %1047 = vmatpush.msra.mxu0 %v662
  %1048 = vmatpush.msra.mxu0 %v661
  %1049 = vmatpush.msra.mxu0 %v660
  %1050 = vmatpush.msra.mxu0 %v659
  %1051 = vmatpush.msra.mxu0 %v658
  %1052 = vmatpush.msra.mxu0 %v657
  %1053 = vmatpush.msra.mxu0 %v656
  %1054 = vmatpush.msra.mxu0 %v655
  %1055 = vmatmul.f32.gmra.mxu0 %v1019
  %v1056 = vpop.f32.mrf.mxu0
  %v1057 = vadd.f32 %v998, %v1056
  %1058 = vmatmul.f32.gmra.mxu0 %v1022
  %v1059 = vpop.f32.mrf.mxu0
  %v1060 = vadd.f32 %v1001, %v1059
  %1061 = vmatmul.f32.gmra.mxu0 %v1025
  %v1062 = vpop.f32.mrf.mxu0
  %v1063 = vadd.f32 %v1004, %v1062
  %1064 = vmatmul.f32.gmra.mxu0 %v1028
  %v1065 = vpop.f32.mrf.mxu0
  %v1066 = vadd.f32 %v1007, %v1065
  %1067 = vmatmul.f32.gmra.mxu0 %v1031
  %v1068 = vpop.f32.mrf.mxu0
  %v1069 = vadd.f32 %v1010, %v1068
  %1070 = vmatmul.f32.gmra.mxu0 %v1034
  %v1071 = vpop.f32.mrf.mxu0
  %v1072 = vadd.f32 %v1013, %v1071
  %1073 = vmatmul.f32.gmra.mxu0 %v1037
  %v1074 = vpop.f32.mrf.mxu0
  %v1075 = vadd.f32 %v1016, %v1074
  %1076 = vdwg.mxu0
  %1077 = vmatpush.msra.mxu0 %v628
  %1078 = vmatpush.msra.mxu0 %v627
  %1079 = vmatpush.msra.mxu0 %v626
  %1080 = vmatpush.msra.mxu0 %v625
  %1081 = vmatpush.msra.mxu0 %v624
  %1082 = vmatpush.msra.mxu0 %v623
  %1083 = vmatpush.msra.mxu0 %v622
  %1084 = vmatpush.msra.mxu0 %v621
  %1085 = vmatpush.msra.mxu0 %v620
  %1086 = vmatpush.msra.mxu0 %v619
  %1087 = vmatpush.msra.mxu0 %v618
  %1088 = vmatpush.msra.mxu0 %v617
  %1089 = vmatpush.msra.mxu0 %v616
  %1090 = vmatpush.msra.mxu0 %v615
  %1091 = vmatpush.msra.mxu0 %v614
  %1092 = vmatpush.msra.mxu0 %v613
  %1093 = vmatmul.f32.gmra.mxu0 %v838
  %v1094 = vpop.f32.mrf.mxu0
  %v1095 = vadd.f32 0.0, %v1094
  %1096 = vmatmul.f32.gmra.mxu0 %v840
  %v1097 = vpop.f32.mrf.mxu0
  %v1098 = vadd.f32 0.0, %v1097
  %1099 = vmatmul.f32.gmra.mxu0 %v842
  %v1100 = vpop.f32.mrf.mxu0
  %v1101 = vadd.f32 0.0, %v1100
  %1102 = vmatmul.f32.gmra.mxu0 %v844
  %v1103 = vpop.f32.mrf.mxu0
  %v1104 = vadd.f32 0.0, %v1103
  %1105 = vmatmul.f32.gmra.mxu0 %v846
  %v1106 = vpop.f32.mrf.mxu0
  %v1107 = vadd.f32 0.0, %v1106
  %1108 = vmatmul.f32.gmra.mxu0 %v848
  %v1109 = vpop.f32.mrf.mxu0
  %v1110 = vadd.f32 0.0, %v1109
  %1111 = vmatmul.f32.gmra.mxu0 %v850
  %v1112 = vpop.f32.mrf.mxu0
  %v1113 = vadd.f32 0.0, %v1112
  %1114 = vdwg.mxu0
  %1115 = vmatpush.msra.mxu0 0.0
  %1116 = vmatpush.msra.mxu0 0.0
  %1117 = vmatpush.msra.mxu0 0.0
  %1118 = vmatpush.msra.mxu0 0.0
  %1119 = vmatpush.msra.mxu0 %v640
  %1120 = vmatpush.msra.mxu0 %v639
  %1121 = vmatpush.msra.mxu0 %v638
  %1122 = vmatpush.msra.mxu0 %v637
  %1123 = vmatpush.msra.mxu0 %v636
  %1124 = vmatpush.msra.mxu0 %v635
  %1125 = vmatpush.msra.mxu0 %v634
  %1126 = vmatpush.msra.mxu0 %v633
  %1127 = vmatpush.msra.mxu0 %v632
  %1128 = vmatpush.msra.mxu0 %v631
  %1129 = vmatpush.msra.mxu0 %v630
  %1130 = vmatpush.msra.mxu0 %v629
  %1131 = vmatmul.f32.gmra.mxu0 %v862
  %v1132 = vpop.f32.mrf.mxu0
  %v1133 = vadd.f32 %v1095, %v1132
  %1134 = vmatmul.f32.gmra.mxu0 %v865
  %v1135 = vpop.f32.mrf.mxu0
  %v1136 = vadd.f32 %v1098, %v1135
  %1137 = vmatmul.f32.gmra.mxu0 %v868
  %v1138 = vpop.f32.mrf.mxu0
  %v1139 = vadd.f32 %v1101, %v1138
  %1140 = vmatmul.f32.gmra.mxu0 %v871
  %v1141 = vpop.f32.mrf.mxu0
  %v1142 = vadd.f32 %v1104, %v1141
  %1143 = vmatmul.f32.gmra.mxu0 %v874
  %v1144 = vpop.f32.mrf.mxu0
  %v1145 = vadd.f32 %v1107, %v1144
  %1146 = vmatmul.f32.gmra.mxu0 %v877
  %v1147 = vpop.f32.mrf.mxu0
  %v1148 = vadd.f32 %v1110, %v1147
  %1149 = vmatmul.f32.gmra.mxu0 %v880
  %v1150 = vpop.f32.mrf.mxu0
  %v1151 = vadd.f32 %v1113, %v1150
  %1152 = vdwg.mxu0
  %v1154 = vsel %vm958, %v1133, 0
  %v1157 = vsel %vm958, %v1136, 0
  %v1160 = vsel %vm958, %v1139, 0
  %v1163 = vsel %vm958, %v1142, 0
  %v1166 = vsel %vm958, %v1145, 0
  %v1169 = vsel %vm958, %v1148, 0
  %v1172 = vsel %vm958, %v1151, 0
  %1174 = vmatpush.msra.mxu0 0.0
  %1175 = vmatpush.msra.mxu0 0.0
  %1176 = vmatpush.msra.mxu0 0.0
  %1177 = vmatpush.msra.mxu0 0.0
  %1178 = vmatpush.msra.mxu0 0.0
  %1179 = vmatpush.msra.mxu0 0.0
  %1180 = vmatpush.msra.mxu0 0.0
  %1181 = vmatpush.msra.mxu0 0.0
  %1182 = vmatpush.msra.mxu0 %v860
  %1183 = vmatpush.msra.mxu0 %v859
  %1184 = vmatpush.msra.mxu0 %v858
  %1185 = vmatpush.msra.mxu0 %v857
  %1186 = vmatpush.msra.mxu0 %v856
  %1187 = vmatpush.msra.mxu0 %v855
  %1188 = vmatpush.msra.mxu0 %v854
  %1189 = vmatpush.msra.mxu0 %v853
  %1190 = vmatmul.f32.gmra.mxu0 %v1154
  %v1191 = vpop.f32.mrf.mxu0
  %v1192 = vadd.f32 0.0, %v1191
  %1193 = vmatmul.f32.gmra.mxu0 %v1157
  %v1194 = vpop.f32.mrf.mxu0
  %v1195 = vadd.f32 0.0, %v1194
  %1196 = vmatmul.f32.gmra.mxu0 %v1160
  %v1197 = vpop.f32.mrf.mxu0
  %v1198 = vadd.f32 0.0, %v1197
  %1199 = vmatmul.f32.gmra.mxu0 %v1163
  %v1200 = vpop.f32.mrf.mxu0
  %v1201 = vadd.f32 0.0, %v1200
  %1202 = vmatmul.f32.gmra.mxu0 %v1166
  %v1203 = vpop.f32.mrf.mxu0
  %v1204 = vadd.f32 0.0, %v1203
  %1205 = vmatmul.f32.gmra.mxu0 %v1169
  %v1206 = vpop.f32.mrf.mxu0
  %v1207 = vadd.f32 0.0, %v1206
  %1208 = vmatmul.f32.gmra.mxu0 %v1172
  %v1209 = vpop.f32.mrf.mxu0
  %v1210 = vadd.f32 0.0, %v1209
  %1211 = vdwg.mxu0
  %v1213 = vsel %vm958, %v817, 0
  %v1216 = vsel %vm958, %v820, 0
  %v1219 = vsel %vm958, %v823, 0
  %v1222 = vsel %vm958, %v826, 0
  %v1225 = vsel %vm958, %v829, 0
  %v1228 = vsel %vm958, %v832, 0
  %v1231 = vsel %vm958, %v835, 0
  %1233 = vmatpush.msra.mxu0 0.0
  %1234 = vmatpush.msra.mxu0 0.0
  %1235 = vmatpush.msra.mxu0 0.0
  %1236 = vmatpush.msra.mxu0 0.0
  %1237 = vmatpush.msra.mxu0 0.0
  %1238 = vmatpush.msra.mxu0 0.0
  %1239 = vmatpush.msra.mxu0 0.0
  %1240 = vmatpush.msra.mxu0 0.0
  %1241 = vmatpush.msra.mxu0 %v662
  %1242 = vmatpush.msra.mxu0 %v661
  %1243 = vmatpush.msra.mxu0 %v660
  %1244 = vmatpush.msra.mxu0 %v659
  %1245 = vmatpush.msra.mxu0 %v658
  %1246 = vmatpush.msra.mxu0 %v657
  %1247 = vmatpush.msra.mxu0 %v656
  %1248 = vmatpush.msra.mxu0 %v655
  %1249 = vmatmul.f32.gmra.mxu0 %v1213
  %v1250 = vpop.f32.mrf.mxu0
  %v1251 = vadd.f32 %v1192, %v1250
  %1252 = vmatmul.f32.gmra.mxu0 %v1216
  %v1253 = vpop.f32.mrf.mxu0
  %v1254 = vadd.f32 %v1195, %v1253
  %1255 = vmatmul.f32.gmra.mxu0 %v1219
  %v1256 = vpop.f32.mrf.mxu0
  %v1257 = vadd.f32 %v1198, %v1256
  %1258 = vmatmul.f32.gmra.mxu0 %v1222
  %v1259 = vpop.f32.mrf.mxu0
  %v1260 = vadd.f32 %v1201, %v1259
  %1261 = vmatmul.f32.gmra.mxu0 %v1225
  %v1262 = vpop.f32.mrf.mxu0
  %v1263 = vadd.f32 %v1204, %v1262
  %1264 = vmatmul.f32.gmra.mxu0 %v1228
  %v1265 = vpop.f32.mrf.mxu0
  %v1266 = vadd.f32 %v1207, %v1265
  %1267 = vmatmul.f32.gmra.mxu0 %v1231
  %v1268 = vpop.f32.mrf.mxu0
  %v1269 = vadd.f32 %v1210, %v1268
  %1270 = vdwg.mxu0
  %s1271 = scalar_lea.vmem %s1, 224
  %v1272 = vld [vmem:[%s1271] sm:$0xff]
  %v1273 = vld [vmem:[%s1271 + $0x8] sm:$0xff]
  %v1274 = vld [vmem:[%s1271 + $0x10] sm:$0xff]
  %v1275 = vld [vmem:[%s1271 + $0x18] sm:$0xff]
  %v1276 = vld [vmem:[%s1271 + $0x20] sm:$0xff]
  %v1277 = vld [vmem:[%s1271 + $0x28] sm:$0xff]
  %v1278 = vld [vmem:[%s1271 + $0x30] sm:$0xff]
  %v1279 = vld [vmem:[%s1271 + $0x38] sm:$0xff]
  %v1280 = vld [vmem:[%s1271 + $0x40] sm:$0xff]
  %v1281 = vld [vmem:[%s1271 + $0x48] sm:$0xff]
  %v1282 = vld [vmem:[%s1271 + $0x50] sm:$0xff]
  %v1283 = vld [vmem:[%s1271 + $0x58] sm:$0xff]
  %v1284 = vld [vmem:[%s1271 + $0x60] sm:$0xff]
  %v1285 = vld [vmem:[%s1271 + $0x68] sm:$0xff]
  %s1286 = scalar_lea.vmem %s5, 128
  %v1287 = vld [vmem:[%s1286] sm:$0xff]
  %v1288 = vld [vmem:[%s1286 + $0x8] sm:$0xff]
  %v1289 = vld [vmem:[%s1286 + $0x10] sm:$0xff]
  %v1290 = vld [vmem:[%s1286 + $0x18] sm:$0xff]
  %v1291 = vld [vmem:[%s1286 + $0x20] sm:$0xff]
  %v1292 = vld [vmem:[%s1286 + $0x28] sm:$0xff]
  %v1293 = vld [vmem:[%s1286 + $0x30] sm:$0xff]
  %v1294 = vld [vmem:[%s1286 + $0x38] sm:$0xff]
  %v1296 = vsel %vm663, %v1273, 0
  %v1299 = vsel %vm663, %v1275, 0
  %v1302 = vsel %vm663, %v1277, 0
  %v1305 = vsel %vm663, %v1279, 0
  %v1308 = vsel %vm663, %v1281, 0
  %v1311 = vsel %vm663, %v1283, 0
  %v1314 = vsel %vm663, %v1285, 0
  %1316 = vmatpush.msra.mxu0 %v600
  %1317 = vmatpush.msra.mxu0 %v599
  %1318 = vmatpush.msra.mxu0 %v598
  %1319 = vmatpush.msra.mxu0 %v597
  %1320 = vmatpush.msra.mxu0 %v596
  %1321 = vmatpush.msra.mxu0 %v595
  %1322 = vmatpush.msra.mxu0 %v594
  %1323 = vmatpush.msra.mxu0 %v593
  %1324 = vmatpush.msra.mxu0 %v592
  %1325 = vmatpush.msra.mxu0 %v591
  %1326 = vmatpush.msra.mxu0 %v590
  %1327 = vmatpush.msra.mxu0 %v589
  %1328 = vmatpush.msra.mxu0 %v588
  %1329 = vmatpush.msra.mxu0 %v587
  %1330 = vmatpush.msra.mxu0 %v586
  %1331 = vmatpush.msra.mxu0 %v585
  %1332 = vmatmul.f32.gmra.mxu0 %v1272
  %v1333 = vpop.f32.mrf.mxu0
  %v1334 = vadd.f32 0.0, %v1333
  %1335 = vmatmul.f32.gmra.mxu0 %v1274
  %v1336 = vpop.f32.mrf.mxu0
  %v1337 = vadd.f32 0.0, %v1336
  %1338 = vmatmul.f32.gmra.mxu0 %v1276
  %v1339 = vpop.f32.mrf.mxu0
  %v1340 = vadd.f32 0.0, %v1339
  %1341 = vmatmul.f32.gmra.mxu0 %v1278
  %v1342 = vpop.f32.mrf.mxu0
  %v1343 = vadd.f32 0.0, %v1342
  %1344 = vmatmul.f32.gmra.mxu0 %v1280
  %v1345 = vpop.f32.mrf.mxu0
  %v1346 = vadd.f32 0.0, %v1345
  %1347 = vmatmul.f32.gmra.mxu0 %v1282
  %v1348 = vpop.f32.mrf.mxu0
  %v1349 = vadd.f32 0.0, %v1348
  %1350 = vmatmul.f32.gmra.mxu0 %v1284
  %v1351 = vpop.f32.mrf.mxu0
  %v1352 = vadd.f32 0.0, %v1351
  %1353 = vdwg.mxu0
  %1354 = vmatpush.msra.mxu0 0.0
  %1355 = vmatpush.msra.mxu0 0.0
  %1356 = vmatpush.msra.mxu0 0.0
  %1357 = vmatpush.msra.mxu0 0.0
  %1358 = vmatpush.msra.mxu0 %v612
  %1359 = vmatpush.msra.mxu0 %v611
  %1360 = vmatpush.msra.mxu0 %v610
  %1361 = vmatpush.msra.mxu0 %v609
  %1362 = vmatpush.msra.mxu0 %v608
  %1363 = vmatpush.msra.mxu0 %v607
  %1364 = vmatpush.msra.mxu0 %v606
  %1365 = vmatpush.msra.mxu0 %v605
  %1366 = vmatpush.msra.mxu0 %v604
  %1367 = vmatpush.msra.mxu0 %v603
  %1368 = vmatpush.msra.mxu0 %v602
  %1369 = vmatpush.msra.mxu0 %v601
  %1370 = vmatmul.f32.gmra.mxu0 %v1296
  %v1371 = vpop.f32.mrf.mxu0
  %v1372 = vadd.f32 %v1334, %v1371
  %1373 = vmatmul.f32.gmra.mxu0 %v1299
  %v1374 = vpop.f32.mrf.mxu0
  %v1375 = vadd.f32 %v1337, %v1374
  %1376 = vmatmul.f32.gmra.mxu0 %v1302
  %v1377 = vpop.f32.mrf.mxu0
  %v1378 = vadd.f32 %v1340, %v1377
  %1379 = vmatmul.f32.gmra.mxu0 %v1305
  %v1380 = vpop.f32.mrf.mxu0
  %v1381 = vadd.f32 %v1343, %v1380
  %1382 = vmatmul.f32.gmra.mxu0 %v1308
  %v1383 = vpop.f32.mrf.mxu0
  %v1384 = vadd.f32 %v1346, %v1383
  %1385 = vmatmul.f32.gmra.mxu0 %v1311
  %v1386 = vpop.f32.mrf.mxu0
  %v1387 = vadd.f32 %v1349, %v1386
  %1388 = vmatmul.f32.gmra.mxu0 %v1314
  %v1389 = vpop.f32.mrf.mxu0
  %v1390 = vadd.f32 %v1352, %v1389
  %1391 = vdwg.mxu0
  %v1393 = vsel %vm958, %v1372, 0
  %v1396 = vsel %vm958, %v1375, 0
  %v1399 = vsel %vm958, %v1378, 0
  %v1402 = vsel %vm958, %v1381, 0
  %v1405 = vsel %vm958, %v1384, 0
  %v1408 = vsel %vm958, %v1387, 0
  %v1411 = vsel %vm958, %v1390, 0
  %1413 = vmatpush.msra.mxu0 0.0
  %1414 = vmatpush.msra.mxu0 0.0
  %1415 = vmatpush.msra.mxu0 0.0
  %1416 = vmatpush.msra.mxu0 0.0
  %1417 = vmatpush.msra.mxu0 0.0
  %1418 = vmatpush.msra.mxu0 0.0
  %1419 = vmatpush.msra.mxu0 0.0
  %1420 = vmatpush.msra.mxu0 0.0
  %1421 = vmatpush.msra.mxu0 %v1294
  %1422 = vmatpush.msra.mxu0 %v1293
  %1423 = vmatpush.msra.mxu0 %v1292
  %1424 = vmatpush.msra.mxu0 %v1291
  %1425 = vmatpush.msra.mxu0 %v1290
  %1426 = vmatpush.msra.mxu0 %v1289
  %1427 = vmatpush.msra.mxu0 %v1288
  %1428 = vmatpush.msra.mxu0 %v1287
  %1429 = vmatmul.f32.gmra.mxu0 %v1393
  %v1430 = vpop.f32.mrf.mxu0
  %v1431 = vadd.f32 0.0, %v1430
  %1432 = vmatmul.f32.gmra.mxu0 %v1396
  %v1433 = vpop.f32.mrf.mxu0
  %v1434 = vadd.f32 0.0, %v1433
  %1435 = vmatmul.f32.gmra.mxu0 %v1399
  %v1436 = vpop.f32.mrf.mxu0
  %v1437 = vadd.f32 0.0, %v1436
  %1438 = vmatmul.f32.gmra.mxu0 %v1402
  %v1439 = vpop.f32.mrf.mxu0
  %v1440 = vadd.f32 0.0, %v1439
  %1441 = vmatmul.f32.gmra.mxu0 %v1405
  %v1442 = vpop.f32.mrf.mxu0
  %v1443 = vadd.f32 0.0, %v1442
  %1444 = vmatmul.f32.gmra.mxu0 %v1408
  %v1445 = vpop.f32.mrf.mxu0
  %v1446 = vadd.f32 0.0, %v1445
  %1447 = vmatmul.f32.gmra.mxu0 %v1411
  %v1448 = vpop.f32.mrf.mxu0
  %v1449 = vadd.f32 0.0, %v1448
  %1450 = vdwg.mxu0
  %v1451 = vadd.f32 %v1057, %v1431
  %v1452 = vadd.f32 %v1060, %v1434
  %v1453 = vadd.f32 %v1063, %v1437
  %v1454 = vadd.f32 %v1066, %v1440
  %v1455 = vadd.f32 %v1069, %v1443
  %v1456 = vadd.f32 %v1072, %v1446
  %v1457 = vadd.f32 %v1075, %v1449
  %1458 = vmatpush.msra.mxu0 %v628
  %1459 = vmatpush.msra.mxu0 %v627
  %1460 = vmatpush.msra.mxu0 %v626
  %1461 = vmatpush.msra.mxu0 %v625
  %1462 = vmatpush.msra.mxu0 %v624
  %1463 = vmatpush.msra.mxu0 %v623
  %1464 = vmatpush.msra.mxu0 %v622
  %1465 = vmatpush.msra.mxu0 %v621
  %1466 = vmatpush.msra.mxu0 %v620
  %1467 = vmatpush.msra.mxu0 %v619
  %1468 = vmatpush.msra.mxu0 %v618
  %1469 = vmatpush.msra.mxu0 %v617
  %1470 = vmatpush.msra.mxu0 %v616
  %1471 = vmatpush.msra.mxu0 %v615
  %1472 = vmatpush.msra.mxu0 %v614
  %1473 = vmatpush.msra.mxu0 %v613
  %1474 = vmatmul.f32.gmra.mxu0 %v1272
  %v1475 = vpop.f32.mrf.mxu0
  %v1476 = vadd.f32 0.0, %v1475
  %1477 = vmatmul.f32.gmra.mxu0 %v1274
  %v1478 = vpop.f32.mrf.mxu0
  %v1479 = vadd.f32 0.0, %v1478
  %1480 = vmatmul.f32.gmra.mxu0 %v1276
  %v1481 = vpop.f32.mrf.mxu0
  %v1482 = vadd.f32 0.0, %v1481
  %1483 = vmatmul.f32.gmra.mxu0 %v1278
  %v1484 = vpop.f32.mrf.mxu0
  %v1485 = vadd.f32 0.0, %v1484
  %1486 = vmatmul.f32.gmra.mxu0 %v1280
  %v1487 = vpop.f32.mrf.mxu0
  %v1488 = vadd.f32 0.0, %v1487
  %1489 = vmatmul.f32.gmra.mxu0 %v1282
  %v1490 = vpop.f32.mrf.mxu0
  %v1491 = vadd.f32 0.0, %v1490
  %1492 = vmatmul.f32.gmra.mxu0 %v1284
  %v1493 = vpop.f32.mrf.mxu0
  %v1494 = vadd.f32 0.0, %v1493
  %1495 = vdwg.mxu0
  %1496 = vmatpush.msra.mxu0 0.0
  %1497 = vmatpush.msra.mxu0 0.0
  %1498 = vmatpush.msra.mxu0 0.0
  %1499 = vmatpush.msra.mxu0 0.0
  %1500 = vmatpush.msra.mxu0 %v640
  %1501 = vmatpush.msra.mxu0 %v639
  %1502 = vmatpush.msra.mxu0 %v638
  %1503 = vmatpush.msra.mxu0 %v637
  %1504 = vmatpush.msra.mxu0 %v636
  %1505 = vmatpush.msra.mxu0 %v635
  %1506 = vmatpush.msra.mxu0 %v634
  %1507 = vmatpush.msra.mxu0 %v633
  %1508 = vmatpush.msra.mxu0 %v632
  %1509 = vmatpush.msra.mxu0 %v631
  %1510 = vmatpush.msra.mxu0 %v630
  %1511 = vmatpush.msra.mxu0 %v629
  %1512 = vmatmul.f32.gmra.mxu0 %v1296
  %v1513 = vpop.f32.mrf.mxu0
  %v1514 = vadd.f32 %v1476, %v1513
  %1515 = vmatmul.f32.gmra.mxu0 %v1299
  %v1516 = vpop.f32.mrf.mxu0
  %v1517 = vadd.f32 %v1479, %v1516
  %1518 = vmatmul.f32.gmra.mxu0 %v1302
  %v1519 = vpop.f32.mrf.mxu0
  %v1520 = vadd.f32 %v1482, %v1519
  %1521 = vmatmul.f32.gmra.mxu0 %v1305
  %v1522 = vpop.f32.mrf.mxu0
  %v1523 = vadd.f32 %v1485, %v1522
  %1524 = vmatmul.f32.gmra.mxu0 %v1308
  %v1525 = vpop.f32.mrf.mxu0
  %v1526 = vadd.f32 %v1488, %v1525
  %1527 = vmatmul.f32.gmra.mxu0 %v1311
  %v1528 = vpop.f32.mrf.mxu0
  %v1529 = vadd.f32 %v1491, %v1528
  %1530 = vmatmul.f32.gmra.mxu0 %v1314
  %v1531 = vpop.f32.mrf.mxu0
  %v1532 = vadd.f32 %v1494, %v1531
  %1533 = vdwg.mxu0
  %v1535 = vsel %vm958, %v1514, 0
  %v1538 = vsel %vm958, %v1517, 0
  %v1541 = vsel %vm958, %v1520, 0
  %v1544 = vsel %vm958, %v1523, 0
  %v1547 = vsel %vm958, %v1526, 0
  %v1550 = vsel %vm958, %v1529, 0
  %v1553 = vsel %vm958, %v1532, 0
  %1555 = vmatpush.msra.mxu0 0.0
  %1556 = vmatpush.msra.mxu0 0.0
  %1557 = vmatpush.msra.mxu0 0.0
  %1558 = vmatpush.msra.mxu0 0.0
  %1559 = vmatpush.msra.mxu0 0.0
  %1560 = vmatpush.msra.mxu0 0.0
  %1561 = vmatpush.msra.mxu0 0.0
  %1562 = vmatpush.msra.mxu0 0.0
  %1563 = vmatpush.msra.mxu0 %v1294
  %1564 = vmatpush.msra.mxu0 %v1293
  %1565 = vmatpush.msra.mxu0 %v1292
  %1566 = vmatpush.msra.mxu0 %v1291
  %1567 = vmatpush.msra.mxu0 %v1290
  %1568 = vmatpush.msra.mxu0 %v1289
  %1569 = vmatpush.msra.mxu0 %v1288
  %1570 = vmatpush.msra.mxu0 %v1287
  %1571 = vmatmul.f32.gmra.mxu0 %v1535
  %v1572 = vpop.f32.mrf.mxu0
  %v1573 = vadd.f32 0.0, %v1572
  %1574 = vmatmul.f32.gmra.mxu0 %v1538
  %v1575 = vpop.f32.mrf.mxu0
  %v1576 = vadd.f32 0.0, %v1575
  %1577 = vmatmul.f32.gmra.mxu0 %v1541
  %v1578 = vpop.f32.mrf.mxu0
  %v1579 = vadd.f32 0.0, %v1578
  %1580 = vmatmul.f32.gmra.mxu0 %v1544
  %v1581 = vpop.f32.mrf.mxu0
  %v1582 = vadd.f32 0.0, %v1581
  %1583 = vmatmul.f32.gmra.mxu0 %v1547
  %v1584 = vpop.f32.mrf.mxu0
  %v1585 = vadd.f32 0.0, %v1584
  %1586 = vmatmul.f32.gmra.mxu0 %v1550
  %v1587 = vpop.f32.mrf.mxu0
  %v1588 = vadd.f32 0.0, %v1587
  %1589 = vmatmul.f32.gmra.mxu0 %v1553
  %v1590 = vpop.f32.mrf.mxu0
  %v1591 = vadd.f32 0.0, %v1590
  %1592 = vdwg.mxu0
  %v1593 = vadd.f32 %v1251, %v1573
  %v1594 = vadd.f32 %v1254, %v1576
  %v1595 = vadd.f32 %v1257, %v1579
  %v1596 = vadd.f32 %v1260, %v1582
  %v1597 = vadd.f32 %v1263, %v1585
  %v1598 = vadd.f32 %v1266, %v1588
  %v1599 = vadd.f32 %v1269, %v1591
  %s1600 = scalar_lea.vmem %s1, 336
  %v1601 = vld [vmem:[%s1600] sm:$0xff]
  %v1602 = vld [vmem:[%s1600 + $0x8] sm:$0xff]
  %v1603 = vld [vmem:[%s1600 + $0x10] sm:$0xff]
  %v1604 = vld [vmem:[%s1600 + $0x18] sm:$0xff]
  %v1605 = vld [vmem:[%s1600 + $0x20] sm:$0xff]
  %v1606 = vld [vmem:[%s1600 + $0x28] sm:$0xff]
  %v1607 = vld [vmem:[%s1600 + $0x30] sm:$0xff]
  %v1608 = vld [vmem:[%s1600 + $0x38] sm:$0xff]
  %v1609 = vld [vmem:[%s1600 + $0x40] sm:$0xff]
  %v1610 = vld [vmem:[%s1600 + $0x48] sm:$0xff]
  %v1611 = vld [vmem:[%s1600 + $0x50] sm:$0xff]
  %v1612 = vld [vmem:[%s1600 + $0x58] sm:$0xff]
  %v1613 = vld [vmem:[%s1600 + $0x60] sm:$0xff]
  %v1614 = vld [vmem:[%s1600 + $0x68] sm:$0xff]
  %s1615 = scalar_lea.vmem %s5, 192
  %v1616 = vld [vmem:[%s1615] sm:$0xff]
  %v1617 = vld [vmem:[%s1615 + $0x8] sm:$0xff]
  %v1618 = vld [vmem:[%s1615 + $0x10] sm:$0xff]
  %v1619 = vld [vmem:[%s1615 + $0x18] sm:$0xff]
  %v1620 = vld [vmem:[%s1615 + $0x20] sm:$0xff]
  %v1621 = vld [vmem:[%s1615 + $0x28] sm:$0xff]
  %v1622 = vld [vmem:[%s1615 + $0x30] sm:$0xff]
  %v1623 = vld [vmem:[%s1615 + $0x38] sm:$0xff]
  %v1625 = vsel %vm663, %v1602, 0
  %v1628 = vsel %vm663, %v1604, 0
  %v1631 = vsel %vm663, %v1606, 0
  %v1634 = vsel %vm663, %v1608, 0
  %v1637 = vsel %vm663, %v1610, 0
  %v1640 = vsel %vm663, %v1612, 0
  %v1643 = vsel %vm663, %v1614, 0
  %1645 = vmatpush.msra.mxu0 %v600
  %1646 = vmatpush.msra.mxu0 %v599
  %1647 = vmatpush.msra.mxu0 %v598
  %1648 = vmatpush.msra.mxu0 %v597
  %1649 = vmatpush.msra.mxu0 %v596
  %1650 = vmatpush.msra.mxu0 %v595
  %1651 = vmatpush.msra.mxu0 %v594
  %1652 = vmatpush.msra.mxu0 %v593
  %1653 = vmatpush.msra.mxu0 %v592
  %1654 = vmatpush.msra.mxu0 %v591
  %1655 = vmatpush.msra.mxu0 %v590
  %1656 = vmatpush.msra.mxu0 %v589
  %1657 = vmatpush.msra.mxu0 %v588
  %1658 = vmatpush.msra.mxu0 %v587
  %1659 = vmatpush.msra.mxu0 %v586
  %1660 = vmatpush.msra.mxu0 %v585
  %1661 = vmatmul.f32.gmra.mxu0 %v1601
  %v1662 = vpop.f32.mrf.mxu0
  %v1663 = vadd.f32 0.0, %v1662
  %1664 = vmatmul.f32.gmra.mxu0 %v1603
  %v1665 = vpop.f32.mrf.mxu0
  %v1666 = vadd.f32 0.0, %v1665
  %1667 = vmatmul.f32.gmra.mxu0 %v1605
  %v1668 = vpop.f32.mrf.mxu0
  %v1669 = vadd.f32 0.0, %v1668
  %1670 = vmatmul.f32.gmra.mxu0 %v1607
  %v1671 = vpop.f32.mrf.mxu0
  %v1672 = vadd.f32 0.0, %v1671
  %1673 = vmatmul.f32.gmra.mxu0 %v1609
  %v1674 = vpop.f32.mrf.mxu0
  %v1675 = vadd.f32 0.0, %v1674
  %1676 = vmatmul.f32.gmra.mxu0 %v1611
  %v1677 = vpop.f32.mrf.mxu0
  %v1678 = vadd.f32 0.0, %v1677
  %1679 = vmatmul.f32.gmra.mxu0 %v1613
  %v1680 = vpop.f32.mrf.mxu0
  %v1681 = vadd.f32 0.0, %v1680
  %1682 = vdwg.mxu0
  %1683 = vmatpush.msra.mxu0 0.0
  %1684 = vmatpush.msra.mxu0 0.0
  %1685 = vmatpush.msra.mxu0 0.0
  %1686 = vmatpush.msra.mxu0 0.0
  %1687 = vmatpush.msra.mxu0 %v612
  %1688 = vmatpush.msra.mxu0 %v611
  %1689 = vmatpush.msra.mxu0 %v610
  %1690 = vmatpush.msra.mxu0 %v609
  %1691 = vmatpush.msra.mxu0 %v608
  %1692 = vmatpush.msra.mxu0 %v607
  %1693 = vmatpush.msra.mxu0 %v606
  %1694 = vmatpush.msra.mxu0 %v605
  %1695 = vmatpush.msra.mxu0 %v604
  %1696 = vmatpush.msra.mxu0 %v603
  %1697 = vmatpush.msra.mxu0 %v602
  %1698 = vmatpush.msra.mxu0 %v601
  %1699 = vmatmul.f32.gmra.mxu0 %v1625
  %v1700 = vpop.f32.mrf.mxu0
  %v1701 = vadd.f32 %v1663, %v1700
  %1702 = vmatmul.f32.gmra.mxu0 %v1628
  %v1703 = vpop.f32.mrf.mxu0
  %v1704 = vadd.f32 %v1666, %v1703
  %1705 = vmatmul.f32.gmra.mxu0 %v1631
  %v1706 = vpop.f32.mrf.mxu0
  %v1707 = vadd.f32 %v1669, %v1706
  %1708 = vmatmul.f32.gmra.mxu0 %v1634
  %v1709 = vpop.f32.mrf.mxu0
  %v1710 = vadd.f32 %v1672, %v1709
  %1711 = vmatmul.f32.gmra.mxu0 %v1637
  %v1712 = vpop.f32.mrf.mxu0
  %v1713 = vadd.f32 %v1675, %v1712
  %1714 = vmatmul.f32.gmra.mxu0 %v1640
  %v1715 = vpop.f32.mrf.mxu0
  %v1716 = vadd.f32 %v1678, %v1715
  %1717 = vmatmul.f32.gmra.mxu0 %v1643
  %v1718 = vpop.f32.mrf.mxu0
  %v1719 = vadd.f32 %v1681, %v1718
  %1720 = vdwg.mxu0
  %v1722 = vsel %vm958, %v1701, 0
  %v1725 = vsel %vm958, %v1704, 0
  %v1728 = vsel %vm958, %v1707, 0
  %v1731 = vsel %vm958, %v1710, 0
  %v1734 = vsel %vm958, %v1713, 0
  %v1737 = vsel %vm958, %v1716, 0
  %v1740 = vsel %vm958, %v1719, 0
  %1742 = vmatpush.msra.mxu0 0.0
  %1743 = vmatpush.msra.mxu0 0.0
  %1744 = vmatpush.msra.mxu0 0.0
  %1745 = vmatpush.msra.mxu0 0.0
  %1746 = vmatpush.msra.mxu0 0.0
  %1747 = vmatpush.msra.mxu0 0.0
  %1748 = vmatpush.msra.mxu0 0.0
  %1749 = vmatpush.msra.mxu0 0.0
  %1750 = vmatpush.msra.mxu0 %v1623
  %1751 = vmatpush.msra.mxu0 %v1622
  %1752 = vmatpush.msra.mxu0 %v1621
  %1753 = vmatpush.msra.mxu0 %v1620
  %1754 = vmatpush.msra.mxu0 %v1619
  %1755 = vmatpush.msra.mxu0 %v1618
  %1756 = vmatpush.msra.mxu0 %v1617
  %1757 = vmatpush.msra.mxu0 %v1616
  %1758 = vmatmul.f32.gmra.mxu0 %v1722
  %v1759 = vpop.f32.mrf.mxu0
  %v1760 = vadd.f32 0.0, %v1759
  %1761 = vmatmul.f32.gmra.mxu0 %v1725
  %v1762 = vpop.f32.mrf.mxu0
  %v1763 = vadd.f32 0.0, %v1762
  %1764 = vmatmul.f32.gmra.mxu0 %v1728
  %v1765 = vpop.f32.mrf.mxu0
  %v1766 = vadd.f32 0.0, %v1765
  %1767 = vmatmul.f32.gmra.mxu0 %v1731
  %v1768 = vpop.f32.mrf.mxu0
  %v1769 = vadd.f32 0.0, %v1768
  %1770 = vmatmul.f32.gmra.mxu0 %v1734
  %v1771 = vpop.f32.mrf.mxu0
  %v1772 = vadd.f32 0.0, %v1771
  %1773 = vmatmul.f32.gmra.mxu0 %v1737
  %v1774 = vpop.f32.mrf.mxu0
  %v1775 = vadd.f32 0.0, %v1774
  %1776 = vmatmul.f32.gmra.mxu0 %v1740
  %v1777 = vpop.f32.mrf.mxu0
  %v1778 = vadd.f32 0.0, %v1777
  %1779 = vdwg.mxu0
  %v1780 = vadd.f32 %v1451, %v1760
  %v1781 = vadd.f32 %v1452, %v1763
  %v1782 = vadd.f32 %v1453, %v1766
  %v1783 = vadd.f32 %v1454, %v1769
  %v1784 = vadd.f32 %v1455, %v1772
  %v1785 = vadd.f32 %v1456, %v1775
  %v1786 = vadd.f32 %v1457, %v1778
  %1787 = vmatpush.msra.mxu0 %v628
  %1788 = vmatpush.msra.mxu0 %v627
  %1789 = vmatpush.msra.mxu0 %v626
  %1790 = vmatpush.msra.mxu0 %v625
  %1791 = vmatpush.msra.mxu0 %v624
  %1792 = vmatpush.msra.mxu0 %v623
  %1793 = vmatpush.msra.mxu0 %v622
  %1794 = vmatpush.msra.mxu0 %v621
  %1795 = vmatpush.msra.mxu0 %v620
  %1796 = vmatpush.msra.mxu0 %v619
  %1797 = vmatpush.msra.mxu0 %v618
  %1798 = vmatpush.msra.mxu0 %v617
  %1799 = vmatpush.msra.mxu0 %v616
  %1800 = vmatpush.msra.mxu0 %v615
  %1801 = vmatpush.msra.mxu0 %v614
  %1802 = vmatpush.msra.mxu0 %v613
  %1803 = vmatmul.f32.gmra.mxu0 %v1601
  %v1804 = vpop.f32.mrf.mxu0
  %v1805 = vadd.f32 0.0, %v1804
  %1806 = vmatmul.f32.gmra.mxu0 %v1603
  %v1807 = vpop.f32.mrf.mxu0
  %v1808 = vadd.f32 0.0, %v1807
  %1809 = vmatmul.f32.gmra.mxu0 %v1605
  %v1810 = vpop.f32.mrf.mxu0
  %v1811 = vadd.f32 0.0, %v1810
  %1812 = vmatmul.f32.gmra.mxu0 %v1607
  %v1813 = vpop.f32.mrf.mxu0
  %v1814 = vadd.f32 0.0, %v1813
  %1815 = vmatmul.f32.gmra.mxu0 %v1609
  %v1816 = vpop.f32.mrf.mxu0
  %v1817 = vadd.f32 0.0, %v1816
  %1818 = vmatmul.f32.gmra.mxu0 %v1611
  %v1819 = vpop.f32.mrf.mxu0
  %v1820 = vadd.f32 0.0, %v1819
  %1821 = vmatmul.f32.gmra.mxu0 %v1613
  %v1822 = vpop.f32.mrf.mxu0
  %v1823 = vadd.f32 0.0, %v1822
  %1824 = vdwg.mxu0
  %1825 = vmatpush.msra.mxu0 0.0
  %1826 = vmatpush.msra.mxu0 0.0
  %1827 = vmatpush.msra.mxu0 0.0
  %1828 = vmatpush.msra.mxu0 0.0
  %1829 = vmatpush.msra.mxu0 %v640
  %1830 = vmatpush.msra.mxu0 %v639
  %1831 = vmatpush.msra.mxu0 %v638
  %1832 = vmatpush.msra.mxu0 %v637
  %1833 = vmatpush.msra.mxu0 %v636
  %1834 = vmatpush.msra.mxu0 %v635
  %1835 = vmatpush.msra.mxu0 %v634
  %1836 = vmatpush.msra.mxu0 %v633
  %1837 = vmatpush.msra.mxu0 %v632
  %1838 = vmatpush.msra.mxu0 %v631
  %1839 = vmatpush.msra.mxu0 %v630
  %1840 = vmatpush.msra.mxu0 %v629
  %1841 = vmatmul.f32.gmra.mxu0 %v1625
  %v1842 = vpop.f32.mrf.mxu0
  %v1843 = vadd.f32 %v1805, %v1842
  %1844 = vmatmul.f32.gmra.mxu0 %v1628
  %v1845 = vpop.f32.mrf.mxu0
  %v1846 = vadd.f32 %v1808, %v1845
  %1847 = vmatmul.f32.gmra.mxu0 %v1631
  %v1848 = vpop.f32.mrf.mxu0
  %v1849 = vadd.f32 %v1811, %v1848
  %1850 = vmatmul.f32.gmra.mxu0 %v1634
  %v1851 = vpop.f32.mrf.mxu0
  %v1852 = vadd.f32 %v1814, %v1851
  %1853 = vmatmul.f32.gmra.mxu0 %v1637
  %v1854 = vpop.f32.mrf.mxu0
  %v1855 = vadd.f32 %v1817, %v1854
  %1856 = vmatmul.f32.gmra.mxu0 %v1640
  %v1857 = vpop.f32.mrf.mxu0
  %v1858 = vadd.f32 %v1820, %v1857
  %1859 = vmatmul.f32.gmra.mxu0 %v1643
  %v1860 = vpop.f32.mrf.mxu0
  %v1861 = vadd.f32 %v1823, %v1860
  %1862 = vdwg.mxu0
  %v1864 = vsel %vm958, %v1843, 0
  %v1867 = vsel %vm958, %v1846, 0
  %v1870 = vsel %vm958, %v1849, 0
  %v1873 = vsel %vm958, %v1852, 0
  %v1876 = vsel %vm958, %v1855, 0
  %v1879 = vsel %vm958, %v1858, 0
  %v1882 = vsel %vm958, %v1861, 0
  %1884 = vmatpush.msra.mxu0 0.0
  %1885 = vmatpush.msra.mxu0 0.0
  %1886 = vmatpush.msra.mxu0 0.0
  %1887 = vmatpush.msra.mxu0 0.0
  %1888 = vmatpush.msra.mxu0 0.0
  %1889 = vmatpush.msra.mxu0 0.0
  %1890 = vmatpush.msra.mxu0 0.0
  %1891 = vmatpush.msra.mxu0 0.0
  %1892 = vmatpush.msra.mxu0 %v1623
  %1893 = vmatpush.msra.mxu0 %v1622
  %1894 = vmatpush.msra.mxu0 %v1621
  %1895 = vmatpush.msra.mxu0 %v1620
  %1896 = vmatpush.msra.mxu0 %v1619
  %1897 = vmatpush.msra.mxu0 %v1618
  %1898 = vmatpush.msra.mxu0 %v1617
  %1899 = vmatpush.msra.mxu0 %v1616
  %1900 = vmatmul.f32.gmra.mxu0 %v1864
  %v1901 = vpop.f32.mrf.mxu0
  %v1902 = vadd.f32 0.0, %v1901
  %1903 = vmatmul.f32.gmra.mxu0 %v1867
  %v1904 = vpop.f32.mrf.mxu0
  %v1905 = vadd.f32 0.0, %v1904
  %1906 = vmatmul.f32.gmra.mxu0 %v1870
  %v1907 = vpop.f32.mrf.mxu0
  %v1908 = vadd.f32 0.0, %v1907
  %1909 = vmatmul.f32.gmra.mxu0 %v1873
  %v1910 = vpop.f32.mrf.mxu0
  %v1911 = vadd.f32 0.0, %v1910
  %1912 = vmatmul.f32.gmra.mxu0 %v1876
  %v1913 = vpop.f32.mrf.mxu0
  %v1914 = vadd.f32 0.0, %v1913
  %1915 = vmatmul.f32.gmra.mxu0 %v1879
  %v1916 = vpop.f32.mrf.mxu0
  %v1917 = vadd.f32 0.0, %v1916
  %1918 = vmatmul.f32.gmra.mxu0 %v1882
  %v1919 = vpop.f32.mrf.mxu0
  %v1920 = vadd.f32 0.0, %v1919
  %1921 = vdwg.mxu0
  %v1922 = vadd.f32 %v1593, %v1902
  %v1923 = vadd.f32 %v1594, %v1905
  %v1924 = vadd.f32 %v1595, %v1908
  %v1925 = vadd.f32 %v1596, %v1911
  %v1926 = vadd.f32 %v1597, %v1914
  %v1927 = vadd.f32 %v1598, %v1917
  %v1928 = vadd.f32 %v1599, %v1920
  %s1929 = scalar_lea.vmem %s1, 448
  %v1930 = vld [vmem:[%s1929] sm:$0xff]
  %v1931 = vld [vmem:[%s1929 + $0x8] sm:$0xff]
  %v1932 = vld [vmem:[%s1929 + $0x10] sm:$0xff]
  %v1933 = vld [vmem:[%s1929 + $0x18] sm:$0xff]
  %v1934 = vld [vmem:[%s1929 + $0x20] sm:$0xff]
  %v1935 = vld [vmem:[%s1929 + $0x28] sm:$0xff]
  %v1936 = vld [vmem:[%s1929 + $0x30] sm:$0xff]
  %v1937 = vld [vmem:[%s1929 + $0x38] sm:$0xff]
  %v1938 = vld [vmem:[%s1929 + $0x40] sm:$0xff]
  %v1939 = vld [vmem:[%s1929 + $0x48] sm:$0xff]
  %v1940 = vld [vmem:[%s1929 + $0x50] sm:$0xff]
  %v1941 = vld [vmem:[%s1929 + $0x58] sm:$0xff]
  %v1942 = vld [vmem:[%s1929 + $0x60] sm:$0xff]
  %v1943 = vld [vmem:[%s1929 + $0x68] sm:$0xff]
  %s1944 = scalar_lea.vmem %s5, 256
  %v1945 = vld [vmem:[%s1944] sm:$0xff]
  %v1946 = vld [vmem:[%s1944 + $0x8] sm:$0xff]
  %v1947 = vld [vmem:[%s1944 + $0x10] sm:$0xff]
  %v1948 = vld [vmem:[%s1944 + $0x18] sm:$0xff]
  %v1949 = vld [vmem:[%s1944 + $0x20] sm:$0xff]
  %v1950 = vld [vmem:[%s1944 + $0x28] sm:$0xff]
  %v1951 = vld [vmem:[%s1944 + $0x30] sm:$0xff]
  %v1952 = vld [vmem:[%s1944 + $0x38] sm:$0xff]
  %v1954 = vsel %vm663, %v1931, 0
  %v1957 = vsel %vm663, %v1933, 0
  %v1960 = vsel %vm663, %v1935, 0
  %v1963 = vsel %vm663, %v1937, 0
  %v1966 = vsel %vm663, %v1939, 0
  %v1969 = vsel %vm663, %v1941, 0
  %v1972 = vsel %vm663, %v1943, 0
  %1974 = vmatpush.msra.mxu0 %v600
  %1975 = vmatpush.msra.mxu0 %v599
  %1976 = vmatpush.msra.mxu0 %v598
  %1977 = vmatpush.msra.mxu0 %v597
  %1978 = vmatpush.msra.mxu0 %v596
  %1979 = vmatpush.msra.mxu0 %v595
  %1980 = vmatpush.msra.mxu0 %v594
  %1981 = vmatpush.msra.mxu0 %v593
  %1982 = vmatpush.msra.mxu0 %v592
  %1983 = vmatpush.msra.mxu0 %v591
  %1984 = vmatpush.msra.mxu0 %v590
  %1985 = vmatpush.msra.mxu0 %v589
  %1986 = vmatpush.msra.mxu0 %v588
  %1987 = vmatpush.msra.mxu0 %v587
  %1988 = vmatpush.msra.mxu0 %v586
  %1989 = vmatpush.msra.mxu0 %v585
  %1990 = vmatmul.f32.gmra.mxu0 %v1930
  %v1991 = vpop.f32.mrf.mxu0
  %v1992 = vadd.f32 0.0, %v1991
  %1993 = vmatmul.f32.gmra.mxu0 %v1932
  %v1994 = vpop.f32.mrf.mxu0
  %v1995 = vadd.f32 0.0, %v1994
  %1996 = vmatmul.f32.gmra.mxu0 %v1934
  %v1997 = vpop.f32.mrf.mxu0
  %v1998 = vadd.f32 0.0, %v1997
  %1999 = vmatmul.f32.gmra.mxu0 %v1936
  %v2000 = vpop.f32.mrf.mxu0
  %v2001 = vadd.f32 0.0, %v2000
  %2002 = vmatmul.f32.gmra.mxu0 %v1938
  %v2003 = vpop.f32.mrf.mxu0
  %v2004 = vadd.f32 0.0, %v2003
  %2005 = vmatmul.f32.gmra.mxu0 %v1940
  %v2006 = vpop.f32.mrf.mxu0
  %v2007 = vadd.f32 0.0, %v2006
  %2008 = vmatmul.f32.gmra.mxu0 %v1942
  %v2009 = vpop.f32.mrf.mxu0
  %v2010 = vadd.f32 0.0, %v2009
  %2011 = vdwg.mxu0
  %2012 = vmatpush.msra.mxu0 0.0
  %2013 = vmatpush.msra.mxu0 0.0
  %2014 = vmatpush.msra.mxu0 0.0
  %2015 = vmatpush.msra.mxu0 0.0
  %2016 = vmatpush.msra.mxu0 %v612
  %2017 = vmatpush.msra.mxu0 %v611
  %2018 = vmatpush.msra.mxu0 %v610
  %2019 = vmatpush.msra.mxu0 %v609
  %2020 = vmatpush.msra.mxu0 %v608
  %2021 = vmatpush.msra.mxu0 %v607
  %2022 = vmatpush.msra.mxu0 %v606
  %2023 = vmatpush.msra.mxu0 %v605
  %2024 = vmatpush.msra.mxu0 %v604
  %2025 = vmatpush.msra.mxu0 %v603
  %2026 = vmatpush.msra.mxu0 %v602
  %2027 = vmatpush.msra.mxu0 %v601
  %2028 = vmatmul.f32.gmra.mxu0 %v1954
  %v2029 = vpop.f32.mrf.mxu0
  %v2030 = vadd.f32 %v1992, %v2029
  %2031 = vmatmul.f32.gmra.mxu0 %v1957
  %v2032 = vpop.f32.mrf.mxu0
  %v2033 = vadd.f32 %v1995, %v2032
  %2034 = vmatmul.f32.gmra.mxu0 %v1960
  %v2035 = vpop.f32.mrf.mxu0
  %v2036 = vadd.f32 %v1998, %v2035
  %2037 = vmatmul.f32.gmra.mxu0 %v1963
  %v2038 = vpop.f32.mrf.mxu0
  %v2039 = vadd.f32 %v2001, %v2038
  %2040 = vmatmul.f32.gmra.mxu0 %v1966
  %v2041 = vpop.f32.mrf.mxu0
  %v2042 = vadd.f32 %v2004, %v2041
  %2043 = vmatmul.f32.gmra.mxu0 %v1969
  %v2044 = vpop.f32.mrf.mxu0
  %v2045 = vadd.f32 %v2007, %v2044
  %2046 = vmatmul.f32.gmra.mxu0 %v1972
  %v2047 = vpop.f32.mrf.mxu0
  %v2048 = vadd.f32 %v2010, %v2047
  %2049 = vdwg.mxu0
  %v2051 = vsel %vm958, %v2030, 0
  %v2054 = vsel %vm958, %v2033, 0
  %v2057 = vsel %vm958, %v2036, 0
  %v2060 = vsel %vm958, %v2039, 0
  %v2063 = vsel %vm958, %v2042, 0
  %v2066 = vsel %vm958, %v2045, 0
  %v2069 = vsel %vm958, %v2048, 0
  %2071 = vmatpush.msra.mxu0 0.0
  %2072 = vmatpush.msra.mxu0 0.0
  %2073 = vmatpush.msra.mxu0 0.0
  %2074 = vmatpush.msra.mxu0 0.0
  %2075 = vmatpush.msra.mxu0 0.0
  %2076 = vmatpush.msra.mxu0 0.0
  %2077 = vmatpush.msra.mxu0 0.0
  %2078 = vmatpush.msra.mxu0 0.0
  %2079 = vmatpush.msra.mxu0 %v1952
  %2080 = vmatpush.msra.mxu0 %v1951
  %2081 = vmatpush.msra.mxu0 %v1950
  %2082 = vmatpush.msra.mxu0 %v1949
  %2083 = vmatpush.msra.mxu0 %v1948
  %2084 = vmatpush.msra.mxu0 %v1947
  %2085 = vmatpush.msra.mxu0 %v1946
  %2086 = vmatpush.msra.mxu0 %v1945
  %2087 = vmatmul.f32.gmra.mxu0 %v2051
  %v2088 = vpop.f32.mrf.mxu0
  %v2089 = vadd.f32 0.0, %v2088
  %2090 = vmatmul.f32.gmra.mxu0 %v2054
  %v2091 = vpop.f32.mrf.mxu0
  %v2092 = vadd.f32 0.0, %v2091
  %2093 = vmatmul.f32.gmra.mxu0 %v2057
  %v2094 = vpop.f32.mrf.mxu0
  %v2095 = vadd.f32 0.0, %v2094
  %2096 = vmatmul.f32.gmra.mxu0 %v2060
  %v2097 = vpop.f32.mrf.mxu0
  %v2098 = vadd.f32 0.0, %v2097
  %2099 = vmatmul.f32.gmra.mxu0 %v2063
  %v2100 = vpop.f32.mrf.mxu0
  %v2101 = vadd.f32 0.0, %v2100
  %2102 = vmatmul.f32.gmra.mxu0 %v2066
  %v2103 = vpop.f32.mrf.mxu0
  %v2104 = vadd.f32 0.0, %v2103
  %2105 = vmatmul.f32.gmra.mxu0 %v2069
  %v2106 = vpop.f32.mrf.mxu0
  %v2107 = vadd.f32 0.0, %v2106
  %2108 = vdwg.mxu0
  %v2109 = vadd.f32 %v1780, %v2089
  %v2110 = vadd.f32 %v1781, %v2092
  %v2111 = vadd.f32 %v1782, %v2095
  %v2112 = vadd.f32 %v1783, %v2098
  %v2113 = vadd.f32 %v1784, %v2101
  %v2114 = vadd.f32 %v1785, %v2104
  %v2115 = vadd.f32 %v1786, %v2107
  %2116 = vmatpush.msra.mxu0 %v628
  %2117 = vmatpush.msra.mxu0 %v627
  %2118 = vmatpush.msra.mxu0 %v626
  %2119 = vmatpush.msra.mxu0 %v625
  %2120 = vmatpush.msra.mxu0 %v624
  %2121 = vmatpush.msra.mxu0 %v623
  %2122 = vmatpush.msra.mxu0 %v622
  %2123 = vmatpush.msra.mxu0 %v621
  %2124 = vmatpush.msra.mxu0 %v620
  %2125 = vmatpush.msra.mxu0 %v619
  %2126 = vmatpush.msra.mxu0 %v618
  %2127 = vmatpush.msra.mxu0 %v617
  %2128 = vmatpush.msra.mxu0 %v616
  %2129 = vmatpush.msra.mxu0 %v615
  %2130 = vmatpush.msra.mxu0 %v614
  %2131 = vmatpush.msra.mxu0 %v613
  %2132 = vmatmul.f32.gmra.mxu0 %v1930
  %v2133 = vpop.f32.mrf.mxu0
  %v2134 = vadd.f32 0.0, %v2133
  %2135 = vmatmul.f32.gmra.mxu0 %v1932
  %v2136 = vpop.f32.mrf.mxu0
  %v2137 = vadd.f32 0.0, %v2136
  %2138 = vmatmul.f32.gmra.mxu0 %v1934
  %v2139 = vpop.f32.mrf.mxu0
  %v2140 = vadd.f32 0.0, %v2139
  %2141 = vmatmul.f32.gmra.mxu0 %v1936
  %v2142 = vpop.f32.mrf.mxu0
  %v2143 = vadd.f32 0.0, %v2142
  %2144 = vmatmul.f32.gmra.mxu0 %v1938
  %v2145 = vpop.f32.mrf.mxu0
  %v2146 = vadd.f32 0.0, %v2145
  %2147 = vmatmul.f32.gmra.mxu0 %v1940
  %v2148 = vpop.f32.mrf.mxu0
  %v2149 = vadd.f32 0.0, %v2148
  %2150 = vmatmul.f32.gmra.mxu0 %v1942
  %v2151 = vpop.f32.mrf.mxu0
  %v2152 = vadd.f32 0.0, %v2151
  %2153 = vdwg.mxu0
  %2154 = vmatpush.msra.mxu0 0.0
  %2155 = vmatpush.msra.mxu0 0.0
  %2156 = vmatpush.msra.mxu0 0.0
  %2157 = vmatpush.msra.mxu0 0.0
  %2158 = vmatpush.msra.mxu0 %v640
  %2159 = vmatpush.msra.mxu0 %v639
  %2160 = vmatpush.msra.mxu0 %v638
  %2161 = vmatpush.msra.mxu0 %v637
  %2162 = vmatpush.msra.mxu0 %v636
  %2163 = vmatpush.msra.mxu0 %v635
  %2164 = vmatpush.msra.mxu0 %v634
  %2165 = vmatpush.msra.mxu0 %v633
  %2166 = vmatpush.msra.mxu0 %v632
  %2167 = vmatpush.msra.mxu0 %v631
  %2168 = vmatpush.msra.mxu0 %v630
  %2169 = vmatpush.msra.mxu0 %v629
  %2170 = vmatmul.f32.gmra.mxu0 %v1954
  %v2171 = vpop.f32.mrf.mxu0
  %v2172 = vadd.f32 %v2134, %v2171
  %2173 = vmatmul.f32.gmra.mxu0 %v1957
  %v2174 = vpop.f32.mrf.mxu0
  %v2175 = vadd.f32 %v2137, %v2174
  %2176 = vmatmul.f32.gmra.mxu0 %v1960
  %v2177 = vpop.f32.mrf.mxu0
  %v2178 = vadd.f32 %v2140, %v2177
  %2179 = vmatmul.f32.gmra.mxu0 %v1963
  %v2180 = vpop.f32.mrf.mxu0
  %v2181 = vadd.f32 %v2143, %v2180
  %2182 = vmatmul.f32.gmra.mxu0 %v1966
  %v2183 = vpop.f32.mrf.mxu0
  %v2184 = vadd.f32 %v2146, %v2183
  %2185 = vmatmul.f32.gmra.mxu0 %v1969
  %v2186 = vpop.f32.mrf.mxu0
  %v2187 = vadd.f32 %v2149, %v2186
  %2188 = vmatmul.f32.gmra.mxu0 %v1972
  %v2189 = vpop.f32.mrf.mxu0
  %v2190 = vadd.f32 %v2152, %v2189
  %2191 = vdwg.mxu0
  %v2193 = vsel %vm958, %v2172, 0
  %v2196 = vsel %vm958, %v2175, 0
  %v2199 = vsel %vm958, %v2178, 0
  %v2202 = vsel %vm958, %v2181, 0
  %v2205 = vsel %vm958, %v2184, 0
  %v2208 = vsel %vm958, %v2187, 0
  %v2211 = vsel %vm958, %v2190, 0
  %2213 = vmatpush.msra.mxu0 0.0
  %2214 = vmatpush.msra.mxu0 0.0
  %2215 = vmatpush.msra.mxu0 0.0
  %2216 = vmatpush.msra.mxu0 0.0
  %2217 = vmatpush.msra.mxu0 0.0
  %2218 = vmatpush.msra.mxu0 0.0
  %2219 = vmatpush.msra.mxu0 0.0
  %2220 = vmatpush.msra.mxu0 0.0
  %2221 = vmatpush.msra.mxu0 %v1952
  %2222 = vmatpush.msra.mxu0 %v1951
  %2223 = vmatpush.msra.mxu0 %v1950
  %2224 = vmatpush.msra.mxu0 %v1949
  %2225 = vmatpush.msra.mxu0 %v1948
  %2226 = vmatpush.msra.mxu0 %v1947
  %2227 = vmatpush.msra.mxu0 %v1946
  %2228 = vmatpush.msra.mxu0 %v1945
  %2229 = vmatmul.f32.gmra.mxu0 %v2193
  %v2230 = vpop.f32.mrf.mxu0
  %v2231 = vadd.f32 0.0, %v2230
  %2232 = vmatmul.f32.gmra.mxu0 %v2196
  %v2233 = vpop.f32.mrf.mxu0
  %v2234 = vadd.f32 0.0, %v2233
  %2235 = vmatmul.f32.gmra.mxu0 %v2199
  %v2236 = vpop.f32.mrf.mxu0
  %v2237 = vadd.f32 0.0, %v2236
  %2238 = vmatmul.f32.gmra.mxu0 %v2202
  %v2239 = vpop.f32.mrf.mxu0
  %v2240 = vadd.f32 0.0, %v2239
  %2241 = vmatmul.f32.gmra.mxu0 %v2205
  %v2242 = vpop.f32.mrf.mxu0
  %v2243 = vadd.f32 0.0, %v2242
  %2244 = vmatmul.f32.gmra.mxu0 %v2208
  %v2245 = vpop.f32.mrf.mxu0
  %v2246 = vadd.f32 0.0, %v2245
  %2247 = vmatmul.f32.gmra.mxu0 %v2211
  %v2248 = vpop.f32.mrf.mxu0
  %v2249 = vadd.f32 0.0, %v2248
  %2250 = vdwg.mxu0
  %v2251 = vadd.f32 %v1922, %v2231
  %v2252 = vadd.f32 %v1923, %v2234
  %v2253 = vadd.f32 %v1924, %v2237
  %v2254 = vadd.f32 %v1925, %v2240
  %v2255 = vadd.f32 %v1926, %v2243
  %v2256 = vadd.f32 %v1927, %v2246
  %v2257 = vadd.f32 %v1928, %v2249
  %s2258 = scalar_lea.vmem %s1, 560
  %v2259 = vld [vmem:[%s2258] sm:$0xff]
  %v2260 = vld [vmem:[%s2258 + $0x8] sm:$0xff]
  %v2261 = vld [vmem:[%s2258 + $0x10] sm:$0xff]
  %v2262 = vld [vmem:[%s2258 + $0x18] sm:$0xff]
  %v2263 = vld [vmem:[%s2258 + $0x20] sm:$0xff]
  %v2264 = vld [vmem:[%s2258 + $0x28] sm:$0xff]
  %v2265 = vld [vmem:[%s2258 + $0x30] sm:$0xff]
  %v2266 = vld [vmem:[%s2258 + $0x38] sm:$0xff]
  %v2267 = vld [vmem:[%s2258 + $0x40] sm:$0xff]
  %v2268 = vld [vmem:[%s2258 + $0x48] sm:$0xff]
  %v2269 = vld [vmem:[%s2258 + $0x50] sm:$0xff]
  %v2270 = vld [vmem:[%s2258 + $0x58] sm:$0xff]
  %v2271 = vld [vmem:[%s2258 + $0x60] sm:$0xff]
  %v2272 = vld [vmem:[%s2258 + $0x68] sm:$0xff]
  %s2273 = scalar_lea.vmem %s5, 320
  %v2274 = vld [vmem:[%s2273] sm:$0xff]
  %v2275 = vld [vmem:[%s2273 + $0x8] sm:$0xff]
  %v2276 = vld [vmem:[%s2273 + $0x10] sm:$0xff]
  %v2277 = vld [vmem:[%s2273 + $0x18] sm:$0xff]
  %v2278 = vld [vmem:[%s2273 + $0x20] sm:$0xff]
  %v2279 = vld [vmem:[%s2273 + $0x28] sm:$0xff]
  %v2280 = vld [vmem:[%s2273 + $0x30] sm:$0xff]
  %v2281 = vld [vmem:[%s2273 + $0x38] sm:$0xff]
  %v2283 = vsel %vm663, %v2260, 0
  %v2286 = vsel %vm663, %v2262, 0
  %v2289 = vsel %vm663, %v2264, 0
  %v2292 = vsel %vm663, %v2266, 0
  %v2295 = vsel %vm663, %v2268, 0
  %v2298 = vsel %vm663, %v2270, 0
  %v2301 = vsel %vm663, %v2272, 0
  %2303 = vmatpush.msra.mxu0 %v600
  %2304 = vmatpush.msra.mxu0 %v599
  %2305 = vmatpush.msra.mxu0 %v598
  %2306 = vmatpush.msra.mxu0 %v597
  %2307 = vmatpush.msra.mxu0 %v596
  %2308 = vmatpush.msra.mxu0 %v595
  %2309 = vmatpush.msra.mxu0 %v594
  %2310 = vmatpush.msra.mxu0 %v593
  %2311 = vmatpush.msra.mxu0 %v592
  %2312 = vmatpush.msra.mxu0 %v591
  %2313 = vmatpush.msra.mxu0 %v590
  %2314 = vmatpush.msra.mxu0 %v589
  %2315 = vmatpush.msra.mxu0 %v588
  %2316 = vmatpush.msra.mxu0 %v587
  %2317 = vmatpush.msra.mxu0 %v586
  %2318 = vmatpush.msra.mxu0 %v585
  %2319 = vmatmul.f32.gmra.mxu0 %v2259
  %v2320 = vpop.f32.mrf.mxu0
  %v2321 = vadd.f32 0.0, %v2320
  %2322 = vmatmul.f32.gmra.mxu0 %v2261
  %v2323 = vpop.f32.mrf.mxu0
  %v2324 = vadd.f32 0.0, %v2323
  %2325 = vmatmul.f32.gmra.mxu0 %v2263
  %v2326 = vpop.f32.mrf.mxu0
  %v2327 = vadd.f32 0.0, %v2326
  %2328 = vmatmul.f32.gmra.mxu0 %v2265
  %v2329 = vpop.f32.mrf.mxu0
  %v2330 = vadd.f32 0.0, %v2329
  %2331 = vmatmul.f32.gmra.mxu0 %v2267
  %v2332 = vpop.f32.mrf.mxu0
  %v2333 = vadd.f32 0.0, %v2332
  %2334 = vmatmul.f32.gmra.mxu0 %v2269
  %v2335 = vpop.f32.mrf.mxu0
  %v2336 = vadd.f32 0.0, %v2335
  %2337 = vmatmul.f32.gmra.mxu0 %v2271
  %v2338 = vpop.f32.mrf.mxu0
  %v2339 = vadd.f32 0.0, %v2338
  %2340 = vdwg.mxu0
  %2341 = vmatpush.msra.mxu0 0.0
  %2342 = vmatpush.msra.mxu0 0.0
  %2343 = vmatpush.msra.mxu0 0.0
  %2344 = vmatpush.msra.mxu0 0.0
  %2345 = vmatpush.msra.mxu0 %v612
  %2346 = vmatpush.msra.mxu0 %v611
  %2347 = vmatpush.msra.mxu0 %v610
  %2348 = vmatpush.msra.mxu0 %v609
  %2349 = vmatpush.msra.mxu0 %v608
  %2350 = vmatpush.msra.mxu0 %v607
  %2351 = vmatpush.msra.mxu0 %v606
  %2352 = vmatpush.msra.mxu0 %v605
  %2353 = vmatpush.msra.mxu0 %v604
  %2354 = vmatpush.msra.mxu0 %v603
  %2355 = vmatpush.msra.mxu0 %v602
  %2356 = vmatpush.msra.mxu0 %v601
  %2357 = vmatmul.f32.gmra.mxu0 %v2283
  %v2358 = vpop.f32.mrf.mxu0
  %v2359 = vadd.f32 %v2321, %v2358
  %2360 = vmatmul.f32.gmra.mxu0 %v2286
  %v2361 = vpop.f32.mrf.mxu0
  %v2362 = vadd.f32 %v2324, %v2361
  %2363 = vmatmul.f32.gmra.mxu0 %v2289
  %v2364 = vpop.f32.mrf.mxu0
  %v2365 = vadd.f32 %v2327, %v2364
  %2366 = vmatmul.f32.gmra.mxu0 %v2292
  %v2367 = vpop.f32.mrf.mxu0
  %v2368 = vadd.f32 %v2330, %v2367
  %2369 = vmatmul.f32.gmra.mxu0 %v2295
  %v2370 = vpop.f32.mrf.mxu0
  %v2371 = vadd.f32 %v2333, %v2370
  %2372 = vmatmul.f32.gmra.mxu0 %v2298
  %v2373 = vpop.f32.mrf.mxu0
  %v2374 = vadd.f32 %v2336, %v2373
  %2375 = vmatmul.f32.gmra.mxu0 %v2301
  %v2376 = vpop.f32.mrf.mxu0
  %v2377 = vadd.f32 %v2339, %v2376
  %2378 = vdwg.mxu0
  %v2380 = vsel %vm958, %v2359, 0
  %v2383 = vsel %vm958, %v2362, 0
  %v2386 = vsel %vm958, %v2365, 0
  %v2389 = vsel %vm958, %v2368, 0
  %v2392 = vsel %vm958, %v2371, 0
  %v2395 = vsel %vm958, %v2374, 0
  %v2398 = vsel %vm958, %v2377, 0
  %2400 = vmatpush.msra.mxu0 0.0
  %2401 = vmatpush.msra.mxu0 0.0
  %2402 = vmatpush.msra.mxu0 0.0
  %2403 = vmatpush.msra.mxu0 0.0
  %2404 = vmatpush.msra.mxu0 0.0
  %2405 = vmatpush.msra.mxu0 0.0
  %2406 = vmatpush.msra.mxu0 0.0
  %2407 = vmatpush.msra.mxu0 0.0
  %2408 = vmatpush.msra.mxu0 %v2281
  %2409 = vmatpush.msra.mxu0 %v2280
  %2410 = vmatpush.msra.mxu0 %v2279
  %2411 = vmatpush.msra.mxu0 %v2278
  %2412 = vmatpush.msra.mxu0 %v2277
  %2413 = vmatpush.msra.mxu0 %v2276
  %2414 = vmatpush.msra.mxu0 %v2275
  %2415 = vmatpush.msra.mxu0 %v2274
  %2416 = vmatmul.f32.gmra.mxu0 %v2380
  %v2417 = vpop.f32.mrf.mxu0
  %v2418 = vadd.f32 0.0, %v2417
  %2419 = vmatmul.f32.gmra.mxu0 %v2383
  %v2420 = vpop.f32.mrf.mxu0
  %v2421 = vadd.f32 0.0, %v2420
  %2422 = vmatmul.f32.gmra.mxu0 %v2386
  %v2423 = vpop.f32.mrf.mxu0
  %v2424 = vadd.f32 0.0, %v2423
  %2425 = vmatmul.f32.gmra.mxu0 %v2389
  %v2426 = vpop.f32.mrf.mxu0
  %v2427 = vadd.f32 0.0, %v2426
  %2428 = vmatmul.f32.gmra.mxu0 %v2392
  %v2429 = vpop.f32.mrf.mxu0
  %v2430 = vadd.f32 0.0, %v2429
  %2431 = vmatmul.f32.gmra.mxu0 %v2395
  %v2432 = vpop.f32.mrf.mxu0
  %v2433 = vadd.f32 0.0, %v2432
  %2434 = vmatmul.f32.gmra.mxu0 %v2398
  %v2435 = vpop.f32.mrf.mxu0
  %v2436 = vadd.f32 0.0, %v2435
  %2437 = vdwg.mxu0
  %v2438 = vadd.f32 %v2109, %v2418
  %v2439 = vadd.f32 %v2110, %v2421
  %v2440 = vadd.f32 %v2111, %v2424
  %v2441 = vadd.f32 %v2112, %v2427
  %v2442 = vadd.f32 %v2113, %v2430
  %v2443 = vadd.f32 %v2114, %v2433
  %v2444 = vadd.f32 %v2115, %v2436
  %2445 = vmatpush.msra.mxu0 %v628
  %2446 = vmatpush.msra.mxu0 %v627
  %2447 = vmatpush.msra.mxu0 %v626
  %2448 = vmatpush.msra.mxu0 %v625
  %2449 = vmatpush.msra.mxu0 %v624
  %2450 = vmatpush.msra.mxu0 %v623
  %2451 = vmatpush.msra.mxu0 %v622
  %2452 = vmatpush.msra.mxu0 %v621
  %2453 = vmatpush.msra.mxu0 %v620
  %2454 = vmatpush.msra.mxu0 %v619
  %2455 = vmatpush.msra.mxu0 %v618
  %2456 = vmatpush.msra.mxu0 %v617
  %2457 = vmatpush.msra.mxu0 %v616
  %2458 = vmatpush.msra.mxu0 %v615
  %2459 = vmatpush.msra.mxu0 %v614
  %2460 = vmatpush.msra.mxu0 %v613
  %2461 = vmatmul.f32.gmra.mxu0 %v2259
  %v2462 = vpop.f32.mrf.mxu0
  %v2463 = vadd.f32 0.0, %v2462
  %2464 = vmatmul.f32.gmra.mxu0 %v2261
  %v2465 = vpop.f32.mrf.mxu0
  %v2466 = vadd.f32 0.0, %v2465
  %2467 = vmatmul.f32.gmra.mxu0 %v2263
  %v2468 = vpop.f32.mrf.mxu0
  %v2469 = vadd.f32 0.0, %v2468
  %2470 = vmatmul.f32.gmra.mxu0 %v2265
  %v2471 = vpop.f32.mrf.mxu0
  %v2472 = vadd.f32 0.0, %v2471
  %2473 = vmatmul.f32.gmra.mxu0 %v2267
  %v2474 = vpop.f32.mrf.mxu0
  %v2475 = vadd.f32 0.0, %v2474
  %2476 = vmatmul.f32.gmra.mxu0 %v2269
  %v2477 = vpop.f32.mrf.mxu0
  %v2478 = vadd.f32 0.0, %v2477
  %2479 = vmatmul.f32.gmra.mxu0 %v2271
  %v2480 = vpop.f32.mrf.mxu0
  %v2481 = vadd.f32 0.0, %v2480
  %2482 = vdwg.mxu0
  %2483 = vmatpush.msra.mxu0 0.0
  %2484 = vmatpush.msra.mxu0 0.0
  %2485 = vmatpush.msra.mxu0 0.0
  %2486 = vmatpush.msra.mxu0 0.0
  %2487 = vmatpush.msra.mxu0 %v640
  %2488 = vmatpush.msra.mxu0 %v639
  %2489 = vmatpush.msra.mxu0 %v638
  %2490 = vmatpush.msra.mxu0 %v637
  %2491 = vmatpush.msra.mxu0 %v636
  %2492 = vmatpush.msra.mxu0 %v635
  %2493 = vmatpush.msra.mxu0 %v634
  %2494 = vmatpush.msra.mxu0 %v633
  %2495 = vmatpush.msra.mxu0 %v632
  %2496 = vmatpush.msra.mxu0 %v631
  %2497 = vmatpush.msra.mxu0 %v630
  %2498 = vmatpush.msra.mxu0 %v629
  %2499 = vmatmul.f32.gmra.mxu0 %v2283
  %v2500 = vpop.f32.mrf.mxu0
  %v2501 = vadd.f32 %v2463, %v2500
  %2502 = vmatmul.f32.gmra.mxu0 %v2286
  %v2503 = vpop.f32.mrf.mxu0
  %v2504 = vadd.f32 %v2466, %v2503
  %2505 = vmatmul.f32.gmra.mxu0 %v2289
  %v2506 = vpop.f32.mrf.mxu0
  %v2507 = vadd.f32 %v2469, %v2506
  %2508 = vmatmul.f32.gmra.mxu0 %v2292
  %v2509 = vpop.f32.mrf.mxu0
  %v2510 = vadd.f32 %v2472, %v2509
  %2511 = vmatmul.f32.gmra.mxu0 %v2295
  %v2512 = vpop.f32.mrf.mxu0
  %v2513 = vadd.f32 %v2475, %v2512
  %2514 = vmatmul.f32.gmra.mxu0 %v2298
  %v2515 = vpop.f32.mrf.mxu0
  %v2516 = vadd.f32 %v2478, %v2515
  %2517 = vmatmul.f32.gmra.mxu0 %v2301
  %v2518 = vpop.f32.mrf.mxu0
  %v2519 = vadd.f32 %v2481, %v2518
  %2520 = vdwg.mxu0
  %v2522 = vsel %vm958, %v2501, 0
  %v2525 = vsel %vm958, %v2504, 0
  %v2528 = vsel %vm958, %v2507, 0
  %v2531 = vsel %vm958, %v2510, 0
  %v2534 = vsel %vm958, %v2513, 0
  %v2537 = vsel %vm958, %v2516, 0
  %v2540 = vsel %vm958, %v2519, 0
  %2542 = vmatpush.msra.mxu0 0.0
  %2543 = vmatpush.msra.mxu0 0.0
  %2544 = vmatpush.msra.mxu0 0.0
  %2545 = vmatpush.msra.mxu0 0.0
  %2546 = vmatpush.msra.mxu0 0.0
  %2547 = vmatpush.msra.mxu0 0.0
  %2548 = vmatpush.msra.mxu0 0.0
  %2549 = vmatpush.msra.mxu0 0.0
  %2550 = vmatpush.msra.mxu0 %v2281
  %2551 = vmatpush.msra.mxu0 %v2280
  %2552 = vmatpush.msra.mxu0 %v2279
  %2553 = vmatpush.msra.mxu0 %v2278
  %2554 = vmatpush.msra.mxu0 %v2277
  %2555 = vmatpush.msra.mxu0 %v2276
  %2556 = vmatpush.msra.mxu0 %v2275
  %2557 = vmatpush.msra.mxu0 %v2274
  %2558 = vmatmul.f32.gmra.mxu0 %v2522
  %v2559 = vpop.f32.mrf.mxu0
  %v2560 = vadd.f32 0.0, %v2559
  %2561 = vmatmul.f32.gmra.mxu0 %v2525
  %v2562 = vpop.f32.mrf.mxu0
  %v2563 = vadd.f32 0.0, %v2562
  %2564 = vmatmul.f32.gmra.mxu0 %v2528
  %v2565 = vpop.f32.mrf.mxu0
  %v2566 = vadd.f32 0.0, %v2565
  %2567 = vmatmul.f32.gmra.mxu0 %v2531
  %v2568 = vpop.f32.mrf.mxu0
  %v2569 = vadd.f32 0.0, %v2568
  %2570 = vmatmul.f32.gmra.mxu0 %v2534
  %v2571 = vpop.f32.mrf.mxu0
  %v2572 = vadd.f32 0.0, %v2571
  %2573 = vmatmul.f32.gmra.mxu0 %v2537
  %v2574 = vpop.f32.mrf.mxu0
  %v2575 = vadd.f32 0.0, %v2574
  %2576 = vmatmul.f32.gmra.mxu0 %v2540
  %v2577 = vpop.f32.mrf.mxu0
  %v2578 = vadd.f32 0.0, %v2577
  %2579 = vdwg.mxu0
  %v2580 = vadd.f32 %v2251, %v2560
  %v2581 = vadd.f32 %v2252, %v2563
  %v2582 = vadd.f32 %v2253, %v2566
  %v2583 = vadd.f32 %v2254, %v2569
  %v2584 = vadd.f32 %v2255, %v2572
  %v2585 = vadd.f32 %v2256, %v2575
  %v2586 = vadd.f32 %v2257, %v2578
  %s2587 = scalar_lea.vmem %s1, 672
  %v2588 = vld [vmem:[%s2587] sm:$0xff]
  %v2589 = vld [vmem:[%s2587 + $0x8] sm:$0xff]
  %v2590 = vld [vmem:[%s2587 + $0x10] sm:$0xff]
  %v2591 = vld [vmem:[%s2587 + $0x18] sm:$0xff]
  %v2592 = vld [vmem:[%s2587 + $0x20] sm:$0xff]
  %v2593 = vld [vmem:[%s2587 + $0x28] sm:$0xff]
  %v2594 = vld [vmem:[%s2587 + $0x30] sm:$0xff]
  %v2595 = vld [vmem:[%s2587 + $0x38] sm:$0xff]
  %v2596 = vld [vmem:[%s2587 + $0x40] sm:$0xff]
  %v2597 = vld [vmem:[%s2587 + $0x48] sm:$0xff]
  %v2598 = vld [vmem:[%s2587 + $0x50] sm:$0xff]
  %v2599 = vld [vmem:[%s2587 + $0x58] sm:$0xff]
  %v2600 = vld [vmem:[%s2587 + $0x60] sm:$0xff]
  %v2601 = vld [vmem:[%s2587 + $0x68] sm:$0xff]
  %s2602 = scalar_lea.vmem %s5, 384
  %v2603 = vld [vmem:[%s2602] sm:$0xff]
  %v2604 = vld [vmem:[%s2602 + $0x8] sm:$0xff]
  %v2605 = vld [vmem:[%s2602 + $0x10] sm:$0xff]
  %v2606 = vld [vmem:[%s2602 + $0x18] sm:$0xff]
  %v2607 = vld [vmem:[%s2602 + $0x20] sm:$0xff]
  %v2608 = vld [vmem:[%s2602 + $0x28] sm:$0xff]
  %v2609 = vld [vmem:[%s2602 + $0x30] sm:$0xff]
  %v2610 = vld [vmem:[%s2602 + $0x38] sm:$0xff]
  %v2612 = vsel %vm663, %v2589, 0
  %v2615 = vsel %vm663, %v2591, 0
  %v2618 = vsel %vm663, %v2593, 0
  %v2621 = vsel %vm663, %v2595, 0
  %v2624 = vsel %vm663, %v2597, 0
  %v2627 = vsel %vm663, %v2599, 0
  %v2630 = vsel %vm663, %v2601, 0
  %2632 = vmatpush.msra.mxu0 %v600
  %2633 = vmatpush.msra.mxu0 %v599
  %2634 = vmatpush.msra.mxu0 %v598
  %2635 = vmatpush.msra.mxu0 %v597
  %2636 = vmatpush.msra.mxu0 %v596
  %2637 = vmatpush.msra.mxu0 %v595
  %2638 = vmatpush.msra.mxu0 %v594
  %2639 = vmatpush.msra.mxu0 %v593
  %2640 = vmatpush.msra.mxu0 %v592
  %2641 = vmatpush.msra.mxu0 %v591
  %2642 = vmatpush.msra.mxu0 %v590
  %2643 = vmatpush.msra.mxu0 %v589
  %2644 = vmatpush.msra.mxu0 %v588
  %2645 = vmatpush.msra.mxu0 %v587
  %2646 = vmatpush.msra.mxu0 %v586
  %2647 = vmatpush.msra.mxu0 %v585
  %2648 = vmatmul.f32.gmra.mxu0 %v2588
  %v2649 = vpop.f32.mrf.mxu0
  %v2650 = vadd.f32 0.0, %v2649
  %2651 = vmatmul.f32.gmra.mxu0 %v2590
  %v2652 = vpop.f32.mrf.mxu0
  %v2653 = vadd.f32 0.0, %v2652
  %2654 = vmatmul.f32.gmra.mxu0 %v2592
  %v2655 = vpop.f32.mrf.mxu0
  %v2656 = vadd.f32 0.0, %v2655
  %2657 = vmatmul.f32.gmra.mxu0 %v2594
  %v2658 = vpop.f32.mrf.mxu0
  %v2659 = vadd.f32 0.0, %v2658
  %2660 = vmatmul.f32.gmra.mxu0 %v2596
  %v2661 = vpop.f32.mrf.mxu0
  %v2662 = vadd.f32 0.0, %v2661
  %2663 = vmatmul.f32.gmra.mxu0 %v2598
  %v2664 = vpop.f32.mrf.mxu0
  %v2665 = vadd.f32 0.0, %v2664
  %2666 = vmatmul.f32.gmra.mxu0 %v2600
  %v2667 = vpop.f32.mrf.mxu0
  %v2668 = vadd.f32 0.0, %v2667
  %2669 = vdwg.mxu0
  %2670 = vmatpush.msra.mxu0 0.0
  %2671 = vmatpush.msra.mxu0 0.0
  %2672 = vmatpush.msra.mxu0 0.0
  %2673 = vmatpush.msra.mxu0 0.0
  %2674 = vmatpush.msra.mxu0 %v612
  %2675 = vmatpush.msra.mxu0 %v611
  %2676 = vmatpush.msra.mxu0 %v610
  %2677 = vmatpush.msra.mxu0 %v609
  %2678 = vmatpush.msra.mxu0 %v608
  %2679 = vmatpush.msra.mxu0 %v607
  %2680 = vmatpush.msra.mxu0 %v606
  %2681 = vmatpush.msra.mxu0 %v605
  %2682 = vmatpush.msra.mxu0 %v604
  %2683 = vmatpush.msra.mxu0 %v603
  %2684 = vmatpush.msra.mxu0 %v602
  %2685 = vmatpush.msra.mxu0 %v601
  %2686 = vmatmul.f32.gmra.mxu0 %v2612
  %v2687 = vpop.f32.mrf.mxu0
  %v2688 = vadd.f32 %v2650, %v2687
  %2689 = vmatmul.f32.gmra.mxu0 %v2615
  %v2690 = vpop.f32.mrf.mxu0
  %v2691 = vadd.f32 %v2653, %v2690
  %2692 = vmatmul.f32.gmra.mxu0 %v2618
  %v2693 = vpop.f32.mrf.mxu0
  %v2694 = vadd.f32 %v2656, %v2693
  %2695 = vmatmul.f32.gmra.mxu0 %v2621
  %v2696 = vpop.f32.mrf.mxu0
  %v2697 = vadd.f32 %v2659, %v2696
  %2698 = vmatmul.f32.gmra.mxu0 %v2624
  %v2699 = vpop.f32.mrf.mxu0
  %v2700 = vadd.f32 %v2662, %v2699
  %2701 = vmatmul.f32.gmra.mxu0 %v2627
  %v2702 = vpop.f32.mrf.mxu0
  %v2703 = vadd.f32 %v2665, %v2702
  %2704 = vmatmul.f32.gmra.mxu0 %v2630
  %v2705 = vpop.f32.mrf.mxu0
  %v2706 = vadd.f32 %v2668, %v2705
  %2707 = vdwg.mxu0
  %v2709 = vsel %vm958, %v2688, 0
  %v2712 = vsel %vm958, %v2691, 0
  %v2715 = vsel %vm958, %v2694, 0
  %v2718 = vsel %vm958, %v2697, 0
  %v2721 = vsel %vm958, %v2700, 0
  %v2724 = vsel %vm958, %v2703, 0
  %v2727 = vsel %vm958, %v2706, 0
  %2729 = vmatpush.msra.mxu0 0.0
  %2730 = vmatpush.msra.mxu0 0.0
  %2731 = vmatpush.msra.mxu0 0.0
  %2732 = vmatpush.msra.mxu0 0.0
  %2733 = vmatpush.msra.mxu0 0.0
  %2734 = vmatpush.msra.mxu0 0.0
  %2735 = vmatpush.msra.mxu0 0.0
  %2736 = vmatpush.msra.mxu0 0.0
  %2737 = vmatpush.msra.mxu0 %v2610
  %2738 = vmatpush.msra.mxu0 %v2609
  %2739 = vmatpush.msra.mxu0 %v2608
  %2740 = vmatpush.msra.mxu0 %v2607
  %2741 = vmatpush.msra.mxu0 %v2606
  %2742 = vmatpush.msra.mxu0 %v2605
  %2743 = vmatpush.msra.mxu0 %v2604
  %2744 = vmatpush.msra.mxu0 %v2603
  %2745 = vmatmul.f32.gmra.mxu0 %v2709
  %v2746 = vpop.f32.mrf.mxu0
  %v2747 = vadd.f32 0.0, %v2746
  %2748 = vmatmul.f32.gmra.mxu0 %v2712
  %v2749 = vpop.f32.mrf.mxu0
  %v2750 = vadd.f32 0.0, %v2749
  %2751 = vmatmul.f32.gmra.mxu0 %v2715
  %v2752 = vpop.f32.mrf.mxu0
  %v2753 = vadd.f32 0.0, %v2752
  %2754 = vmatmul.f32.gmra.mxu0 %v2718
  %v2755 = vpop.f32.mrf.mxu0
  %v2756 = vadd.f32 0.0, %v2755
  %2757 = vmatmul.f32.gmra.mxu0 %v2721
  %v2758 = vpop.f32.mrf.mxu0
  %v2759 = vadd.f32 0.0, %v2758
  %2760 = vmatmul.f32.gmra.mxu0 %v2724
  %v2761 = vpop.f32.mrf.mxu0
  %v2762 = vadd.f32 0.0, %v2761
  %2763 = vmatmul.f32.gmra.mxu0 %v2727
  %v2764 = vpop.f32.mrf.mxu0
  %v2765 = vadd.f32 0.0, %v2764
  %2766 = vdwg.mxu0
  %v2767 = vadd.f32 %v2438, %v2747
  %v2768 = vadd.f32 %v2439, %v2750
  %v2769 = vadd.f32 %v2440, %v2753
  %v2770 = vadd.f32 %v2441, %v2756
  %v2771 = vadd.f32 %v2442, %v2759
  %v2772 = vadd.f32 %v2443, %v2762
  %v2773 = vadd.f32 %v2444, %v2765
  %2774 = vmatpush.msra.mxu0 %v628
  %2775 = vmatpush.msra.mxu0 %v627
  %2776 = vmatpush.msra.mxu0 %v626
  %2777 = vmatpush.msra.mxu0 %v625
  %2778 = vmatpush.msra.mxu0 %v624
  %2779 = vmatpush.msra.mxu0 %v623
  %2780 = vmatpush.msra.mxu0 %v622
  %2781 = vmatpush.msra.mxu0 %v621
  %2782 = vmatpush.msra.mxu0 %v620
  %2783 = vmatpush.msra.mxu0 %v619
  %2784 = vmatpush.msra.mxu0 %v618
  %2785 = vmatpush.msra.mxu0 %v617
  %2786 = vmatpush.msra.mxu0 %v616
  %2787 = vmatpush.msra.mxu0 %v615
  %2788 = vmatpush.msra.mxu0 %v614
  %2789 = vmatpush.msra.mxu0 %v613
  %2790 = vmatmul.f32.gmra.mxu0 %v2588
  %v2791 = vpop.f32.mrf.mxu0
  %v2792 = vadd.f32 0.0, %v2791
  %2793 = vmatmul.f32.gmra.mxu0 %v2590
  %v2794 = vpop.f32.mrf.mxu0
  %v2795 = vadd.f32 0.0, %v2794
  %2796 = vmatmul.f32.gmra.mxu0 %v2592
  %v2797 = vpop.f32.mrf.mxu0
  %v2798 = vadd.f32 0.0, %v2797
  %2799 = vmatmul.f32.gmra.mxu0 %v2594
  %v2800 = vpop.f32.mrf.mxu0
  %v2801 = vadd.f32 0.0, %v2800
  %2802 = vmatmul.f32.gmra.mxu0 %v2596
  %v2803 = vpop.f32.mrf.mxu0
  %v2804 = vadd.f32 0.0, %v2803
  %2805 = vmatmul.f32.gmra.mxu0 %v2598
  %v2806 = vpop.f32.mrf.mxu0
  %v2807 = vadd.f32 0.0, %v2806
  %2808 = vmatmul.f32.gmra.mxu0 %v2600
  %v2809 = vpop.f32.mrf.mxu0
  %v2810 = vadd.f32 0.0, %v2809
  %2811 = vdwg.mxu0
  %2812 = vmatpush.msra.mxu0 0.0
  %2813 = vmatpush.msra.mxu0 0.0
  %2814 = vmatpush.msra.mxu0 0.0
  %2815 = vmatpush.msra.mxu0 0.0
  %2816 = vmatpush.msra.mxu0 %v640
  %2817 = vmatpush.msra.mxu0 %v639
  %2818 = vmatpush.msra.mxu0 %v638
  %2819 = vmatpush.msra.mxu0 %v637
  %2820 = vmatpush.msra.mxu0 %v636
  %2821 = vmatpush.msra.mxu0 %v635
  %2822 = vmatpush.msra.mxu0 %v634
  %2823 = vmatpush.msra.mxu0 %v633
  %2824 = vmatpush.msra.mxu0 %v632
  %2825 = vmatpush.msra.mxu0 %v631
  %2826 = vmatpush.msra.mxu0 %v630
  %2827 = vmatpush.msra.mxu0 %v629
  %2828 = vmatmul.f32.gmra.mxu0 %v2612
  %v2829 = vpop.f32.mrf.mxu0
  %v2830 = vadd.f32 %v2792, %v2829
  %2831 = vmatmul.f32.gmra.mxu0 %v2615
  %v2832 = vpop.f32.mrf.mxu0
  %v2833 = vadd.f32 %v2795, %v2832
  %2834 = vmatmul.f32.gmra.mxu0 %v2618
  %v2835 = vpop.f32.mrf.mxu0
  %v2836 = vadd.f32 %v2798, %v2835
  %2837 = vmatmul.f32.gmra.mxu0 %v2621
  %v2838 = vpop.f32.mrf.mxu0
  %v2839 = vadd.f32 %v2801, %v2838
  %2840 = vmatmul.f32.gmra.mxu0 %v2624
  %v2841 = vpop.f32.mrf.mxu0
  %v2842 = vadd.f32 %v2804, %v2841
  %2843 = vmatmul.f32.gmra.mxu0 %v2627
  %v2844 = vpop.f32.mrf.mxu0
  %v2845 = vadd.f32 %v2807, %v2844
  %2846 = vmatmul.f32.gmra.mxu0 %v2630
  %v2847 = vpop.f32.mrf.mxu0
  %v2848 = vadd.f32 %v2810, %v2847
  %2849 = vdwg.mxu0
  %v2851 = vsel %vm958, %v2830, 0
  %v2854 = vsel %vm958, %v2833, 0
  %v2857 = vsel %vm958, %v2836, 0
  %v2860 = vsel %vm958, %v2839, 0
  %v2863 = vsel %vm958, %v2842, 0
  %v2866 = vsel %vm958, %v2845, 0
  %v2869 = vsel %vm958, %v2848, 0
  %2871 = vmatpush.msra.mxu0 0.0
  %2872 = vmatpush.msra.mxu0 0.0
  %2873 = vmatpush.msra.mxu0 0.0
  %2874 = vmatpush.msra.mxu0 0.0
  %2875 = vmatpush.msra.mxu0 0.0
  %2876 = vmatpush.msra.mxu0 0.0
  %2877 = vmatpush.msra.mxu0 0.0
  %2878 = vmatpush.msra.mxu0 0.0
  %2879 = vmatpush.msra.mxu0 %v2610
  %2880 = vmatpush.msra.mxu0 %v2609
  %2881 = vmatpush.msra.mxu0 %v2608
  %2882 = vmatpush.msra.mxu0 %v2607
  %2883 = vmatpush.msra.mxu0 %v2606
  %2884 = vmatpush.msra.mxu0 %v2605
  %2885 = vmatpush.msra.mxu0 %v2604
  %2886 = vmatpush.msra.mxu0 %v2603
  %2887 = vmatmul.f32.gmra.mxu0 %v2851
  %v2888 = vpop.f32.mrf.mxu0
  %v2889 = vadd.f32 0.0, %v2888
  %2890 = vmatmul.f32.gmra.mxu0 %v2854
  %v2891 = vpop.f32.mrf.mxu0
  %v2892 = vadd.f32 0.0, %v2891
  %2893 = vmatmul.f32.gmra.mxu0 %v2857
  %v2894 = vpop.f32.mrf.mxu0
  %v2895 = vadd.f32 0.0, %v2894
  %2896 = vmatmul.f32.gmra.mxu0 %v2860
  %v2897 = vpop.f32.mrf.mxu0
  %v2898 = vadd.f32 0.0, %v2897
  %2899 = vmatmul.f32.gmra.mxu0 %v2863
  %v2900 = vpop.f32.mrf.mxu0
  %v2901 = vadd.f32 0.0, %v2900
  %2902 = vmatmul.f32.gmra.mxu0 %v2866
  %v2903 = vpop.f32.mrf.mxu0
  %v2904 = vadd.f32 0.0, %v2903
  %2905 = vmatmul.f32.gmra.mxu0 %v2869
  %v2906 = vpop.f32.mrf.mxu0
  %v2907 = vadd.f32 0.0, %v2906
  %2908 = vdwg.mxu0
  %v2909 = vadd.f32 %v2580, %v2889
  %v2910 = vadd.f32 %v2581, %v2892
  %v2911 = vadd.f32 %v2582, %v2895
  %v2912 = vadd.f32 %v2583, %v2898
  %v2913 = vadd.f32 %v2584, %v2901
  %v2914 = vadd.f32 %v2585, %v2904
  %v2915 = vadd.f32 %v2586, %v2907
  %s2916 = scalar_lea.vmem %s1, 784
  %v2917 = vld [vmem:[%s2916] sm:$0xff]
  %v2918 = vld [vmem:[%s2916 + $0x8] sm:$0xff]
  %v2919 = vld [vmem:[%s2916 + $0x10] sm:$0xff]
  %v2920 = vld [vmem:[%s2916 + $0x18] sm:$0xff]
  %v2921 = vld [vmem:[%s2916 + $0x20] sm:$0xff]
  %v2922 = vld [vmem:[%s2916 + $0x28] sm:$0xff]
  %v2923 = vld [vmem:[%s2916 + $0x30] sm:$0xff]
  %v2924 = vld [vmem:[%s2916 + $0x38] sm:$0xff]
  %v2925 = vld [vmem:[%s2916 + $0x40] sm:$0xff]
  %v2926 = vld [vmem:[%s2916 + $0x48] sm:$0xff]
  %v2927 = vld [vmem:[%s2916 + $0x50] sm:$0xff]
  %v2928 = vld [vmem:[%s2916 + $0x58] sm:$0xff]
  %v2929 = vld [vmem:[%s2916 + $0x60] sm:$0xff]
  %v2930 = vld [vmem:[%s2916 + $0x68] sm:$0xff]
  %s2931 = scalar_lea.vmem %s5, 448
  %v2932 = vld [vmem:[%s2931] sm:$0xff]
  %v2933 = vld [vmem:[%s2931 + $0x8] sm:$0xff]
  %v2934 = vld [vmem:[%s2931 + $0x10] sm:$0xff]
  %v2935 = vld [vmem:[%s2931 + $0x18] sm:$0xff]
  %v2936 = vld [vmem:[%s2931 + $0x20] sm:$0xff]
  %v2937 = vld [vmem:[%s2931 + $0x28] sm:$0xff]
  %v2938 = vld [vmem:[%s2931 + $0x30] sm:$0xff]
  %v2939 = vld [vmem:[%s2931 + $0x38] sm:$0xff]
  %v2941 = vsel %vm663, %v2918, 0
  %v2944 = vsel %vm663, %v2920, 0
  %v2947 = vsel %vm663, %v2922, 0
  %v2950 = vsel %vm663, %v2924, 0
  %v2953 = vsel %vm663, %v2926, 0
  %v2956 = vsel %vm663, %v2928, 0
  %v2959 = vsel %vm663, %v2930, 0
  %2961 = vmatpush.msra.mxu0 %v600
  %2962 = vmatpush.msra.mxu0 %v599
  %2963 = vmatpush.msra.mxu0 %v598
  %2964 = vmatpush.msra.mxu0 %v597
  %2965 = vmatpush.msra.mxu0 %v596
  %2966 = vmatpush.msra.mxu0 %v595
  %2967 = vmatpush.msra.mxu0 %v594
  %2968 = vmatpush.msra.mxu0 %v593
  %2969 = vmatpush.msra.mxu0 %v592
  %2970 = vmatpush.msra.mxu0 %v591
  %2971 = vmatpush.msra.mxu0 %v590
  %2972 = vmatpush.msra.mxu0 %v589
  %2973 = vmatpush.msra.mxu0 %v588
  %2974 = vmatpush.msra.mxu0 %v587
  %2975 = vmatpush.msra.mxu0 %v586
  %2976 = vmatpush.msra.mxu0 %v585
  %2977 = vmatmul.f32.gmra.mxu0 %v2917
  %v2978 = vpop.f32.mrf.mxu0
  %v2979 = vadd.f32 0.0, %v2978
  %2980 = vmatmul.f32.gmra.mxu0 %v2919
  %v2981 = vpop.f32.mrf.mxu0
  %v2982 = vadd.f32 0.0, %v2981
  %2983 = vmatmul.f32.gmra.mxu0 %v2921
  %v2984 = vpop.f32.mrf.mxu0
  %v2985 = vadd.f32 0.0, %v2984
  %2986 = vmatmul.f32.gmra.mxu0 %v2923
  %v2987 = vpop.f32.mrf.mxu0
  %v2988 = vadd.f32 0.0, %v2987
  %2989 = vmatmul.f32.gmra.mxu0 %v2925
  %v2990 = vpop.f32.mrf.mxu0
  %v2991 = vadd.f32 0.0, %v2990
  %2992 = vmatmul.f32.gmra.mxu0 %v2927
  %v2993 = vpop.f32.mrf.mxu0
  %v2994 = vadd.f32 0.0, %v2993
  %2995 = vmatmul.f32.gmra.mxu0 %v2929
  %v2996 = vpop.f32.mrf.mxu0
  %v2997 = vadd.f32 0.0, %v2996
  %2998 = vdwg.mxu0
  %2999 = vmatpush.msra.mxu0 0.0
  %3000 = vmatpush.msra.mxu0 0.0
  %3001 = vmatpush.msra.mxu0 0.0
  %3002 = vmatpush.msra.mxu0 0.0
  %3003 = vmatpush.msra.mxu0 %v612
  %3004 = vmatpush.msra.mxu0 %v611
  %3005 = vmatpush.msra.mxu0 %v610
  %3006 = vmatpush.msra.mxu0 %v609
  %3007 = vmatpush.msra.mxu0 %v608
  %3008 = vmatpush.msra.mxu0 %v607
  %3009 = vmatpush.msra.mxu0 %v606
  %3010 = vmatpush.msra.mxu0 %v605
  %3011 = vmatpush.msra.mxu0 %v604
  %3012 = vmatpush.msra.mxu0 %v603
  %3013 = vmatpush.msra.mxu0 %v602
  %3014 = vmatpush.msra.mxu0 %v601
  %3015 = vmatmul.f32.gmra.mxu0 %v2941
  %v3016 = vpop.f32.mrf.mxu0
  %v3017 = vadd.f32 %v2979, %v3016
  %3018 = vmatmul.f32.gmra.mxu0 %v2944
  %v3019 = vpop.f32.mrf.mxu0
  %v3020 = vadd.f32 %v2982, %v3019
  %3021 = vmatmul.f32.gmra.mxu0 %v2947
  %v3022 = vpop.f32.mrf.mxu0
  %v3023 = vadd.f32 %v2985, %v3022
  %3024 = vmatmul.f32.gmra.mxu0 %v2950
  %v3025 = vpop.f32.mrf.mxu0
  %v3026 = vadd.f32 %v2988, %v3025
  %3027 = vmatmul.f32.gmra.mxu0 %v2953
  %v3028 = vpop.f32.mrf.mxu0
  %v3029 = vadd.f32 %v2991, %v3028
  %3030 = vmatmul.f32.gmra.mxu0 %v2956
  %v3031 = vpop.f32.mrf.mxu0
  %v3032 = vadd.f32 %v2994, %v3031
  %3033 = vmatmul.f32.gmra.mxu0 %v2959
  %v3034 = vpop.f32.mrf.mxu0
  %v3035 = vadd.f32 %v2997, %v3034
  %3036 = vdwg.mxu0
  %v3038 = vsel %vm958, %v3017, 0
  %v3041 = vsel %vm958, %v3020, 0
  %v3044 = vsel %vm958, %v3023, 0
  %v3047 = vsel %vm958, %v3026, 0
  %v3050 = vsel %vm958, %v3029, 0
  %v3053 = vsel %vm958, %v3032, 0
  %v3056 = vsel %vm958, %v3035, 0
  %3058 = vmatpush.msra.mxu0 0.0
  %3059 = vmatpush.msra.mxu0 0.0
  %3060 = vmatpush.msra.mxu0 0.0
  %3061 = vmatpush.msra.mxu0 0.0
  %3062 = vmatpush.msra.mxu0 0.0
  %3063 = vmatpush.msra.mxu0 0.0
  %3064 = vmatpush.msra.mxu0 0.0
  %3065 = vmatpush.msra.mxu0 0.0
  %3066 = vmatpush.msra.mxu0 %v2939
  %3067 = vmatpush.msra.mxu0 %v2938
  %3068 = vmatpush.msra.mxu0 %v2937
  %3069 = vmatpush.msra.mxu0 %v2936
  %3070 = vmatpush.msra.mxu0 %v2935
  %3071 = vmatpush.msra.mxu0 %v2934
  %3072 = vmatpush.msra.mxu0 %v2933
  %3073 = vmatpush.msra.mxu0 %v2932
  %3074 = vmatmul.f32.gmra.mxu0 %v3038
  %v3075 = vpop.f32.mrf.mxu0
  %v3076 = vadd.f32 0.0, %v3075
  %3077 = vmatmul.f32.gmra.mxu0 %v3041
  %v3078 = vpop.f32.mrf.mxu0
  %v3079 = vadd.f32 0.0, %v3078
  %3080 = vmatmul.f32.gmra.mxu0 %v3044
  %v3081 = vpop.f32.mrf.mxu0
  %v3082 = vadd.f32 0.0, %v3081
  %3083 = vmatmul.f32.gmra.mxu0 %v3047
  %v3084 = vpop.f32.mrf.mxu0
  %v3085 = vadd.f32 0.0, %v3084
  %3086 = vmatmul.f32.gmra.mxu0 %v3050
  %v3087 = vpop.f32.mrf.mxu0
  %v3088 = vadd.f32 0.0, %v3087
  %3089 = vmatmul.f32.gmra.mxu0 %v3053
  %v3090 = vpop.f32.mrf.mxu0
  %v3091 = vadd.f32 0.0, %v3090
  %3092 = vmatmul.f32.gmra.mxu0 %v3056
  %v3093 = vpop.f32.mrf.mxu0
  %v3094 = vadd.f32 0.0, %v3093
  %3095 = vdwg.mxu0
  %v3096 = vadd.f32 %v2767, %v3076
  %v3097 = vadd.f32 %v2768, %v3079
  %v3098 = vadd.f32 %v2769, %v3082
  %v3099 = vadd.f32 %v2770, %v3085
  %v3100 = vadd.f32 %v2771, %v3088
  %v3101 = vadd.f32 %v2772, %v3091
  %v3102 = vadd.f32 %v2773, %v3094
  %3103 = vmatpush.msra.mxu0 %v628
  %3104 = vmatpush.msra.mxu0 %v627
  %3105 = vmatpush.msra.mxu0 %v626
  %3106 = vmatpush.msra.mxu0 %v625
  %3107 = vmatpush.msra.mxu0 %v624
  %3108 = vmatpush.msra.mxu0 %v623
  %3109 = vmatpush.msra.mxu0 %v622
  %3110 = vmatpush.msra.mxu0 %v621
  %3111 = vmatpush.msra.mxu0 %v620
  %3112 = vmatpush.msra.mxu0 %v619
  %3113 = vmatpush.msra.mxu0 %v618
  %3114 = vmatpush.msra.mxu0 %v617
  %3115 = vmatpush.msra.mxu0 %v616
  %3116 = vmatpush.msra.mxu0 %v615
  %3117 = vmatpush.msra.mxu0 %v614
  %3118 = vmatpush.msra.mxu0 %v613
  %3119 = vmatmul.f32.gmra.mxu0 %v2917
  %v3120 = vpop.f32.mrf.mxu0
  %v3121 = vadd.f32 0.0, %v3120
  %3122 = vmatmul.f32.gmra.mxu0 %v2919
  %v3123 = vpop.f32.mrf.mxu0
  %v3124 = vadd.f32 0.0, %v3123
  %3125 = vmatmul.f32.gmra.mxu0 %v2921
  %v3126 = vpop.f32.mrf.mxu0
  %v3127 = vadd.f32 0.0, %v3126
  %3128 = vmatmul.f32.gmra.mxu0 %v2923
  %v3129 = vpop.f32.mrf.mxu0
  %v3130 = vadd.f32 0.0, %v3129
  %3131 = vmatmul.f32.gmra.mxu0 %v2925
  %v3132 = vpop.f32.mrf.mxu0
  %v3133 = vadd.f32 0.0, %v3132
  %3134 = vmatmul.f32.gmra.mxu0 %v2927
  %v3135 = vpop.f32.mrf.mxu0
  %v3136 = vadd.f32 0.0, %v3135
  %3137 = vmatmul.f32.gmra.mxu0 %v2929
  %v3138 = vpop.f32.mrf.mxu0
  %v3139 = vadd.f32 0.0, %v3138
  %3140 = vdwg.mxu0
  %3141 = vmatpush.msra.mxu0 0.0
  %3142 = vmatpush.msra.mxu0 0.0
  %3143 = vmatpush.msra.mxu0 0.0
  %3144 = vmatpush.msra.mxu0 0.0
  %3145 = vmatpush.msra.mxu0 %v640
  %3146 = vmatpush.msra.mxu0 %v639
  %3147 = vmatpush.msra.mxu0 %v638
  %3148 = vmatpush.msra.mxu0 %v637
  %3149 = vmatpush.msra.mxu0 %v636
  %3150 = vmatpush.msra.mxu0 %v635
  %3151 = vmatpush.msra.mxu0 %v634
  %3152 = vmatpush.msra.mxu0 %v633
  %3153 = vmatpush.msra.mxu0 %v632
  %3154 = vmatpush.msra.mxu0 %v631
  %3155 = vmatpush.msra.mxu0 %v630
  %3156 = vmatpush.msra.mxu0 %v629
  %3157 = vmatmul.f32.gmra.mxu0 %v2941
  %v3158 = vpop.f32.mrf.mxu0
  %v3159 = vadd.f32 %v3121, %v3158
  %3160 = vmatmul.f32.gmra.mxu0 %v2944
  %v3161 = vpop.f32.mrf.mxu0
  %v3162 = vadd.f32 %v3124, %v3161
  %3163 = vmatmul.f32.gmra.mxu0 %v2947
  %v3164 = vpop.f32.mrf.mxu0
  %v3165 = vadd.f32 %v3127, %v3164
  %3166 = vmatmul.f32.gmra.mxu0 %v2950
  %v3167 = vpop.f32.mrf.mxu0
  %v3168 = vadd.f32 %v3130, %v3167
  %3169 = vmatmul.f32.gmra.mxu0 %v2953
  %v3170 = vpop.f32.mrf.mxu0
  %v3171 = vadd.f32 %v3133, %v3170
  %3172 = vmatmul.f32.gmra.mxu0 %v2956
  %v3173 = vpop.f32.mrf.mxu0
  %v3174 = vadd.f32 %v3136, %v3173
  %3175 = vmatmul.f32.gmra.mxu0 %v2959
  %v3176 = vpop.f32.mrf.mxu0
  %v3177 = vadd.f32 %v3139, %v3176
  %3178 = vdwg.mxu0
  %v3180 = vsel %vm958, %v3159, 0
  %v3183 = vsel %vm958, %v3162, 0
  %v3186 = vsel %vm958, %v3165, 0
  %v3189 = vsel %vm958, %v3168, 0
  %v3192 = vsel %vm958, %v3171, 0
  %v3195 = vsel %vm958, %v3174, 0
  %v3198 = vsel %vm958, %v3177, 0
  %3200 = vmatpush.msra.mxu0 0.0
  %3201 = vmatpush.msra.mxu0 0.0
  %3202 = vmatpush.msra.mxu0 0.0
  %3203 = vmatpush.msra.mxu0 0.0
  %3204 = vmatpush.msra.mxu0 0.0
  %3205 = vmatpush.msra.mxu0 0.0
  %3206 = vmatpush.msra.mxu0 0.0
  %3207 = vmatpush.msra.mxu0 0.0
  %3208 = vmatpush.msra.mxu0 %v2939
  %3209 = vmatpush.msra.mxu0 %v2938
  %3210 = vmatpush.msra.mxu0 %v2937
  %3211 = vmatpush.msra.mxu0 %v2936
  %3212 = vmatpush.msra.mxu0 %v2935
  %3213 = vmatpush.msra.mxu0 %v2934
  %3214 = vmatpush.msra.mxu0 %v2933
  %3215 = vmatpush.msra.mxu0 %v2932
  %3216 = vmatmul.f32.gmra.mxu0 %v3180
  %v3217 = vpop.f32.mrf.mxu0
  %v3218 = vadd.f32 0.0, %v3217
  %3219 = vmatmul.f32.gmra.mxu0 %v3183
  %v3220 = vpop.f32.mrf.mxu0
  %v3221 = vadd.f32 0.0, %v3220
  %3222 = vmatmul.f32.gmra.mxu0 %v3186
  %v3223 = vpop.f32.mrf.mxu0
  %v3224 = vadd.f32 0.0, %v3223
  %3225 = vmatmul.f32.gmra.mxu0 %v3189
  %v3226 = vpop.f32.mrf.mxu0
  %v3227 = vadd.f32 0.0, %v3226
  %3228 = vmatmul.f32.gmra.mxu0 %v3192
  %v3229 = vpop.f32.mrf.mxu0
  %v3230 = vadd.f32 0.0, %v3229
  %3231 = vmatmul.f32.gmra.mxu0 %v3195
  %v3232 = vpop.f32.mrf.mxu0
  %v3233 = vadd.f32 0.0, %v3232
  %3234 = vmatmul.f32.gmra.mxu0 %v3198
  %v3235 = vpop.f32.mrf.mxu0
  %v3236 = vadd.f32 0.0, %v3235
  %3237 = vdwg.mxu0
  %v3238 = vadd.f32 %v2909, %v3218
  %v3239 = vadd.f32 %v2910, %v3221
  %v3240 = vadd.f32 %v2911, %v3224
  %v3241 = vadd.f32 %v2912, %v3227
  %v3242 = vadd.f32 %v2913, %v3230
  %v3243 = vadd.f32 %v2914, %v3233
  %v3244 = vadd.f32 %v2915, %v3236
  %s3245 = scalar_lea.vmem %s1, 896
  %v3246 = vld [vmem:[%s3245] sm:$0xff]
  %v3247 = vld [vmem:[%s3245 + $0x8] sm:$0xff]
  %v3248 = vld [vmem:[%s3245 + $0x10] sm:$0xff]
  %v3249 = vld [vmem:[%s3245 + $0x18] sm:$0xff]
  %v3250 = vld [vmem:[%s3245 + $0x20] sm:$0xff]
  %v3251 = vld [vmem:[%s3245 + $0x28] sm:$0xff]
  %v3252 = vld [vmem:[%s3245 + $0x30] sm:$0xff]
  %v3253 = vld [vmem:[%s3245 + $0x38] sm:$0xff]
  %v3254 = vld [vmem:[%s3245 + $0x40] sm:$0xff]
  %v3255 = vld [vmem:[%s3245 + $0x48] sm:$0xff]
  %v3256 = vld [vmem:[%s3245 + $0x50] sm:$0xff]
  %v3257 = vld [vmem:[%s3245 + $0x58] sm:$0xff]
  %v3258 = vld [vmem:[%s3245 + $0x60] sm:$0xff]
  %v3259 = vld [vmem:[%s3245 + $0x68] sm:$0xff]
  %s3260 = scalar_lea.vmem %s5, 512
  %v3261 = vld [vmem:[%s3260] sm:$0xff]
  %v3262 = vld [vmem:[%s3260 + $0x8] sm:$0xff]
  %v3263 = vld [vmem:[%s3260 + $0x10] sm:$0xff]
  %v3264 = vld [vmem:[%s3260 + $0x18] sm:$0xff]
  %v3265 = vld [vmem:[%s3260 + $0x20] sm:$0xff]
  %v3266 = vld [vmem:[%s3260 + $0x28] sm:$0xff]
  %v3267 = vld [vmem:[%s3260 + $0x30] sm:$0xff]
  %v3268 = vld [vmem:[%s3260 + $0x38] sm:$0xff]
  %v3270 = vsel %vm663, %v3247, 0
  %v3273 = vsel %vm663, %v3249, 0
  %v3276 = vsel %vm663, %v3251, 0
  %v3279 = vsel %vm663, %v3253, 0
  %v3282 = vsel %vm663, %v3255, 0
  %v3285 = vsel %vm663, %v3257, 0
  %v3288 = vsel %vm663, %v3259, 0
  %3290 = vmatpush.msra.mxu0 %v600
  %3291 = vmatpush.msra.mxu0 %v599
  %3292 = vmatpush.msra.mxu0 %v598
  %3293 = vmatpush.msra.mxu0 %v597
  %3294 = vmatpush.msra.mxu0 %v596
  %3295 = vmatpush.msra.mxu0 %v595
  %3296 = vmatpush.msra.mxu0 %v594
  %3297 = vmatpush.msra.mxu0 %v593
  %3298 = vmatpush.msra.mxu0 %v592
  %3299 = vmatpush.msra.mxu0 %v591
  %3300 = vmatpush.msra.mxu0 %v590
  %3301 = vmatpush.msra.mxu0 %v589
  %3302 = vmatpush.msra.mxu0 %v588
  %3303 = vmatpush.msra.mxu0 %v587
  %3304 = vmatpush.msra.mxu0 %v586
  %3305 = vmatpush.msra.mxu0 %v585
  %3306 = vmatmul.f32.gmra.mxu0 %v3246
  %v3307 = vpop.f32.mrf.mxu0
  %v3308 = vadd.f32 0.0, %v3307
  %3309 = vmatmul.f32.gmra.mxu0 %v3248
  %v3310 = vpop.f32.mrf.mxu0
  %v3311 = vadd.f32 0.0, %v3310
  %3312 = vmatmul.f32.gmra.mxu0 %v3250
  %v3313 = vpop.f32.mrf.mxu0
  %v3314 = vadd.f32 0.0, %v3313
  %3315 = vmatmul.f32.gmra.mxu0 %v3252
  %v3316 = vpop.f32.mrf.mxu0
  %v3317 = vadd.f32 0.0, %v3316
  %3318 = vmatmul.f32.gmra.mxu0 %v3254
  %v3319 = vpop.f32.mrf.mxu0
  %v3320 = vadd.f32 0.0, %v3319
  %3321 = vmatmul.f32.gmra.mxu0 %v3256
  %v3322 = vpop.f32.mrf.mxu0
  %v3323 = vadd.f32 0.0, %v3322
  %3324 = vmatmul.f32.gmra.mxu0 %v3258
  %v3325 = vpop.f32.mrf.mxu0
  %v3326 = vadd.f32 0.0, %v3325
  %3327 = vdwg.mxu0
  %3328 = vmatpush.msra.mxu0 0.0
  %3329 = vmatpush.msra.mxu0 0.0
  %3330 = vmatpush.msra.mxu0 0.0
  %3331 = vmatpush.msra.mxu0 0.0
  %3332 = vmatpush.msra.mxu0 %v612
  %3333 = vmatpush.msra.mxu0 %v611
  %3334 = vmatpush.msra.mxu0 %v610
  %3335 = vmatpush.msra.mxu0 %v609
  %3336 = vmatpush.msra.mxu0 %v608
  %3337 = vmatpush.msra.mxu0 %v607
  %3338 = vmatpush.msra.mxu0 %v606
  %3339 = vmatpush.msra.mxu0 %v605
  %3340 = vmatpush.msra.mxu0 %v604
  %3341 = vmatpush.msra.mxu0 %v603
  %3342 = vmatpush.msra.mxu0 %v602
  %3343 = vmatpush.msra.mxu0 %v601
  %3344 = vmatmul.f32.gmra.mxu0 %v3270
  %v3345 = vpop.f32.mrf.mxu0
  %v3346 = vadd.f32 %v3308, %v3345
  %3347 = vmatmul.f32.gmra.mxu0 %v3273
  %v3348 = vpop.f32.mrf.mxu0
  %v3349 = vadd.f32 %v3311, %v3348
  %3350 = vmatmul.f32.gmra.mxu0 %v3276
  %v3351 = vpop.f32.mrf.mxu0
  %v3352 = vadd.f32 %v3314, %v3351
  %3353 = vmatmul.f32.gmra.mxu0 %v3279
  %v3354 = vpop.f32.mrf.mxu0
  %v3355 = vadd.f32 %v3317, %v3354
  %3356 = vmatmul.f32.gmra.mxu0 %v3282
  %v3357 = vpop.f32.mrf.mxu0
  %v3358 = vadd.f32 %v3320, %v3357
  %3359 = vmatmul.f32.gmra.mxu0 %v3285
  %v3360 = vpop.f32.mrf.mxu0
  %v3361 = vadd.f32 %v3323, %v3360
  %3362 = vmatmul.f32.gmra.mxu0 %v3288
  %v3363 = vpop.f32.mrf.mxu0
  %v3364 = vadd.f32 %v3326, %v3363
  %3365 = vdwg.mxu0
  %v3367 = vsel %vm958, %v3346, 0
  %v3370 = vsel %vm958, %v3349, 0
  %v3373 = vsel %vm958, %v3352, 0
  %v3376 = vsel %vm958, %v3355, 0
  %v3379 = vsel %vm958, %v3358, 0
  %v3382 = vsel %vm958, %v3361, 0
  %v3385 = vsel %vm958, %v3364, 0
  %3387 = vmatpush.msra.mxu0 0.0
  %3388 = vmatpush.msra.mxu0 0.0
  %3389 = vmatpush.msra.mxu0 0.0
  %3390 = vmatpush.msra.mxu0 0.0
  %3391 = vmatpush.msra.mxu0 0.0
  %3392 = vmatpush.msra.mxu0 0.0
  %3393 = vmatpush.msra.mxu0 0.0
  %3394 = vmatpush.msra.mxu0 0.0
  %3395 = vmatpush.msra.mxu0 %v3268
  %3396 = vmatpush.msra.mxu0 %v3267
  %3397 = vmatpush.msra.mxu0 %v3266
  %3398 = vmatpush.msra.mxu0 %v3265
  %3399 = vmatpush.msra.mxu0 %v3264
  %3400 = vmatpush.msra.mxu0 %v3263
  %3401 = vmatpush.msra.mxu0 %v3262
  %3402 = vmatpush.msra.mxu0 %v3261
  %3403 = vmatmul.f32.gmra.mxu0 %v3367
  %v3404 = vpop.f32.mrf.mxu0
  %v3405 = vadd.f32 0.0, %v3404
  %3406 = vmatmul.f32.gmra.mxu0 %v3370
  %v3407 = vpop.f32.mrf.mxu0
  %v3408 = vadd.f32 0.0, %v3407
  %3409 = vmatmul.f32.gmra.mxu0 %v3373
  %v3410 = vpop.f32.mrf.mxu0
  %v3411 = vadd.f32 0.0, %v3410
  %3412 = vmatmul.f32.gmra.mxu0 %v3376
  %v3413 = vpop.f32.mrf.mxu0
  %v3414 = vadd.f32 0.0, %v3413
  %3415 = vmatmul.f32.gmra.mxu0 %v3379
  %v3416 = vpop.f32.mrf.mxu0
  %v3417 = vadd.f32 0.0, %v3416
  %3418 = vmatmul.f32.gmra.mxu0 %v3382
  %v3419 = vpop.f32.mrf.mxu0
  %v3420 = vadd.f32 0.0, %v3419
  %3421 = vmatmul.f32.gmra.mxu0 %v3385
  %v3422 = vpop.f32.mrf.mxu0
  %v3423 = vadd.f32 0.0, %v3422
  %3424 = vdwg.mxu0
  %v3425 = vadd.f32 %v3096, %v3405
  %v3426 = vadd.f32 %v3097, %v3408
  %v3427 = vadd.f32 %v3098, %v3411
  %v3428 = vadd.f32 %v3099, %v3414
  %v3429 = vadd.f32 %v3100, %v3417
  %v3430 = vadd.f32 %v3101, %v3420
  %v3431 = vadd.f32 %v3102, %v3423
  %3432 = vmatpush.msra.mxu0 %v628
  %3433 = vmatpush.msra.mxu0 %v627
  %3434 = vmatpush.msra.mxu0 %v626
  %3435 = vmatpush.msra.mxu0 %v625
  %3436 = vmatpush.msra.mxu0 %v624
  %3437 = vmatpush.msra.mxu0 %v623
  %3438 = vmatpush.msra.mxu0 %v622
  %3439 = vmatpush.msra.mxu0 %v621
  %3440 = vmatpush.msra.mxu0 %v620
  %3441 = vmatpush.msra.mxu0 %v619
  %3442 = vmatpush.msra.mxu0 %v618
  %3443 = vmatpush.msra.mxu0 %v617
  %3444 = vmatpush.msra.mxu0 %v616
  %3445 = vmatpush.msra.mxu0 %v615
  %3446 = vmatpush.msra.mxu0 %v614
  %3447 = vmatpush.msra.mxu0 %v613
  %3448 = vmatmul.f32.gmra.mxu0 %v3246
  %v3449 = vpop.f32.mrf.mxu0
  %v3450 = vadd.f32 0.0, %v3449
  %3451 = vmatmul.f32.gmra.mxu0 %v3248
  %v3452 = vpop.f32.mrf.mxu0
  %v3453 = vadd.f32 0.0, %v3452
  %3454 = vmatmul.f32.gmra.mxu0 %v3250
  %v3455 = vpop.f32.mrf.mxu0
  %v3456 = vadd.f32 0.0, %v3455
  %3457 = vmatmul.f32.gmra.mxu0 %v3252
  %v3458 = vpop.f32.mrf.mxu0
  %v3459 = vadd.f32 0.0, %v3458
  %3460 = vmatmul.f32.gmra.mxu0 %v3254
  %v3461 = vpop.f32.mrf.mxu0
  %v3462 = vadd.f32 0.0, %v3461
  %3463 = vmatmul.f32.gmra.mxu0 %v3256
  %v3464 = vpop.f32.mrf.mxu0
  %v3465 = vadd.f32 0.0, %v3464
  %3466 = vmatmul.f32.gmra.mxu0 %v3258
  %v3467 = vpop.f32.mrf.mxu0
  %v3468 = vadd.f32 0.0, %v3467
  %3469 = vdwg.mxu0
  %3470 = vmatpush.msra.mxu0 0.0
  %3471 = vmatpush.msra.mxu0 0.0
  %3472 = vmatpush.msra.mxu0 0.0
  %3473 = vmatpush.msra.mxu0 0.0
  %3474 = vmatpush.msra.mxu0 %v640
  %3475 = vmatpush.msra.mxu0 %v639
  %3476 = vmatpush.msra.mxu0 %v638
  %3477 = vmatpush.msra.mxu0 %v637
  %3478 = vmatpush.msra.mxu0 %v636
  %3479 = vmatpush.msra.mxu0 %v635
  %3480 = vmatpush.msra.mxu0 %v634
  %3481 = vmatpush.msra.mxu0 %v633
  %3482 = vmatpush.msra.mxu0 %v632
  %3483 = vmatpush.msra.mxu0 %v631
  %3484 = vmatpush.msra.mxu0 %v630
  %3485 = vmatpush.msra.mxu0 %v629
  %3486 = vmatmul.f32.gmra.mxu0 %v3270
  %v3487 = vpop.f32.mrf.mxu0
  %v3488 = vadd.f32 %v3450, %v3487
  %3489 = vmatmul.f32.gmra.mxu0 %v3273
  %v3490 = vpop.f32.mrf.mxu0
  %v3491 = vadd.f32 %v3453, %v3490
  %3492 = vmatmul.f32.gmra.mxu0 %v3276
  %v3493 = vpop.f32.mrf.mxu0
  %v3494 = vadd.f32 %v3456, %v3493
  %3495 = vmatmul.f32.gmra.mxu0 %v3279
  %v3496 = vpop.f32.mrf.mxu0
  %v3497 = vadd.f32 %v3459, %v3496
  %3498 = vmatmul.f32.gmra.mxu0 %v3282
  %v3499 = vpop.f32.mrf.mxu0
  %v3500 = vadd.f32 %v3462, %v3499
  %3501 = vmatmul.f32.gmra.mxu0 %v3285
  %v3502 = vpop.f32.mrf.mxu0
  %v3503 = vadd.f32 %v3465, %v3502
  %3504 = vmatmul.f32.gmra.mxu0 %v3288
  %v3505 = vpop.f32.mrf.mxu0
  %v3506 = vadd.f32 %v3468, %v3505
  %3507 = vdwg.mxu0
  %v3509 = vsel %vm958, %v3488, 0
  %v3512 = vsel %vm958, %v3491, 0
  %v3515 = vsel %vm958, %v3494, 0
  %v3518 = vsel %vm958, %v3497, 0
  %v3521 = vsel %vm958, %v3500, 0
  %v3524 = vsel %vm958, %v3503, 0
  %v3527 = vsel %vm958, %v3506, 0
  %3529 = vmatpush.msra.mxu0 0.0
  %3530 = vmatpush.msra.mxu0 0.0
  %3531 = vmatpush.msra.mxu0 0.0
  %3532 = vmatpush.msra.mxu0 0.0
  %3533 = vmatpush.msra.mxu0 0.0
  %3534 = vmatpush.msra.mxu0 0.0
  %3535 = vmatpush.msra.mxu0 0.0
  %3536 = vmatpush.msra.mxu0 0.0
  %3537 = vmatpush.msra.mxu0 %v3268
  %3538 = vmatpush.msra.mxu0 %v3267
  %3539 = vmatpush.msra.mxu0 %v3266
  %3540 = vmatpush.msra.mxu0 %v3265
  %3541 = vmatpush.msra.mxu0 %v3264
  %3542 = vmatpush.msra.mxu0 %v3263
  %3543 = vmatpush.msra.mxu0 %v3262
  %3544 = vmatpush.msra.mxu0 %v3261
  %3545 = vmatmul.f32.gmra.mxu0 %v3509
  %v3546 = vpop.f32.mrf.mxu0
  %v3547 = vadd.f32 0.0, %v3546
  %3548 = vmatmul.f32.gmra.mxu0 %v3512
  %v3549 = vpop.f32.mrf.mxu0
  %v3550 = vadd.f32 0.0, %v3549
  %3551 = vmatmul.f32.gmra.mxu0 %v3515
  %v3552 = vpop.f32.mrf.mxu0
  %v3553 = vadd.f32 0.0, %v3552
  %3554 = vmatmul.f32.gmra.mxu0 %v3518
  %v3555 = vpop.f32.mrf.mxu0
  %v3556 = vadd.f32 0.0, %v3555
  %3557 = vmatmul.f32.gmra.mxu0 %v3521
  %v3558 = vpop.f32.mrf.mxu0
  %v3559 = vadd.f32 0.0, %v3558
  %3560 = vmatmul.f32.gmra.mxu0 %v3524
  %v3561 = vpop.f32.mrf.mxu0
  %v3562 = vadd.f32 0.0, %v3561
  %3563 = vmatmul.f32.gmra.mxu0 %v3527
  %v3564 = vpop.f32.mrf.mxu0
  %v3565 = vadd.f32 0.0, %v3564
  %3566 = vdwg.mxu0
  %v3567 = vadd.f32 %v3238, %v3547
  %v3568 = vadd.f32 %v3239, %v3550
  %v3569 = vadd.f32 %v3240, %v3553
  %v3570 = vadd.f32 %v3241, %v3556
  %v3571 = vadd.f32 %v3242, %v3559
  %v3572 = vadd.f32 %v3243, %v3562
  %v3573 = vadd.f32 %v3244, %v3565
  %v3574 = vld [vmem:[%s6] sm:$0x1]
  %v3575 = vlaneseq
  %v3576 = vshrl.u32 %v3575, 7
  %v3577 = vadd.s32 %v3576, 8
  %v3578 = vadd.s32 %v3576, 16
  %v3579 = vadd.s32 %v3576, 24
  %v3580 = vadd.s32 %v3576, 32
  %v3581 = vadd.s32 %v3576, 40
  %v3582 = vadd.s32 %v3576, 48
  %v3583 = vand.u32 %v3576, 7
  %v3584 = vand.u32 %v3577, 7
  %v3585 = vand.u32 %v3578, 7
  %v3586 = vand.u32 %v3579, 7
  %v3587 = vand.u32 %v3580, 7
  %v3588 = vand.u32 %v3581, 7
  %v3589 = vand.u32 %v3582, 7
  %vm3590 = vcmp.lt.s32.totalorder %v3583, 7
  %vm3591 = vcmp.lt.s32.totalorder %v3584, 7
  %vm3592 = vcmp.lt.s32.totalorder %v3585, 7
  %vm3593 = vcmp.lt.s32.totalorder %v3586, 7
  %vm3594 = vcmp.lt.s32.totalorder %v3587, 7
  %vm3595 = vcmp.lt.s32.totalorder %v3588, 7
  %vm3596 = vcmp.lt.s32.totalorder %v3589, 7
  %v3597 = vsel %vm3590, 1.0, 0.0
  %v3598 = vsel %vm3591, 1.0, 0.0
  %v3599 = vsel %vm3592, 1.0, 0.0
  %v3600 = vsel %vm3593, 1.0, 0.0
  %v3601 = vsel %vm3594, 1.0, 0.0
  %v3602 = vsel %vm3595, 1.0, 0.0
  %v3603 = vsel %vm3596, 1.0, 0.0
  %v3605 = vperm.slane %v3574, 0
  %v3607 = vadd.f32 %v3425, %v3605
  %v3608 = vadd.f32 %v3426, %v3605
  %v3609 = vadd.f32 %v3427, %v3605
  %v3610 = vadd.f32 %v3428, %v3605
  %v3611 = vadd.f32 %v3429, %v3605
  %v3612 = vadd.f32 %v3430, %v3605
  %v3613 = vadd.f32 %v3431, %v3605
  %v3614 = vmul.f32 %v3607, %v3597
  %v3615 = vmul.f32 %v3608, %v3598
  %v3616 = vmul.f32 %v3609, %v3599
  %v3617 = vmul.f32 %v3610, %v3600
  %v3618 = vmul.f32 %v3611, %v3601
  %v3619 = vmul.f32 %v3612, %v3602
  %v3620 = vmul.f32 %v3613, %v3603
  %v3621 = vsel %vm958, %v3614, 0.0
  %v3622 = vsel %vm958, %v3615, 0.0
  %v3623 = vadd.f32 %v3621, %v3622
  %v3624 = vsel %vm958, %v3616, 0.0
  %v3625 = vadd.f32 %v3623, %v3624
  %v3626 = vsel %vm958, %v3617, 0.0
  %v3627 = vadd.f32 %v3625, %v3626
  %v3628 = vsel %vm958, %v3618, 0.0
  %v3629 = vadd.f32 %v3627, %v3628
  %v3630 = vsel %vm958, %v3619, 0.0
  %v3631 = vadd.f32 %v3629, %v3630
  %v3632 = vsel %vm958, %v3620, 0.0
  %v3633 = vadd.f32 %v3631, %v3632
  %v3634 = vrot.slane %v3633, 4
  %v3635 = vadd.f32 %v3633, %v3634
  %v3636 = vrot.slane %v3635, 2
  %v3637 = vadd.f32 %v3635, %v3636
  %v3638 = vrot.slane %v3637, 1
  %v3639 = vadd.f32 %v3637, %v3638
  %v3640 = vmul.f32 %v3614, %v3607
  %v3641 = vmul.f32 %v3615, %v3608
  %v3642 = vmul.f32 %v3616, %v3609
  %v3643 = vmul.f32 %v3617, %v3610
  %v3644 = vmul.f32 %v3618, %v3611
  %v3645 = vmul.f32 %v3619, %v3612
  %v3646 = vmul.f32 %v3620, %v3613
  %v3647 = vsel %vm958, %v3640, 0.0
  %v3648 = vsel %vm958, %v3641, 0.0
  %v3649 = vadd.f32 %v3647, %v3648
  %v3650 = vsel %vm958, %v3642, 0.0
  %v3651 = vadd.f32 %v3649, %v3650
  %v3652 = vsel %vm958, %v3643, 0.0
  %v3653 = vadd.f32 %v3651, %v3652
  %v3654 = vsel %vm958, %v3644, 0.0
  %v3655 = vadd.f32 %v3653, %v3654
  %v3656 = vsel %vm958, %v3645, 0.0
  %v3657 = vadd.f32 %v3655, %v3656
  %v3658 = vsel %vm958, %v3646, 0.0
  %v3659 = vadd.f32 %v3657, %v3658
  %v3660 = vrot.slane %v3659, 4
  %v3661 = vadd.f32 %v3659, %v3660
  %v3662 = vrot.slane %v3661, 2
  %v3663 = vadd.f32 %v3661, %v3662
  %v3664 = vrot.slane %v3663, 1
  %v3665 = vadd.f32 %v3663, %v3664
  %v3666 = vadd.f32 %v3567, %v3605
  %v3667 = vadd.f32 %v3568, %v3605
  %v3668 = vadd.f32 %v3569, %v3605
  %v3669 = vadd.f32 %v3570, %v3605
  %v3670 = vadd.f32 %v3571, %v3605
  %v3671 = vadd.f32 %v3572, %v3605
  %v3672 = vadd.f32 %v3573, %v3605
  %v3673 = vmul.f32 %v3666, %v3597
  %v3674 = vmul.f32 %v3667, %v3598
  %v3675 = vmul.f32 %v3668, %v3599
  %v3676 = vmul.f32 %v3669, %v3600
  %v3677 = vmul.f32 %v3670, %v3601
  %v3678 = vmul.f32 %v3671, %v3602
  %v3679 = vmul.f32 %v3672, %v3603
  %v3680 = vsel %vm958, %v3673, 0.0
  %v3681 = vsel %vm958, %v3674, 0.0
  %v3682 = vadd.f32 %v3680, %v3681
  %v3683 = vsel %vm958, %v3675, 0.0
  %v3684 = vadd.f32 %v3682, %v3683
  %v3685 = vsel %vm958, %v3676, 0.0
  %v3686 = vadd.f32 %v3684, %v3685
  %v3687 = vsel %vm958, %v3677, 0.0
  %v3688 = vadd.f32 %v3686, %v3687
  %v3689 = vsel %vm958, %v3678, 0.0
  %v3690 = vadd.f32 %v3688, %v3689
  %v3691 = vsel %vm958, %v3679, 0.0
  %v3692 = vadd.f32 %v3690, %v3691
  %v3693 = vrot.slane %v3692, 4
  %v3694 = vadd.f32 %v3692, %v3693
  %v3695 = vrot.slane %v3694, 2
  %v3696 = vadd.f32 %v3694, %v3695
  %v3697 = vrot.slane %v3696, 1
  %v3698 = vadd.f32 %v3696, %v3697
  %v3699 = vmul.f32 %v3673, %v3666
  %v3700 = vmul.f32 %v3674, %v3667
  %v3701 = vmul.f32 %v3675, %v3668
  %v3702 = vmul.f32 %v3676, %v3669
  %v3703 = vmul.f32 %v3677, %v3670
  %v3704 = vmul.f32 %v3678, %v3671
  %v3705 = vmul.f32 %v3679, %v3672
  %v3706 = vsel %vm958, %v3699, 0.0
  %v3707 = vsel %vm958, %v3700, 0.0
  %v3708 = vadd.f32 %v3706, %v3707
  %v3709 = vsel %vm958, %v3701, 0.0
  %v3710 = vadd.f32 %v3708, %v3709
  %v3711 = vsel %vm958, %v3702, 0.0
  %v3712 = vadd.f32 %v3710, %v3711
  %v3713 = vsel %vm958, %v3703, 0.0
  %v3714 = vadd.f32 %v3712, %v3713
  %v3715 = vsel %vm958, %v3704, 0.0
  %v3716 = vadd.f32 %v3714, %v3715
  %v3717 = vsel %vm958, %v3705, 0.0
  %v3718 = vadd.f32 %v3716, %v3717
  %v3719 = vrot.slane %v3718, 4
  %v3720 = vadd.f32 %v3718, %v3719
  %v3721 = vrot.slane %v3720, 2
  %v3722 = vadd.f32 %v3720, %v3721
  %v3723 = vrot.slane %v3722, 1
  %v3724 = vadd.f32 %v3722, %v3723
  %v3725 = vadd.f32 %v3639, %v3698
  %v3726 = vadd.f32 %v3665, %v3724
  %v3727 = vmul.f32 %v3725, 0.010204081
  %v3728 = vmul.f32 %v3726, 0.010204081
  %v3729 = vmul.f32 %v3727, %v3727
  %v3730 = vsub.f32 %v3728, %v3729
  %v3731 = vmax.f32 %v3730, 0.0
  %v3732 = vld [vmem:[%s7] sm:$0x1]
  %v3733 = vadd.f32 %v3731, 1e-05
  %v3734 = vrsqrt.pop %v3733
  %v3735 = vmul.f32 %v3734, %v3733
  %v3736 = vmul.f32 %v3735, %v3734
  %v3737 = vmul.f32 0.5, %v3736
  %v3738 = vsub.f32 1.5, %v3737
  %v3739 = vmul.f32 %v3734, %v3738
  %vm3740 = vweird.f32 %v3733
  %vm3741 = vweird.f32 %v3734
  %vm3742 = vmor %vm3740, %vm3741
  %v3743 = vsel %vm3742, %v3734, %v3739
  %v3744 = vmul.f32 %v3732, %v3743
  %v3745 = vld [vmem:[%s8] sm:$0x1]
  %v3746 = vmul.f32 %v3727, %v3744
  %v3747 = vsub.f32 %v3745, %v3746
  %v3749 = vperm.slane %v3744, 0
  %v3751 = vmul.f32 %v3607, %v3749
  %v3752 = vmul.f32 %v3608, %v3749
  %v3753 = vmul.f32 %v3609, %v3749
  %v3754 = vmul.f32 %v3610, %v3749
  %v3755 = vmul.f32 %v3611, %v3749
  %v3756 = vmul.f32 %v3612, %v3749
  %v3757 = vmul.f32 %v3613, %v3749
  %v3759 = vperm.slane %v3747, 0
  %v3761 = vadd.f32 %v3751, %v3759
  %v3762 = vadd.f32 %v3752, %v3759
  %v3763 = vadd.f32 %v3753, %v3759
  %v3764 = vadd.f32 %v3754, %v3759
  %v3765 = vadd.f32 %v3755, %v3759
  %v3766 = vadd.f32 %v3756, %v3759
  %v3767 = vadd.f32 %v3757, %v3759
  %vm3768 = vcmp.gt.f32.partialorder %v3761, 0.0
  %vm3769 = vcmp.gt.f32.partialorder %v3762, 0.0
  %vm3770 = vcmp.gt.f32.partialorder %v3763, 0.0
  %vm3771 = vcmp.gt.f32.partialorder %v3764, 0.0
  %vm3772 = vcmp.gt.f32.partialorder %v3765, 0.0
  %vm3773 = vcmp.gt.f32.partialorder %v3766, 0.0
  %vm3774 = vcmp.gt.f32.partialorder %v3767, 0.0
  %v3775 = vmul.f32 %v3761, 0.01
  %v3776 = vmul.f32 %v3762, 0.01
  %v3777 = vmul.f32 %v3763, 0.01
  %v3778 = vmul.f32 %v3764, 0.01
  %v3779 = vmul.f32 %v3765, 0.01
  %v3780 = vmul.f32 %v3766, 0.01
  %v3781 = vmul.f32 %v3767, 0.01
  %v3782 = vsel %vm3768, %v3761, %v3775
  %v3783 = vsel %vm3769, %v3762, %v3776
  %v3784 = vsel %vm3770, %v3763, %v3777
  %v3785 = vsel %vm3771, %v3764, %v3778
  %v3786 = vsel %vm3772, %v3765, %v3779
  %v3787 = vsel %vm3773, %v3766, %v3780
  %v3788 = vsel %vm3774, %v3767, %v3781
  %v3789 = vmul.f32 %v3666, %v3749
  %v3790 = vmul.f32 %v3667, %v3749
  %v3791 = vmul.f32 %v3668, %v3749
  %v3792 = vmul.f32 %v3669, %v3749
  %v3793 = vmul.f32 %v3670, %v3749
  %v3794 = vmul.f32 %v3671, %v3749
  %v3795 = vmul.f32 %v3672, %v3749
  %v3796 = vadd.f32 %v3789, %v3759
  %v3797 = vadd.f32 %v3790, %v3759
  %v3798 = vadd.f32 %v3791, %v3759
  %v3799 = vadd.f32 %v3792, %v3759
  %v3800 = vadd.f32 %v3793, %v3759
  %v3801 = vadd.f32 %v3794, %v3759
  %v3802 = vadd.f32 %v3795, %v3759
  %vm3803 = vcmp.gt.f32.partialorder %v3796, 0.0
  %vm3804 = vcmp.gt.f32.partialorder %v3797, 0.0
  %vm3805 = vcmp.gt.f32.partialorder %v3798, 0.0
  %vm3806 = vcmp.gt.f32.partialorder %v3799, 0.0
  %vm3807 = vcmp.gt.f32.partialorder %v3800, 0.0
  %vm3808 = vcmp.gt.f32.partialorder %v3801, 0.0
  %vm3809 = vcmp.gt.f32.partialorder %v3802, 0.0
  %v3810 = vmul.f32 %v3796, 0.01
  %v3811 = vmul.f32 %v3797, 0.01
  %v3812 = vmul.f32 %v3798, 0.01
  %v3813 = vmul.f32 %v3799, 0.01
  %v3814 = vmul.f32 %v3800, 0.01
  %v3815 = vmul.f32 %v3801, 0.01
  %v3816 = vmul.f32 %v3802, 0.01
  %v3817 = vsel %vm3803, %v3796, %v3810
  %v3818 = vsel %vm3804, %v3797, %v3811
  %v3819 = vsel %vm3805, %v3798, %v3812
  %v3820 = vsel %vm3806, %v3799, %v3813
  %v3821 = vsel %vm3807, %v3800, %v3814
  %v3822 = vsel %vm3808, %v3801, %v3815
  %v3823 = vsel %vm3809, %v3802, %v3816
  %v3824 = vld [vmem:[%s2] sm:$0xff]
  %v3825 = vld [vmem:[%s2 + $0x8] sm:$0xff]
  %v3826 = vld [vmem:[%s9] sm:$0xff]
  %v3827 = vld [vmem:[%s9 + $0x8] sm:$0xff]
  %v3828 = vld [vmem:[%s9 + $0x10] sm:$0xff]
  %v3829 = vld [vmem:[%s9 + $0x18] sm:$0xff]
  %v3830 = vld [vmem:[%s9 + $0x20] sm:$0xff]
  %v3831 = vld [vmem:[%s9 + $0x28] sm:$0xff]
  %v3832 = vld [vmem:[%s9 + $0x30] sm:$0xff]
  %v3833 = vld [vmem:[%s9 + $0x38] sm:$0xff]
  %vm3834 = vcmask 457728
  %v3836 = vsel %vm3834, %v3824, 0
  %v3839 = vsel %vm3834, %v3825, 0
  %3841 = vmatpush.msra.mxu0 0.0
  %3842 = vmatpush.msra.mxu0 0.0
  %3843 = vmatpush.msra.mxu0 0.0
  %3844 = vmatpush.msra.mxu0 0.0
  %3845 = vmatpush.msra.mxu0 0.0
  %3846 = vmatpush.msra.mxu0 0.0
  %3847 = vmatpush.msra.mxu0 0.0
  %3848 = vmatpush.msra.mxu0 0.0
  %3849 = vmatpush.msra.mxu0 0.0
  %3850 = vmatpush.msra.mxu0 %v3788
  %3851 = vmatpush.msra.mxu0 %v3787
  %3852 = vmatpush.msra.mxu0 %v3786
  %3853 = vmatpush.msra.mxu0 %v3785
  %3854 = vmatpush.msra.mxu0 %v3784
  %3855 = vmatpush.msra.mxu0 %v3783
  %3856 = vmatpush.msra.mxu0 %v3782
  %3857 = vmatmul.f32.gmra.mxu0 %v3836
  %v3858 = vpop.f32.mrf.mxu0
  %v3859 = vadd.f32 0.0, %v3858
  %3860 = vmatmul.f32.gmra.mxu0 %v3839
  %v3861 = vpop.f32.mrf.mxu0
  %v3862 = vadd.f32 0.0, %v3861
  %3863 = vdwg.mxu0
  %3864 = vmatpush.msra.mxu0 0.0
  %3865 = vmatpush.msra.mxu0 0.0
  %3866 = vmatpush.msra.mxu0 0.0
  %3867 = vmatpush.msra.mxu0 0.0
  %3868 = vmatpush.msra.mxu0 0.0
  %3869 = vmatpush.msra.mxu0 0.0
  %3870 = vmatpush.msra.mxu0 0.0
  %3871 = vmatpush.msra.mxu0 0.0
  %3872 = vmatpush.msra.mxu0 0.0
  %3873 = vmatpush.msra.mxu0 %v3823
  %3874 = vmatpush.msra.mxu0 %v3822
  %3875 = vmatpush.msra.mxu0 %v3821
  %3876 = vmatpush.msra.mxu0 %v3820
  %3877 = vmatpush.msra.mxu0 %v3819
  %3878 = vmatpush.msra.mxu0 %v3818
  %3879 = vmatpush.msra.mxu0 %v3817
  %3880 = vmatmul.f32.gmra.mxu0 %v3836
  %v3881 = vpop.f32.mrf.mxu0
  %v3882 = vadd.f32 0.0, %v3881
  %3883 = vmatmul.f32.gmra.mxu0 %v3839
  %v3884 = vpop.f32.mrf.mxu0
  %v3885 = vadd.f32 0.0, %v3884
  %3886 = vdwg.mxu0
  %s3887 = scalar_lea.vmem %s2, 16
  %v3888 = vld [vmem:[%s3887] sm:$0xff]
  %v3889 = vld [vmem:[%s3887 + $0x8] sm:$0xff]
  %s3890 = scalar_lea.vmem %s9, 64
  %v3891 = vld [vmem:[%s3890] sm:$0xff]
  %v3892 = vld [vmem:[%s3890 + $0x8] sm:$0xff]
  %v3893 = vld [vmem:[%s3890 + $0x10] sm:$0xff]
  %v3894 = vld [vmem:[%s3890 + $0x18] sm:$0xff]
  %v3895 = vld [vmem:[%s3890 + $0x20] sm:$0xff]
  %v3896 = vld [vmem:[%s3890 + $0x28] sm:$0xff]
  %v3897 = vld [vmem:[%s3890 + $0x30] sm:$0xff]
  %v3898 = vld [vmem:[%s3890 + $0x38] sm:$0xff]
  %v3900 = vsel %vm3834, %v3888, 0
  %v3903 = vsel %vm3834, %v3889, 0
  %3905 = vmatpush.msra.mxu0 0.0
  %3906 = vmatpush.msra.mxu0 0.0
  %3907 = vmatpush.msra.mxu0 0.0
  %3908 = vmatpush.msra.mxu0 0.0
  %3909 = vmatpush.msra.mxu0 0.0
  %3910 = vmatpush.msra.mxu0 0.0
  %3911 = vmatpush.msra.mxu0 0.0
  %3912 = vmatpush.msra.mxu0 0.0
  %3913 = vmatpush.msra.mxu0 0.0
  %3914 = vmatpush.msra.mxu0 %v3788
  %3915 = vmatpush.msra.mxu0 %v3787
  %3916 = vmatpush.msra.mxu0 %v3786
  %3917 = vmatpush.msra.mxu0 %v3785
  %3918 = vmatpush.msra.mxu0 %v3784
  %3919 = vmatpush.msra.mxu0 %v3783
  %3920 = vmatpush.msra.mxu0 %v3782
  %3921 = vmatmul.f32.gmra.mxu0 %v3900
  %v3922 = vpop.f32.mrf.mxu0
  %v3923 = vadd.f32 0.0, %v3922
  %3924 = vmatmul.f32.gmra.mxu0 %v3903
  %v3925 = vpop.f32.mrf.mxu0
  %v3926 = vadd.f32 0.0, %v3925
  %3927 = vdwg.mxu0
  %v3929 = vsel %vm958, %v3923, 0
  %v3932 = vsel %vm958, %v3926, 0
  %3934 = vmatpush.msra.mxu0 0.0
  %3935 = vmatpush.msra.mxu0 0.0
  %3936 = vmatpush.msra.mxu0 0.0
  %3937 = vmatpush.msra.mxu0 0.0
  %3938 = vmatpush.msra.mxu0 0.0
  %3939 = vmatpush.msra.mxu0 0.0
  %3940 = vmatpush.msra.mxu0 0.0
  %3941 = vmatpush.msra.mxu0 0.0
  %3942 = vmatpush.msra.mxu0 %v3898
  %3943 = vmatpush.msra.mxu0 %v3897
  %3944 = vmatpush.msra.mxu0 %v3896
  %3945 = vmatpush.msra.mxu0 %v3895
  %3946 = vmatpush.msra.mxu0 %v3894
  %3947 = vmatpush.msra.mxu0 %v3893
  %3948 = vmatpush.msra.mxu0 %v3892
  %3949 = vmatpush.msra.mxu0 %v3891
  %3950 = vmatmul.f32.gmra.mxu0 %v3929
  %v3951 = vpop.f32.mrf.mxu0
  %v3952 = vadd.f32 0.0, %v3951
  %3953 = vmatmul.f32.gmra.mxu0 %v3932
  %v3954 = vpop.f32.mrf.mxu0
  %v3955 = vadd.f32 0.0, %v3954
  %3956 = vdwg.mxu0
  %v3958 = vsel %vm958, %v3859, 0
  %v3961 = vsel %vm958, %v3862, 0
  %3963 = vmatpush.msra.mxu0 0.0
  %3964 = vmatpush.msra.mxu0 0.0
  %3965 = vmatpush.msra.mxu0 0.0
  %3966 = vmatpush.msra.mxu0 0.0
  %3967 = vmatpush.msra.mxu0 0.0
  %3968 = vmatpush.msra.mxu0 0.0
  %3969 = vmatpush.msra.mxu0 0.0
  %3970 = vmatpush.msra.mxu0 0.0
  %3971 = vmatpush.msra.mxu0 %v3833
  %3972 = vmatpush.msra.mxu0 %v3832
  %3973 = vmatpush.msra.mxu0 %v3831
  %3974 = vmatpush.msra.mxu0 %v3830
  %3975 = vmatpush.msra.mxu0 %v3829
  %3976 = vmatpush.msra.mxu0 %v3828
  %3977 = vmatpush.msra.mxu0 %v3827
  %3978 = vmatpush.msra.mxu0 %v3826
  %3979 = vmatmul.f32.gmra.mxu0 %v3958
  %v3980 = vpop.f32.mrf.mxu0
  %v3981 = vadd.f32 %v3952, %v3980
  %3982 = vmatmul.f32.gmra.mxu0 %v3961
  %v3983 = vpop.f32.mrf.mxu0
  %v3984 = vadd.f32 %v3955, %v3983
  %3985 = vdwg.mxu0
  %3986 = vmatpush.msra.mxu0 0.0
  %3987 = vmatpush.msra.mxu0 0.0
  %3988 = vmatpush.msra.mxu0 0.0
  %3989 = vmatpush.msra.mxu0 0.0
  %3990 = vmatpush.msra.mxu0 0.0
  %3991 = vmatpush.msra.mxu0 0.0
  %3992 = vmatpush.msra.mxu0 0.0
  %3993 = vmatpush.msra.mxu0 0.0
  %3994 = vmatpush.msra.mxu0 0.0
  %3995 = vmatpush.msra.mxu0 %v3823
  %3996 = vmatpush.msra.mxu0 %v3822
  %3997 = vmatpush.msra.mxu0 %v3821
  %3998 = vmatpush.msra.mxu0 %v3820
  %3999 = vmatpush.msra.mxu0 %v3819
  %4000 = vmatpush.msra.mxu0 %v3818
  %4001 = vmatpush.msra.mxu0 %v3817
  %4002 = vmatmul.f32.gmra.mxu0 %v3900
  %v4003 = vpop.f32.mrf.mxu0
  %v4004 = vadd.f32 0.0, %v4003
  %4005 = vmatmul.f32.gmra.mxu0 %v3903
  %v4006 = vpop.f32.mrf.mxu0
  %v4007 = vadd.f32 0.0, %v4006
  %4008 = vdwg.mxu0
  %v4010 = vsel %vm958, %v4004, 0
  %v4013 = vsel %vm958, %v4007, 0
  %4015 = vmatpush.msra.mxu0 0.0
  %4016 = vmatpush.msra.mxu0 0.0
  %4017 = vmatpush.msra.mxu0 0.0
  %4018 = vmatpush.msra.mxu0 0.0
  %4019 = vmatpush.msra.mxu0 0.0
  %4020 = vmatpush.msra.mxu0 0.0
  %4021 = vmatpush.msra.mxu0 0.0
  %4022 = vmatpush.msra.mxu0 0.0
  %4023 = vmatpush.msra.mxu0 %v3898
  %4024 = vmatpush.msra.mxu0 %v3897
  %4025 = vmatpush.msra.mxu0 %v3896
  %4026 = vmatpush.msra.mxu0 %v3895
  %4027 = vmatpush.msra.mxu0 %v3894
  %4028 = vmatpush.msra.mxu0 %v3893
  %4029 = vmatpush.msra.mxu0 %v3892
  %4030 = vmatpush.msra.mxu0 %v3891
  %4031 = vmatmul.f32.gmra.mxu0 %v4010
  %v4032 = vpop.f32.mrf.mxu0
  %v4033 = vadd.f32 0.0, %v4032
  %4034 = vmatmul.f32.gmra.mxu0 %v4013
  %v4035 = vpop.f32.mrf.mxu0
  %v4036 = vadd.f32 0.0, %v4035
  %4037 = vdwg.mxu0
  %v4039 = vsel %vm958, %v3882, 0
  %v4042 = vsel %vm958, %v3885, 0
  %4044 = vmatpush.msra.mxu0 0.0
  %4045 = vmatpush.msra.mxu0 0.0
  %4046 = vmatpush.msra.mxu0 0.0
  %4047 = vmatpush.msra.mxu0 0.0
  %4048 = vmatpush.msra.mxu0 0.0
  %4049 = vmatpush.msra.mxu0 0.0
  %4050 = vmatpush.msra.mxu0 0.0
  %4051 = vmatpush.msra.mxu0 0.0
  %4052 = vmatpush.msra.mxu0 %v3833
  %4053 = vmatpush.msra.mxu0 %v3832
  %4054 = vmatpush.msra.mxu0 %v3831
  %4055 = vmatpush.msra.mxu0 %v3830
  %4056 = vmatpush.msra.mxu0 %v3829
  %4057 = vmatpush.msra.mxu0 %v3828
  %4058 = vmatpush.msra.mxu0 %v3827
  %4059 = vmatpush.msra.mxu0 %v3826
  %4060 = vmatmul.f32.gmra.mxu0 %v4039
  %v4061 = vpop.f32.mrf.mxu0
  %v4062 = vadd.f32 %v4033, %v4061
  %4063 = vmatmul.f32.gmra.mxu0 %v4042
  %v4064 = vpop.f32.mrf.mxu0
  %v4065 = vadd.f32 %v4036, %v4064
  %4066 = vdwg.mxu0
  %s4067 = scalar_lea.vmem %s2, 32
  %v4068 = vld [vmem:[%s4067] sm:$0xff]
  %v4069 = vld [vmem:[%s4067 + $0x8] sm:$0xff]
  %s4070 = scalar_lea.vmem %s9, 128
  %v4071 = vld [vmem:[%s4070] sm:$0xff]
  %v4072 = vld [vmem:[%s4070 + $0x8] sm:$0xff]
  %v4073 = vld [vmem:[%s4070 + $0x10] sm:$0xff]
  %v4074 = vld [vmem:[%s4070 + $0x18] sm:$0xff]
  %v4075 = vld [vmem:[%s4070 + $0x20] sm:$0xff]
  %v4076 = vld [vmem:[%s4070 + $0x28] sm:$0xff]
  %v4077 = vld [vmem:[%s4070 + $0x30] sm:$0xff]
  %v4078 = vld [vmem:[%s4070 + $0x38] sm:$0xff]
  %v4080 = vsel %vm3834, %v4068, 0
  %v4083 = vsel %vm3834, %v4069, 0
  %4085 = vmatpush.msra.mxu0 0.0
  %4086 = vmatpush.msra.mxu0 0.0
  %4087 = vmatpush.msra.mxu0 0.0
  %4088 = vmatpush.msra.mxu0 0.0
  %4089 = vmatpush.msra.mxu0 0.0
  %4090 = vmatpush.msra.mxu0 0.0
  %4091 = vmatpush.msra.mxu0 0.0
  %4092 = vmatpush.msra.mxu0 0.0
  %4093 = vmatpush.msra.mxu0 0.0
  %4094 = vmatpush.msra.mxu0 %v3788
  %4095 = vmatpush.msra.mxu0 %v3787
  %4096 = vmatpush.msra.mxu0 %v3786
  %4097 = vmatpush.msra.mxu0 %v3785
  %4098 = vmatpush.msra.mxu0 %v3784
  %4099 = vmatpush.msra.mxu0 %v3783
  %4100 = vmatpush.msra.mxu0 %v3782
  %4101 = vmatmul.f32.gmra.mxu0 %v4080
  %v4102 = vpop.f32.mrf.mxu0
  %v4103 = vadd.f32 0.0, %v4102
  %4104 = vmatmul.f32.gmra.mxu0 %v4083
  %v4105 = vpop.f32.mrf.mxu0
  %v4106 = vadd.f32 0.0, %v4105
  %4107 = vdwg.mxu0
  %v4109 = vsel %vm958, %v4103, 0
  %v4112 = vsel %vm958, %v4106, 0
  %4114 = vmatpush.msra.mxu0 0.0
  %4115 = vmatpush.msra.mxu0 0.0
  %4116 = vmatpush.msra.mxu0 0.0
  %4117 = vmatpush.msra.mxu0 0.0
  %4118 = vmatpush.msra.mxu0 0.0
  %4119 = vmatpush.msra.mxu0 0.0
  %4120 = vmatpush.msra.mxu0 0.0
  %4121 = vmatpush.msra.mxu0 0.0
  %4122 = vmatpush.msra.mxu0 %v4078
  %4123 = vmatpush.msra.mxu0 %v4077
  %4124 = vmatpush.msra.mxu0 %v4076
  %4125 = vmatpush.msra.mxu0 %v4075
  %4126 = vmatpush.msra.mxu0 %v4074
  %4127 = vmatpush.msra.mxu0 %v4073
  %4128 = vmatpush.msra.mxu0 %v4072
  %4129 = vmatpush.msra.mxu0 %v4071
  %4130 = vmatmul.f32.gmra.mxu0 %v4109
  %v4131 = vpop.f32.mrf.mxu0
  %v4132 = vadd.f32 0.0, %v4131
  %4133 = vmatmul.f32.gmra.mxu0 %v4112
  %v4134 = vpop.f32.mrf.mxu0
  %v4135 = vadd.f32 0.0, %v4134
  %4136 = vdwg.mxu0
  %v4137 = vadd.f32 %v3981, %v4132
  %v4138 = vadd.f32 %v3984, %v4135
  %4139 = vmatpush.msra.mxu0 0.0
  %4140 = vmatpush.msra.mxu0 0.0
  %4141 = vmatpush.msra.mxu0 0.0
  %4142 = vmatpush.msra.mxu0 0.0
  %4143 = vmatpush.msra.mxu0 0.0
  %4144 = vmatpush.msra.mxu0 0.0
  %4145 = vmatpush.msra.mxu0 0.0
  %4146 = vmatpush.msra.mxu0 0.0
  %4147 = vmatpush.msra.mxu0 0.0
  %4148 = vmatpush.msra.mxu0 %v3823
  %4149 = vmatpush.msra.mxu0 %v3822
  %4150 = vmatpush.msra.mxu0 %v3821
  %4151 = vmatpush.msra.mxu0 %v3820
  %4152 = vmatpush.msra.mxu0 %v3819
  %4153 = vmatpush.msra.mxu0 %v3818
  %4154 = vmatpush.msra.mxu0 %v3817
  %4155 = vmatmul.f32.gmra.mxu0 %v4080
  %v4156 = vpop.f32.mrf.mxu0
  %v4157 = vadd.f32 0.0, %v4156
  %4158 = vmatmul.f32.gmra.mxu0 %v4083
  %v4159 = vpop.f32.mrf.mxu0
  %v4160 = vadd.f32 0.0, %v4159
  %4161 = vdwg.mxu0
  %v4163 = vsel %vm958, %v4157, 0
  %v4166 = vsel %vm958, %v4160, 0
  %4168 = vmatpush.msra.mxu0 0.0
  %4169 = vmatpush.msra.mxu0 0.0
  %4170 = vmatpush.msra.mxu0 0.0
  %4171 = vmatpush.msra.mxu0 0.0
  %4172 = vmatpush.msra.mxu0 0.0
  %4173 = vmatpush.msra.mxu0 0.0
  %4174 = vmatpush.msra.mxu0 0.0
  %4175 = vmatpush.msra.mxu0 0.0
  %4176 = vmatpush.msra.mxu0 %v4078
  %4177 = vmatpush.msra.mxu0 %v4077
  %4178 = vmatpush.msra.mxu0 %v4076
  %4179 = vmatpush.msra.mxu0 %v4075
  %4180 = vmatpush.msra.mxu0 %v4074
  %4181 = vmatpush.msra.mxu0 %v4073
  %4182 = vmatpush.msra.mxu0 %v4072
  %4183 = vmatpush.msra.mxu0 %v4071
  %4184 = vmatmul.f32.gmra.mxu0 %v4163
  %v4185 = vpop.f32.mrf.mxu0
  %v4186 = vadd.f32 0.0, %v4185
  %4187 = vmatmul.f32.gmra.mxu0 %v4166
  %v4188 = vpop.f32.mrf.mxu0
  %v4189 = vadd.f32 0.0, %v4188
  %4190 = vdwg.mxu0
  %v4191 = vadd.f32 %v4062, %v4186
  %v4192 = vadd.f32 %v4065, %v4189
  %s4193 = scalar_lea.vmem %s2, 48
  %v4194 = vld [vmem:[%s4193] sm:$0xff]
  %v4195 = vld [vmem:[%s4193 + $0x8] sm:$0xff]
  %s4196 = scalar_lea.vmem %s9, 192
  %v4197 = vld [vmem:[%s4196] sm:$0xff]
  %v4198 = vld [vmem:[%s4196 + $0x8] sm:$0xff]
  %v4199 = vld [vmem:[%s4196 + $0x10] sm:$0xff]
  %v4200 = vld [vmem:[%s4196 + $0x18] sm:$0xff]
  %v4201 = vld [vmem:[%s4196 + $0x20] sm:$0xff]
  %v4202 = vld [vmem:[%s4196 + $0x28] sm:$0xff]
  %v4203 = vld [vmem:[%s4196 + $0x30] sm:$0xff]
  %v4204 = vld [vmem:[%s4196 + $0x38] sm:$0xff]
  %v4206 = vsel %vm3834, %v4194, 0
  %v4209 = vsel %vm3834, %v4195, 0
  %4211 = vmatpush.msra.mxu0 0.0
  %4212 = vmatpush.msra.mxu0 0.0
  %4213 = vmatpush.msra.mxu0 0.0
  %4214 = vmatpush.msra.mxu0 0.0
  %4215 = vmatpush.msra.mxu0 0.0
  %4216 = vmatpush.msra.mxu0 0.0
  %4217 = vmatpush.msra.mxu0 0.0
  %4218 = vmatpush.msra.mxu0 0.0
  %4219 = vmatpush.msra.mxu0 0.0
  %4220 = vmatpush.msra.mxu0 %v3788
  %4221 = vmatpush.msra.mxu0 %v3787
  %4222 = vmatpush.msra.mxu0 %v3786
  %4223 = vmatpush.msra.mxu0 %v3785
  %4224 = vmatpush.msra.mxu0 %v3784
  %4225 = vmatpush.msra.mxu0 %v3783
  %4226 = vmatpush.msra.mxu0 %v3782
  %4227 = vmatmul.f32.gmra.mxu0 %v4206
  %v4228 = vpop.f32.mrf.mxu0
  %v4229 = vadd.f32 0.0, %v4228
  %4230 = vmatmul.f32.gmra.mxu0 %v4209
  %v4231 = vpop.f32.mrf.mxu0
  %v4232 = vadd.f32 0.0, %v4231
  %4233 = vdwg.mxu0
  %v4235 = vsel %vm958, %v4229, 0
  %v4238 = vsel %vm958, %v4232, 0
  %4240 = vmatpush.msra.mxu0 0.0
  %4241 = vmatpush.msra.mxu0 0.0
  %4242 = vmatpush.msra.mxu0 0.0
  %4243 = vmatpush.msra.mxu0 0.0
  %4244 = vmatpush.msra.mxu0 0.0
  %4245 = vmatpush.msra.mxu0 0.0
  %4246 = vmatpush.msra.mxu0 0.0
  %4247 = vmatpush.msra.mxu0 0.0
  %4248 = vmatpush.msra.mxu0 %v4204
  %4249 = vmatpush.msra.mxu0 %v4203
  %4250 = vmatpush.msra.mxu0 %v4202
  %4251 = vmatpush.msra.mxu0 %v4201
  %4252 = vmatpush.msra.mxu0 %v4200
  %4253 = vmatpush.msra.mxu0 %v4199
  %4254 = vmatpush.msra.mxu0 %v4198
  %4255 = vmatpush.msra.mxu0 %v4197
  %4256 = vmatmul.f32.gmra.mxu0 %v4235
  %v4257 = vpop.f32.mrf.mxu0
  %v4258 = vadd.f32 0.0, %v4257
  %4259 = vmatmul.f32.gmra.mxu0 %v4238
  %v4260 = vpop.f32.mrf.mxu0
  %v4261 = vadd.f32 0.0, %v4260
  %4262 = vdwg.mxu0
  %v4263 = vadd.f32 %v4137, %v4258
  %v4264 = vadd.f32 %v4138, %v4261
  %4265 = vmatpush.msra.mxu0 0.0
  %4266 = vmatpush.msra.mxu0 0.0
  %4267 = vmatpush.msra.mxu0 0.0
  %4268 = vmatpush.msra.mxu0 0.0
  %4269 = vmatpush.msra.mxu0 0.0
  %4270 = vmatpush.msra.mxu0 0.0
  %4271 = vmatpush.msra.mxu0 0.0
  %4272 = vmatpush.msra.mxu0 0.0
  %4273 = vmatpush.msra.mxu0 0.0
  %4274 = vmatpush.msra.mxu0 %v3823
  %4275 = vmatpush.msra.mxu0 %v3822
  %4276 = vmatpush.msra.mxu0 %v3821
  %4277 = vmatpush.msra.mxu0 %v3820
  %4278 = vmatpush.msra.mxu0 %v3819
  %4279 = vmatpush.msra.mxu0 %v3818
  %4280 = vmatpush.msra.mxu0 %v3817
  %4281 = vmatmul.f32.gmra.mxu0 %v4206
  %v4282 = vpop.f32.mrf.mxu0
  %v4283 = vadd.f32 0.0, %v4282
  %4284 = vmatmul.f32.gmra.mxu0 %v4209
  %v4285 = vpop.f32.mrf.mxu0
  %v4286 = vadd.f32 0.0, %v4285
  %4287 = vdwg.mxu0
  %v4289 = vsel %vm958, %v4283, 0
  %v4292 = vsel %vm958, %v4286, 0
  %4294 = vmatpush.msra.mxu0 0.0
  %4295 = vmatpush.msra.mxu0 0.0
  %4296 = vmatpush.msra.mxu0 0.0
  %4297 = vmatpush.msra.mxu0 0.0
  %4298 = vmatpush.msra.mxu0 0.0
  %4299 = vmatpush.msra.mxu0 0.0
  %4300 = vmatpush.msra.mxu0 0.0
  %4301 = vmatpush.msra.mxu0 0.0
  %4302 = vmatpush.msra.mxu0 %v4204
  %4303 = vmatpush.msra.mxu0 %v4203
  %4304 = vmatpush.msra.mxu0 %v4202
  %4305 = vmatpush.msra.mxu0 %v4201
  %4306 = vmatpush.msra.mxu0 %v4200
  %4307 = vmatpush.msra.mxu0 %v4199
  %4308 = vmatpush.msra.mxu0 %v4198
  %4309 = vmatpush.msra.mxu0 %v4197
  %4310 = vmatmul.f32.gmra.mxu0 %v4289
  %v4311 = vpop.f32.mrf.mxu0
  %v4312 = vadd.f32 0.0, %v4311
  %4313 = vmatmul.f32.gmra.mxu0 %v4292
  %v4314 = vpop.f32.mrf.mxu0
  %v4315 = vadd.f32 0.0, %v4314
  %4316 = vdwg.mxu0
  %v4317 = vadd.f32 %v4191, %v4312
  %v4318 = vadd.f32 %v4192, %v4315
  %s4319 = scalar_lea.vmem %s2, 64
  %v4320 = vld [vmem:[%s4319] sm:$0xff]
  %v4321 = vld [vmem:[%s4319 + $0x8] sm:$0xff]
  %s4322 = scalar_lea.vmem %s9, 256
  %v4323 = vld [vmem:[%s4322] sm:$0xff]
  %v4324 = vld [vmem:[%s4322 + $0x8] sm:$0xff]
  %v4325 = vld [vmem:[%s4322 + $0x10] sm:$0xff]
  %v4326 = vld [vmem:[%s4322 + $0x18] sm:$0xff]
  %v4327 = vld [vmem:[%s4322 + $0x20] sm:$0xff]
  %v4328 = vld [vmem:[%s4322 + $0x28] sm:$0xff]
  %v4329 = vld [vmem:[%s4322 + $0x30] sm:$0xff]
  %v4330 = vld [vmem:[%s4322 + $0x38] sm:$0xff]
  %v4332 = vsel %vm3834, %v4320, 0
  %v4335 = vsel %vm3834, %v4321, 0
  %4337 = vmatpush.msra.mxu0 0.0
  %4338 = vmatpush.msra.mxu0 0.0
  %4339 = vmatpush.msra.mxu0 0.0
  %4340 = vmatpush.msra.mxu0 0.0
  %4341 = vmatpush.msra.mxu0 0.0
  %4342 = vmatpush.msra.mxu0 0.0
  %4343 = vmatpush.msra.mxu0 0.0
  %4344 = vmatpush.msra.mxu0 0.0
  %4345 = vmatpush.msra.mxu0 0.0
  %4346 = vmatpush.msra.mxu0 %v3788
  %4347 = vmatpush.msra.mxu0 %v3787
  %4348 = vmatpush.msra.mxu0 %v3786
  %4349 = vmatpush.msra.mxu0 %v3785
  %4350 = vmatpush.msra.mxu0 %v3784
  %4351 = vmatpush.msra.mxu0 %v3783
  %4352 = vmatpush.msra.mxu0 %v3782
  %4353 = vmatmul.f32.gmra.mxu0 %v4332
  %v4354 = vpop.f32.mrf.mxu0
  %v4355 = vadd.f32 0.0, %v4354
  %4356 = vmatmul.f32.gmra.mxu0 %v4335
  %v4357 = vpop.f32.mrf.mxu0
  %v4358 = vadd.f32 0.0, %v4357
  %4359 = vdwg.mxu0
  %v4361 = vsel %vm958, %v4355, 0
  %v4364 = vsel %vm958, %v4358, 0
  %4366 = vmatpush.msra.mxu0 0.0
  %4367 = vmatpush.msra.mxu0 0.0
  %4368 = vmatpush.msra.mxu0 0.0
  %4369 = vmatpush.msra.mxu0 0.0
  %4370 = vmatpush.msra.mxu0 0.0
  %4371 = vmatpush.msra.mxu0 0.0
  %4372 = vmatpush.msra.mxu0 0.0
  %4373 = vmatpush.msra.mxu0 0.0
  %4374 = vmatpush.msra.mxu0 %v4330
  %4375 = vmatpush.msra.mxu0 %v4329
  %4376 = vmatpush.msra.mxu0 %v4328
  %4377 = vmatpush.msra.mxu0 %v4327
  %4378 = vmatpush.msra.mxu0 %v4326
  %4379 = vmatpush.msra.mxu0 %v4325
  %4380 = vmatpush.msra.mxu0 %v4324
  %4381 = vmatpush.msra.mxu0 %v4323
  %4382 = vmatmul.f32.gmra.mxu0 %v4361
  %v4383 = vpop.f32.mrf.mxu0
  %v4384 = vadd.f32 0.0, %v4383
  %4385 = vmatmul.f32.gmra.mxu0 %v4364
  %v4386 = vpop.f32.mrf.mxu0
  %v4387 = vadd.f32 0.0, %v4386
  %4388 = vdwg.mxu0
  %v4389 = vadd.f32 %v4263, %v4384
  %v4390 = vadd.f32 %v4264, %v4387
  %4391 = vmatpush.msra.mxu0 0.0
  %4392 = vmatpush.msra.mxu0 0.0
  %4393 = vmatpush.msra.mxu0 0.0
  %4394 = vmatpush.msra.mxu0 0.0
  %4395 = vmatpush.msra.mxu0 0.0
  %4396 = vmatpush.msra.mxu0 0.0
  %4397 = vmatpush.msra.mxu0 0.0
  %4398 = vmatpush.msra.mxu0 0.0
  %4399 = vmatpush.msra.mxu0 0.0
  %4400 = vmatpush.msra.mxu0 %v3823
  %4401 = vmatpush.msra.mxu0 %v3822
  %4402 = vmatpush.msra.mxu0 %v3821
  %4403 = vmatpush.msra.mxu0 %v3820
  %4404 = vmatpush.msra.mxu0 %v3819
  %4405 = vmatpush.msra.mxu0 %v3818
  %4406 = vmatpush.msra.mxu0 %v3817
  %4407 = vmatmul.f32.gmra.mxu0 %v4332
  %v4408 = vpop.f32.mrf.mxu0
  %v4409 = vadd.f32 0.0, %v4408
  %4410 = vmatmul.f32.gmra.mxu0 %v4335
  %v4411 = vpop.f32.mrf.mxu0
  %v4412 = vadd.f32 0.0, %v4411
  %4413 = vdwg.mxu0
  %v4415 = vsel %vm958, %v4409, 0
  %v4418 = vsel %vm958, %v4412, 0
  %4420 = vmatpush.msra.mxu0 0.0
  %4421 = vmatpush.msra.mxu0 0.0
  %4422 = vmatpush.msra.mxu0 0.0
  %4423 = vmatpush.msra.mxu0 0.0
  %4424 = vmatpush.msra.mxu0 0.0
  %4425 = vmatpush.msra.mxu0 0.0
  %4426 = vmatpush.msra.mxu0 0.0
  %4427 = vmatpush.msra.mxu0 0.0
  %4428 = vmatpush.msra.mxu0 %v4330
  %4429 = vmatpush.msra.mxu0 %v4329
  %4430 = vmatpush.msra.mxu0 %v4328
  %4431 = vmatpush.msra.mxu0 %v4327
  %4432 = vmatpush.msra.mxu0 %v4326
  %4433 = vmatpush.msra.mxu0 %v4325
  %4434 = vmatpush.msra.mxu0 %v4324
  %4435 = vmatpush.msra.mxu0 %v4323
  %4436 = vmatmul.f32.gmra.mxu0 %v4415
  %v4437 = vpop.f32.mrf.mxu0
  %v4438 = vadd.f32 0.0, %v4437
  %4439 = vmatmul.f32.gmra.mxu0 %v4418
  %v4440 = vpop.f32.mrf.mxu0
  %v4441 = vadd.f32 0.0, %v4440
  %4442 = vdwg.mxu0
  %v4443 = vadd.f32 %v4317, %v4438
  %v4444 = vadd.f32 %v4318, %v4441
  %s4445 = scalar_lea.vmem %s2, 80
  %v4446 = vld [vmem:[%s4445] sm:$0xff]
  %v4447 = vld [vmem:[%s4445 + $0x8] sm:$0xff]
  %s4448 = scalar_lea.vmem %s9, 320
  %v4449 = vld [vmem:[%s4448] sm:$0xff]
  %v4450 = vld [vmem:[%s4448 + $0x8] sm:$0xff]
  %v4451 = vld [vmem:[%s4448 + $0x10] sm:$0xff]
  %v4452 = vld [vmem:[%s4448 + $0x18] sm:$0xff]
  %v4453 = vld [vmem:[%s4448 + $0x20] sm:$0xff]
  %v4454 = vld [vmem:[%s4448 + $0x28] sm:$0xff]
  %v4455 = vld [vmem:[%s4448 + $0x30] sm:$0xff]
  %v4456 = vld [vmem:[%s4448 + $0x38] sm:$0xff]
  %v4458 = vsel %vm3834, %v4446, 0
  %v4461 = vsel %vm3834, %v4447, 0
  %4463 = vmatpush.msra.mxu0 0.0
  %4464 = vmatpush.msra.mxu0 0.0
  %4465 = vmatpush.msra.mxu0 0.0
  %4466 = vmatpush.msra.mxu0 0.0
  %4467 = vmatpush.msra.mxu0 0.0
  %4468 = vmatpush.msra.mxu0 0.0
  %4469 = vmatpush.msra.mxu0 0.0
  %4470 = vmatpush.msra.mxu0 0.0
  %4471 = vmatpush.msra.mxu0 0.0
  %4472 = vmatpush.msra.mxu0 %v3788
  %4473 = vmatpush.msra.mxu0 %v3787
  %4474 = vmatpush.msra.mxu0 %v3786
  %4475 = vmatpush.msra.mxu0 %v3785
  %4476 = vmatpush.msra.mxu0 %v3784
  %4477 = vmatpush.msra.mxu0 %v3783
  %4478 = vmatpush.msra.mxu0 %v3782
  %4479 = vmatmul.f32.gmra.mxu0 %v4458
  %v4480 = vpop.f32.mrf.mxu0
  %v4481 = vadd.f32 0.0, %v4480
  %4482 = vmatmul.f32.gmra.mxu0 %v4461
  %v4483 = vpop.f32.mrf.mxu0
  %v4484 = vadd.f32 0.0, %v4483
  %4485 = vdwg.mxu0
  %v4487 = vsel %vm958, %v4481, 0
  %v4490 = vsel %vm958, %v4484, 0
  %4492 = vmatpush.msra.mxu0 0.0
  %4493 = vmatpush.msra.mxu0 0.0
  %4494 = vmatpush.msra.mxu0 0.0
  %4495 = vmatpush.msra.mxu0 0.0
  %4496 = vmatpush.msra.mxu0 0.0
  %4497 = vmatpush.msra.mxu0 0.0
  %4498 = vmatpush.msra.mxu0 0.0
  %4499 = vmatpush.msra.mxu0 0.0
  %4500 = vmatpush.msra.mxu0 %v4456
  %4501 = vmatpush.msra.mxu0 %v4455
  %4502 = vmatpush.msra.mxu0 %v4454
  %4503 = vmatpush.msra.mxu0 %v4453
  %4504 = vmatpush.msra.mxu0 %v4452
  %4505 = vmatpush.msra.mxu0 %v4451
  %4506 = vmatpush.msra.mxu0 %v4450
  %4507 = vmatpush.msra.mxu0 %v4449
  %4508 = vmatmul.f32.gmra.mxu0 %v4487
  %v4509 = vpop.f32.mrf.mxu0
  %v4510 = vadd.f32 0.0, %v4509
  %4511 = vmatmul.f32.gmra.mxu0 %v4490
  %v4512 = vpop.f32.mrf.mxu0
  %v4513 = vadd.f32 0.0, %v4512
  %4514 = vdwg.mxu0
  %v4515 = vadd.f32 %v4389, %v4510
  %v4516 = vadd.f32 %v4390, %v4513
  %4517 = vmatpush.msra.mxu0 0.0
  %4518 = vmatpush.msra.mxu0 0.0
  %4519 = vmatpush.msra.mxu0 0.0
  %4520 = vmatpush.msra.mxu0 0.0
  %4521 = vmatpush.msra.mxu0 0.0
  %4522 = vmatpush.msra.mxu0 0.0
  %4523 = vmatpush.msra.mxu0 0.0
  %4524 = vmatpush.msra.mxu0 0.0
  %4525 = vmatpush.msra.mxu0 0.0
  %4526 = vmatpush.msra.mxu0 %v3823
  %4527 = vmatpush.msra.mxu0 %v3822
  %4528 = vmatpush.msra.mxu0 %v3821
  %4529 = vmatpush.msra.mxu0 %v3820
  %4530 = vmatpush.msra.mxu0 %v3819
  %4531 = vmatpush.msra.mxu0 %v3818
  %4532 = vmatpush.msra.mxu0 %v3817
  %4533 = vmatmul.f32.gmra.mxu0 %v4458
  %v4534 = vpop.f32.mrf.mxu0
  %v4535 = vadd.f32 0.0, %v4534
  %4536 = vmatmul.f32.gmra.mxu0 %v4461
  %v4537 = vpop.f32.mrf.mxu0
  %v4538 = vadd.f32 0.0, %v4537
  %4539 = vdwg.mxu0
  %v4541 = vsel %vm958, %v4535, 0
  %v4544 = vsel %vm958, %v4538, 0
  %4546 = vmatpush.msra.mxu0 0.0
  %4547 = vmatpush.msra.mxu0 0.0
  %4548 = vmatpush.msra.mxu0 0.0
  %4549 = vmatpush.msra.mxu0 0.0
  %4550 = vmatpush.msra.mxu0 0.0
  %4551 = vmatpush.msra.mxu0 0.0
  %4552 = vmatpush.msra.mxu0 0.0
  %4553 = vmatpush.msra.mxu0 0.0
  %4554 = vmatpush.msra.mxu0 %v4456
  %4555 = vmatpush.msra.mxu0 %v4455
  %4556 = vmatpush.msra.mxu0 %v4454
  %4557 = vmatpush.msra.mxu0 %v4453
  %4558 = vmatpush.msra.mxu0 %v4452
  %4559 = vmatpush.msra.mxu0 %v4451
  %4560 = vmatpush.msra.mxu0 %v4450
  %4561 = vmatpush.msra.mxu0 %v4449
  %4562 = vmatmul.f32.gmra.mxu0 %v4541
  %v4563 = vpop.f32.mrf.mxu0
  %v4564 = vadd.f32 0.0, %v4563
  %4565 = vmatmul.f32.gmra.mxu0 %v4544
  %v4566 = vpop.f32.mrf.mxu0
  %v4567 = vadd.f32 0.0, %v4566
  %4568 = vdwg.mxu0
  %v4569 = vadd.f32 %v4443, %v4564
  %v4570 = vadd.f32 %v4444, %v4567
  %s4571 = scalar_lea.vmem %s2, 96
  %v4572 = vld [vmem:[%s4571] sm:$0xff]
  %v4573 = vld [vmem:[%s4571 + $0x8] sm:$0xff]
  %s4574 = scalar_lea.vmem %s9, 384
  %v4575 = vld [vmem:[%s4574] sm:$0xff]
  %v4576 = vld [vmem:[%s4574 + $0x8] sm:$0xff]
  %v4577 = vld [vmem:[%s4574 + $0x10] sm:$0xff]
  %v4578 = vld [vmem:[%s4574 + $0x18] sm:$0xff]
  %v4579 = vld [vmem:[%s4574 + $0x20] sm:$0xff]
  %v4580 = vld [vmem:[%s4574 + $0x28] sm:$0xff]
  %v4581 = vld [vmem:[%s4574 + $0x30] sm:$0xff]
  %v4582 = vld [vmem:[%s4574 + $0x38] sm:$0xff]
  %v4584 = vsel %vm3834, %v4572, 0
  %v4587 = vsel %vm3834, %v4573, 0
  %4589 = vmatpush.msra.mxu0 0.0
  %4590 = vmatpush.msra.mxu0 0.0
  %4591 = vmatpush.msra.mxu0 0.0
  %4592 = vmatpush.msra.mxu0 0.0
  %4593 = vmatpush.msra.mxu0 0.0
  %4594 = vmatpush.msra.mxu0 0.0
  %4595 = vmatpush.msra.mxu0 0.0
  %4596 = vmatpush.msra.mxu0 0.0
  %4597 = vmatpush.msra.mxu0 0.0
  %4598 = vmatpush.msra.mxu0 %v3788
  %4599 = vmatpush.msra.mxu0 %v3787
  %4600 = vmatpush.msra.mxu0 %v3786
  %4601 = vmatpush.msra.mxu0 %v3785
  %4602 = vmatpush.msra.mxu0 %v3784
  %4603 = vmatpush.msra.mxu0 %v3783
  %4604 = vmatpush.msra.mxu0 %v3782
  %4605 = vmatmul.f32.gmra.mxu0 %v4584
  %v4606 = vpop.f32.mrf.mxu0
  %v4607 = vadd.f32 0.0, %v4606
  %4608 = vmatmul.f32.gmra.mxu0 %v4587
  %v4609 = vpop.f32.mrf.mxu0
  %v4610 = vadd.f32 0.0, %v4609
  %4611 = vdwg.mxu0
  %v4613 = vsel %vm958, %v4607, 0
  %v4616 = vsel %vm958, %v4610, 0
  %4618 = vmatpush.msra.mxu0 0.0
  %4619 = vmatpush.msra.mxu0 0.0
  %4620 = vmatpush.msra.mxu0 0.0
  %4621 = vmatpush.msra.mxu0 0.0
  %4622 = vmatpush.msra.mxu0 0.0
  %4623 = vmatpush.msra.mxu0 0.0
  %4624 = vmatpush.msra.mxu0 0.0
  %4625 = vmatpush.msra.mxu0 0.0
  %4626 = vmatpush.msra.mxu0 %v4582
  %4627 = vmatpush.msra.mxu0 %v4581
  %4628 = vmatpush.msra.mxu0 %v4580
  %4629 = vmatpush.msra.mxu0 %v4579
  %4630 = vmatpush.msra.mxu0 %v4578
  %4631 = vmatpush.msra.mxu0 %v4577
  %4632 = vmatpush.msra.mxu0 %v4576
  %4633 = vmatpush.msra.mxu0 %v4575
  %4634 = vmatmul.f32.gmra.mxu0 %v4613
  %v4635 = vpop.f32.mrf.mxu0
  %v4636 = vadd.f32 0.0, %v4635
  %4637 = vmatmul.f32.gmra.mxu0 %v4616
  %v4638 = vpop.f32.mrf.mxu0
  %v4639 = vadd.f32 0.0, %v4638
  %4640 = vdwg.mxu0
  %v4641 = vadd.f32 %v4515, %v4636
  %v4642 = vadd.f32 %v4516, %v4639
  %4643 = vmatpush.msra.mxu0 0.0
  %4644 = vmatpush.msra.mxu0 0.0
  %4645 = vmatpush.msra.mxu0 0.0
  %4646 = vmatpush.msra.mxu0 0.0
  %4647 = vmatpush.msra.mxu0 0.0
  %4648 = vmatpush.msra.mxu0 0.0
  %4649 = vmatpush.msra.mxu0 0.0
  %4650 = vmatpush.msra.mxu0 0.0
  %4651 = vmatpush.msra.mxu0 0.0
  %4652 = vmatpush.msra.mxu0 %v3823
  %4653 = vmatpush.msra.mxu0 %v3822
  %4654 = vmatpush.msra.mxu0 %v3821
  %4655 = vmatpush.msra.mxu0 %v3820
  %4656 = vmatpush.msra.mxu0 %v3819
  %4657 = vmatpush.msra.mxu0 %v3818
  %4658 = vmatpush.msra.mxu0 %v3817
  %4659 = vmatmul.f32.gmra.mxu0 %v4584
  %v4660 = vpop.f32.mrf.mxu0
  %v4661 = vadd.f32 0.0, %v4660
  %4662 = vmatmul.f32.gmra.mxu0 %v4587
  %v4663 = vpop.f32.mrf.mxu0
  %v4664 = vadd.f32 0.0, %v4663
  %4665 = vdwg.mxu0
  %v4667 = vsel %vm958, %v4661, 0
  %v4670 = vsel %vm958, %v4664, 0
  %4672 = vmatpush.msra.mxu0 0.0
  %4673 = vmatpush.msra.mxu0 0.0
  %4674 = vmatpush.msra.mxu0 0.0
  %4675 = vmatpush.msra.mxu0 0.0
  %4676 = vmatpush.msra.mxu0 0.0
  %4677 = vmatpush.msra.mxu0 0.0
  %4678 = vmatpush.msra.mxu0 0.0
  %4679 = vmatpush.msra.mxu0 0.0
  %4680 = vmatpush.msra.mxu0 %v4582
  %4681 = vmatpush.msra.mxu0 %v4581
  %4682 = vmatpush.msra.mxu0 %v4580
  %4683 = vmatpush.msra.mxu0 %v4579
  %4684 = vmatpush.msra.mxu0 %v4578
  %4685 = vmatpush.msra.mxu0 %v4577
  %4686 = vmatpush.msra.mxu0 %v4576
  %4687 = vmatpush.msra.mxu0 %v4575
  %4688 = vmatmul.f32.gmra.mxu0 %v4667
  %v4689 = vpop.f32.mrf.mxu0
  %v4690 = vadd.f32 0.0, %v4689
  %4691 = vmatmul.f32.gmra.mxu0 %v4670
  %v4692 = vpop.f32.mrf.mxu0
  %v4693 = vadd.f32 0.0, %v4692
  %4694 = vdwg.mxu0
  %v4695 = vadd.f32 %v4569, %v4690
  %v4696 = vadd.f32 %v4570, %v4693
  %s4697 = scalar_lea.vmem %s2, 112
  %v4698 = vld [vmem:[%s4697] sm:$0xff]
  %v4699 = vld [vmem:[%s4697 + $0x8] sm:$0xff]
  %s4700 = scalar_lea.vmem %s9, 448
  %v4701 = vld [vmem:[%s4700] sm:$0xff]
  %v4702 = vld [vmem:[%s4700 + $0x8] sm:$0xff]
  %v4703 = vld [vmem:[%s4700 + $0x10] sm:$0xff]
  %v4704 = vld [vmem:[%s4700 + $0x18] sm:$0xff]
  %v4705 = vld [vmem:[%s4700 + $0x20] sm:$0xff]
  %v4706 = vld [vmem:[%s4700 + $0x28] sm:$0xff]
  %v4707 = vld [vmem:[%s4700 + $0x30] sm:$0xff]
  %v4708 = vld [vmem:[%s4700 + $0x38] sm:$0xff]
  %v4710 = vsel %vm3834, %v4698, 0
  %v4713 = vsel %vm3834, %v4699, 0
  %4715 = vmatpush.msra.mxu0 0.0
  %4716 = vmatpush.msra.mxu0 0.0
  %4717 = vmatpush.msra.mxu0 0.0
  %4718 = vmatpush.msra.mxu0 0.0
  %4719 = vmatpush.msra.mxu0 0.0
  %4720 = vmatpush.msra.mxu0 0.0
  %4721 = vmatpush.msra.mxu0 0.0
  %4722 = vmatpush.msra.mxu0 0.0
  %4723 = vmatpush.msra.mxu0 0.0
  %4724 = vmatpush.msra.mxu0 %v3788
  %4725 = vmatpush.msra.mxu0 %v3787
  %4726 = vmatpush.msra.mxu0 %v3786
  %4727 = vmatpush.msra.mxu0 %v3785
  %4728 = vmatpush.msra.mxu0 %v3784
  %4729 = vmatpush.msra.mxu0 %v3783
  %4730 = vmatpush.msra.mxu0 %v3782
  %4731 = vmatmul.f32.gmra.mxu0 %v4710
  %v4732 = vpop.f32.mrf.mxu0
  %v4733 = vadd.f32 0.0, %v4732
  %4734 = vmatmul.f32.gmra.mxu0 %v4713
  %v4735 = vpop.f32.mrf.mxu0
  %v4736 = vadd.f32 0.0, %v4735
  %4737 = vdwg.mxu0
  %v4739 = vsel %vm958, %v4733, 0
  %v4742 = vsel %vm958, %v4736, 0
  %4744 = vmatpush.msra.mxu0 0.0
  %4745 = vmatpush.msra.mxu0 0.0
  %4746 = vmatpush.msra.mxu0 0.0
  %4747 = vmatpush.msra.mxu0 0.0
  %4748 = vmatpush.msra.mxu0 0.0
  %4749 = vmatpush.msra.mxu0 0.0
  %4750 = vmatpush.msra.mxu0 0.0
  %4751 = vmatpush.msra.mxu0 0.0
  %4752 = vmatpush.msra.mxu0 %v4708
  %4753 = vmatpush.msra.mxu0 %v4707
  %4754 = vmatpush.msra.mxu0 %v4706
  %4755 = vmatpush.msra.mxu0 %v4705
  %4756 = vmatpush.msra.mxu0 %v4704
  %4757 = vmatpush.msra.mxu0 %v4703
  %4758 = vmatpush.msra.mxu0 %v4702
  %4759 = vmatpush.msra.mxu0 %v4701
  %4760 = vmatmul.f32.gmra.mxu0 %v4739
  %v4761 = vpop.f32.mrf.mxu0
  %v4762 = vadd.f32 0.0, %v4761
  %4763 = vmatmul.f32.gmra.mxu0 %v4742
  %v4764 = vpop.f32.mrf.mxu0
  %v4765 = vadd.f32 0.0, %v4764
  %4766 = vdwg.mxu0
  %v4767 = vadd.f32 %v4641, %v4762
  %v4768 = vadd.f32 %v4642, %v4765
  %4769 = vmatpush.msra.mxu0 0.0
  %4770 = vmatpush.msra.mxu0 0.0
  %4771 = vmatpush.msra.mxu0 0.0
  %4772 = vmatpush.msra.mxu0 0.0
  %4773 = vmatpush.msra.mxu0 0.0
  %4774 = vmatpush.msra.mxu0 0.0
  %4775 = vmatpush.msra.mxu0 0.0
  %4776 = vmatpush.msra.mxu0 0.0
  %4777 = vmatpush.msra.mxu0 0.0
  %4778 = vmatpush.msra.mxu0 %v3823
  %4779 = vmatpush.msra.mxu0 %v3822
  %4780 = vmatpush.msra.mxu0 %v3821
  %4781 = vmatpush.msra.mxu0 %v3820
  %4782 = vmatpush.msra.mxu0 %v3819
  %4783 = vmatpush.msra.mxu0 %v3818
  %4784 = vmatpush.msra.mxu0 %v3817
  %4785 = vmatmul.f32.gmra.mxu0 %v4710
  %v4786 = vpop.f32.mrf.mxu0
  %v4787 = vadd.f32 0.0, %v4786
  %4788 = vmatmul.f32.gmra.mxu0 %v4713
  %v4789 = vpop.f32.mrf.mxu0
  %v4790 = vadd.f32 0.0, %v4789
  %4791 = vdwg.mxu0
  %v4793 = vsel %vm958, %v4787, 0
  %v4796 = vsel %vm958, %v4790, 0
  %4798 = vmatpush.msra.mxu0 0.0
  %4799 = vmatpush.msra.mxu0 0.0
  %4800 = vmatpush.msra.mxu0 0.0
  %4801 = vmatpush.msra.mxu0 0.0
  %4802 = vmatpush.msra.mxu0 0.0
  %4803 = vmatpush.msra.mxu0 0.0
  %4804 = vmatpush.msra.mxu0 0.0
  %4805 = vmatpush.msra.mxu0 0.0
  %4806 = vmatpush.msra.mxu0 %v4708
  %4807 = vmatpush.msra.mxu0 %v4707
  %4808 = vmatpush.msra.mxu0 %v4706
  %4809 = vmatpush.msra.mxu0 %v4705
  %4810 = vmatpush.msra.mxu0 %v4704
  %4811 = vmatpush.msra.mxu0 %v4703
  %4812 = vmatpush.msra.mxu0 %v4702
  %4813 = vmatpush.msra.mxu0 %v4701
  %4814 = vmatmul.f32.gmra.mxu0 %v4793
  %v4815 = vpop.f32.mrf.mxu0
  %v4816 = vadd.f32 0.0, %v4815
  %4817 = vmatmul.f32.gmra.mxu0 %v4796
  %v4818 = vpop.f32.mrf.mxu0
  %v4819 = vadd.f32 0.0, %v4818
  %4820 = vdwg.mxu0
  %v4821 = vadd.f32 %v4695, %v4816
  %v4822 = vadd.f32 %v4696, %v4819
  %s4823 = scalar_lea.vmem %s2, 128
  %v4824 = vld [vmem:[%s4823] sm:$0xff]
  %v4825 = vld [vmem:[%s4823 + $0x8] sm:$0xff]
  %s4826 = scalar_lea.vmem %s9, 512
  %v4827 = vld [vmem:[%s4826] sm:$0xff]
  %v4828 = vld [vmem:[%s4826 + $0x8] sm:$0xff]
  %v4829 = vld [vmem:[%s4826 + $0x10] sm:$0xff]
  %v4830 = vld [vmem:[%s4826 + $0x18] sm:$0xff]
  %v4831 = vld [vmem:[%s4826 + $0x20] sm:$0xff]
  %v4832 = vld [vmem:[%s4826 + $0x28] sm:$0xff]
  %v4833 = vld [vmem:[%s4826 + $0x30] sm:$0xff]
  %v4834 = vld [vmem:[%s4826 + $0x38] sm:$0xff]
  %v4836 = vsel %vm3834, %v4824, 0
  %v4839 = vsel %vm3834, %v4825, 0
  %4841 = vmatpush.msra.mxu0 0.0
  %4842 = vmatpush.msra.mxu0 0.0
  %4843 = vmatpush.msra.mxu0 0.0
  %4844 = vmatpush.msra.mxu0 0.0
  %4845 = vmatpush.msra.mxu0 0.0
  %4846 = vmatpush.msra.mxu0 0.0
  %4847 = vmatpush.msra.mxu0 0.0
  %4848 = vmatpush.msra.mxu0 0.0
  %4849 = vmatpush.msra.mxu0 0.0
  %4850 = vmatpush.msra.mxu0 %v3788
  %4851 = vmatpush.msra.mxu0 %v3787
  %4852 = vmatpush.msra.mxu0 %v3786
  %4853 = vmatpush.msra.mxu0 %v3785
  %4854 = vmatpush.msra.mxu0 %v3784
  %4855 = vmatpush.msra.mxu0 %v3783
  %4856 = vmatpush.msra.mxu0 %v3782
  %4857 = vmatmul.f32.gmra.mxu0 %v4836
  %v4858 = vpop.f32.mrf.mxu0
  %v4859 = vadd.f32 0.0, %v4858
  %4860 = vmatmul.f32.gmra.mxu0 %v4839
  %v4861 = vpop.f32.mrf.mxu0
  %v4862 = vadd.f32 0.0, %v4861
  %4863 = vdwg.mxu0
  %v4865 = vsel %vm958, %v4859, 0
  %v4868 = vsel %vm958, %v4862, 0
  %4870 = vmatpush.msra.mxu0 0.0
  %4871 = vmatpush.msra.mxu0 0.0
  %4872 = vmatpush.msra.mxu0 0.0
  %4873 = vmatpush.msra.mxu0 0.0
  %4874 = vmatpush.msra.mxu0 0.0
  %4875 = vmatpush.msra.mxu0 0.0
  %4876 = vmatpush.msra.mxu0 0.0
  %4877 = vmatpush.msra.mxu0 0.0
  %4878 = vmatpush.msra.mxu0 %v4834
  %4879 = vmatpush.msra.mxu0 %v4833
  %4880 = vmatpush.msra.mxu0 %v4832
  %4881 = vmatpush.msra.mxu0 %v4831
  %4882 = vmatpush.msra.mxu0 %v4830
  %4883 = vmatpush.msra.mxu0 %v4829
  %4884 = vmatpush.msra.mxu0 %v4828
  %4885 = vmatpush.msra.mxu0 %v4827
  %4886 = vmatmul.f32.gmra.mxu0 %v4865
  %v4887 = vpop.f32.mrf.mxu0
  %v4888 = vadd.f32 0.0, %v4887
  %4889 = vmatmul.f32.gmra.mxu0 %v4868
  %v4890 = vpop.f32.mrf.mxu0
  %v4891 = vadd.f32 0.0, %v4890
  %4892 = vdwg.mxu0
  %v4893 = vadd.f32 %v4767, %v4888
  %v4894 = vadd.f32 %v4768, %v4891
  %4895 = vmatpush.msra.mxu0 0.0
  %4896 = vmatpush.msra.mxu0 0.0
  %4897 = vmatpush.msra.mxu0 0.0
  %4898 = vmatpush.msra.mxu0 0.0
  %4899 = vmatpush.msra.mxu0 0.0
  %4900 = vmatpush.msra.mxu0 0.0
  %4901 = vmatpush.msra.mxu0 0.0
  %4902 = vmatpush.msra.mxu0 0.0
  %4903 = vmatpush.msra.mxu0 0.0
  %4904 = vmatpush.msra.mxu0 %v3823
  %4905 = vmatpush.msra.mxu0 %v3822
  %4906 = vmatpush.msra.mxu0 %v3821
  %4907 = vmatpush.msra.mxu0 %v3820
  %4908 = vmatpush.msra.mxu0 %v3819
  %4909 = vmatpush.msra.mxu0 %v3818
  %4910 = vmatpush.msra.mxu0 %v3817
  %4911 = vmatmul.f32.gmra.mxu0 %v4836
  %v4912 = vpop.f32.mrf.mxu0
  %v4913 = vadd.f32 0.0, %v4912
  %4914 = vmatmul.f32.gmra.mxu0 %v4839
  %v4915 = vpop.f32.mrf.mxu0
  %v4916 = vadd.f32 0.0, %v4915
  %4917 = vdwg.mxu0
  %v4919 = vsel %vm958, %v4913, 0
  %v4922 = vsel %vm958, %v4916, 0
  %4924 = vmatpush.msra.mxu0 0.0
  %4925 = vmatpush.msra.mxu0 0.0
  %4926 = vmatpush.msra.mxu0 0.0
  %4927 = vmatpush.msra.mxu0 0.0
  %4928 = vmatpush.msra.mxu0 0.0
  %4929 = vmatpush.msra.mxu0 0.0
  %4930 = vmatpush.msra.mxu0 0.0
  %4931 = vmatpush.msra.mxu0 0.0
  %4932 = vmatpush.msra.mxu0 %v4834
  %4933 = vmatpush.msra.mxu0 %v4833
  %4934 = vmatpush.msra.mxu0 %v4832
  %4935 = vmatpush.msra.mxu0 %v4831
  %4936 = vmatpush.msra.mxu0 %v4830
  %4937 = vmatpush.msra.mxu0 %v4829
  %4938 = vmatpush.msra.mxu0 %v4828
  %4939 = vmatpush.msra.mxu0 %v4827
  %4940 = vmatmul.f32.gmra.mxu0 %v4919
  %v4941 = vpop.f32.mrf.mxu0
  %v4942 = vadd.f32 0.0, %v4941
  %4943 = vmatmul.f32.gmra.mxu0 %v4922
  %v4944 = vpop.f32.mrf.mxu0
  %v4945 = vadd.f32 0.0, %v4944
  %4946 = vdwg.mxu0
  %v4947 = vadd.f32 %v4821, %v4942
  %v4948 = vadd.f32 %v4822, %v4945
  %v4949 = vld [vmem:[%s10] sm:$0x1]
  %v4950 = vshra.s32 %v3576, 2
  %v4951 = vshra.s32 %v3577, 2
  %vm4952 = vcmp.lt.s32.totalorder %v4950, 3
  %vm4953 = vcmp.lt.s32.totalorder %v4951, 3
  %v4954 = vand.u32 %v3576, 3
  %v4955 = vand.u32 %v3577, 3
  %vm4956 = vcmp.lt.s32.totalorder %v4954, 3
  %vm4957 = vcmp.lt.s32.totalorder %v4955, 3
  %vm4958 = vmand %vm4952, %vm4956
  %vm4959 = vmand %vm4953, %vm4957
  %v4960 = vsel %vm4958, 1.0, 0.0
  %v4961 = vsel %vm4959, 1.0, 0.0
  %v4963 = vperm.slane %v4949, 0
  %v4965 = vadd.f32 %v4893, %v4963
  %v4966 = vadd.f32 %v4894, %v4963
  %v4967 = vmul.f32 %v4965, %v4960
  %v4968 = vmul.f32 %v4966, %v4961
  %v4969 = vadd.f32 %v4967, %v4968
  %v4970 = vrot.slane %v4969, 4
  %v4971 = vadd.f32 %v4969, %v4970
  %v4972 = vrot.slane %v4971, 2
  %v4973 = vadd.f32 %v4971, %v4972
  %v4974 = vrot.slane %v4973, 1
  %v4975 = vadd.f32 %v4973, %v4974
  %v4976 = vmul.f32 %v4967, %v4965
  %v4977 = vmul.f32 %v4968, %v4966
  %v4978 = vadd.f32 %v4976, %v4977
  %v4979 = vrot.slane %v4978, 4
  %v4980 = vadd.f32 %v4978, %v4979
  %v4981 = vrot.slane %v4980, 2
  %v4982 = vadd.f32 %v4980, %v4981
  %v4983 = vrot.slane %v4982, 1
  %v4984 = vadd.f32 %v4982, %v4983
  %v4985 = vadd.f32 %v4947, %v4963
  %v4986 = vadd.f32 %v4948, %v4963
  %v4987 = vmul.f32 %v4985, %v4960
  %v4988 = vmul.f32 %v4986, %v4961
  %v4989 = vadd.f32 %v4987, %v4988
  %v4990 = vrot.slane %v4989, 4
  %v4991 = vadd.f32 %v4989, %v4990
  %v4992 = vrot.slane %v4991, 2
  %v4993 = vadd.f32 %v4991, %v4992
  %v4994 = vrot.slane %v4993, 1
  %v4995 = vadd.f32 %v4993, %v4994
  %v4996 = vmul.f32 %v4987, %v4985
  %v4997 = vmul.f32 %v4988, %v4986
  %v4998 = vadd.f32 %v4996, %v4997
  %v4999 = vrot.slane %v4998, 4
  %v5000 = vadd.f32 %v4998, %v4999
  %v5001 = vrot.slane %v5000, 2
  %v5002 = vadd.f32 %v5000, %v5001
  %v5003 = vrot.slane %v5002, 1
  %v5004 = vadd.f32 %v5002, %v5003
  %v5005 = vadd.f32 %v4975, %v4995
  %v5006 = vadd.f32 %v4984, %v5004
  %v5007 = vmul.f32 %v5005, 0.055555556
  %v5008 = vmul.f32 %v5006, 0.055555556
  %v5009 = vmul.f32 %v5007, %v5007
  %v5010 = vsub.f32 %v5008, %v5009
  %v5011 = vmax.f32 %v5010, 0.0
  %v5012 = vld [vmem:[%s11] sm:$0x1]
  %v5013 = vadd.f32 %v5011, 1e-05
  %v5014 = vrsqrt.pop %v5013
  %v5015 = vmul.f32 %v5014, %v5013
  %v5016 = vmul.f32 %v5015, %v5014
  %v5017 = vmul.f32 0.5, %v5016
  %v5018 = vsub.f32 1.5, %v5017
  %v5019 = vmul.f32 %v5014, %v5018
  %vm5020 = vweird.f32 %v5013
  %vm5021 = vweird.f32 %v5014
  %vm5022 = vmor %vm5020, %vm5021
  %v5023 = vsel %vm5022, %v5014, %v5019
  %v5024 = vmul.f32 %v5012, %v5023
  %v5025 = vld [vmem:[%s12] sm:$0x1]
  %v5026 = vmul.f32 %v5007, %v5024
  %v5027 = vsub.f32 %v5025, %v5026
  %v5029 = vperm.slane %v5024, 0
  %v5031 = vmul.f32 %v4965, %v5029
  %v5032 = vmul.f32 %v4966, %v5029
  %v5034 = vperm.slane %v5027, 0
  %v5036 = vadd.f32 %v5031, %v5034
  %v5037 = vadd.f32 %v5032, %v5034
  %vm5038 = vcmp.gt.f32.partialorder %v5036, 0.0
  %vm5039 = vcmp.gt.f32.partialorder %v5037, 0.0
  %v5040 = vmul.f32 %v5036, 0.01
  %v5041 = vmul.f32 %v5037, 0.01
  %v5042 = vsel %vm5038, %v5036, %v5040
  %v5043 = vsel %vm5039, %v5037, %v5041
  %v5044 = vmul.f32 %v4985, %v5029
  %v5045 = vmul.f32 %v4986, %v5029
  %v5046 = vadd.f32 %v5044, %v5034
  %v5047 = vadd.f32 %v5045, %v5034
  %vm5048 = vcmp.gt.f32.partialorder %v5046, 0.0
  %vm5049 = vcmp.gt.f32.partialorder %v5047, 0.0
  %v5050 = vmul.f32 %v5046, 0.01
  %v5051 = vmul.f32 %v5047, 0.01
  %v5052 = vsel %vm5048, %v5046, %v5050
  %v5053 = vsel %vm5049, %v5047, %v5051
  %v5054 = vld [vmem:[%s13] sm:$0xff]
  %v5055 = vld [vmem:[%s13 + $0x8] sm:$0xff]
  %v5056 = vld [vmem:[#allocation2] sm:$0x1]
  %v5057 = vmul.f32 %v5042, %v5054
  %v5058 = vmul.f32 %v5043, %v5055
  %5059 = vadd.xlane.f32.xlu0 %v5057
  %v5060 = vpop.xlane.xlu0 %5059
  %5061 = vadd.xlane.f32.xlu0 %v5058
  %v5062 = vpop.xlane.xlu0 %5061
  %v5063 = vadd.f32 %v5060, %v5062
  %v5064 = vrot.slane %v5063, 4
  %v5065 = vadd.f32 %v5063, %v5064
  %v5066 = vrot.slane %v5065, 2
  %v5067 = vadd.f32 %v5065, %v5066
  %v5068 = vrot.slane %v5067, 1
  %v5069 = vadd.f32 %v5067, %v5068
  %v5070 = vadd.f32 %v5069, %v5056
  %v5071 = vsub.f32 0.0, %v5070
  %v5072 = vmul.f32 %v5071, 1.442695
  %v5073 = vpow.pop %v5072
  %v5074 = vadd.f32 %v5073, 1.0
  %v5075 = vrcp.pop %v5074
  %v5076 = vmul.f32 %v5074, %v5075
  %v5077 = vsub.f32 1.0, %v5076
  %v5078 = vmul.f32 %v5075, %v5077
  %v5079 = vadd.f32 %v5075, %v5078
  %vm5080 = vweird.f32 %v5074
  %vm5081 = vweird.f32 %v5075
  %vm5082 = vmor %vm5080, %vm5081
  %v5083 = vsel %vm5082, %v5075, %v5079
  %v5084 = vand.u32 2147483647, %v5074
  %vm5085 = vcmp.eq.f32.partialorder %v5084, 8.507059e+37
  %v5086 = vand.u32 %v5074, 2147483648
  %v5087 = vor.u32 1.1754944e-38, %v5086
  %v5088 = vsel %vm5085, %v5087, %v5083
  %v5089 = vmul.f32 1.0, %v5088
  %vm5090 = vcmask 0
  %5091 = vst.msk [vmem:[%s15] sm:$0x1] %vm5090, %v5089
  %v5092 = vmul.f32 %v5052, %v5054
  %v5093 = vmul.f32 %v5053, %v5055
  %5094 = vadd.xlane.f32.xlu0 %v5092
  %v5095 = vpop.xlane.xlu0 %5094
  %5096 = vadd.xlane.f32.xlu0 %v5093
  %v5097 = vpop.xlane.xlu0 %5096
  %v5098 = vadd.f32 %v5095, %v5097
  %v5099 = vrot.slane %v5098, 4
  %v5100 = vadd.f32 %v5098, %v5099
  %v5101 = vrot.slane %v5100, 2
  %v5102 = vadd.f32 %v5100, %v5101
  %v5103 = vrot.slane %v5102, 1
  %v5104 = vadd.f32 %v5102, %v5103
  %v5105 = vadd.f32 %v5104, %v5056
  %v5106 = vsub.f32 0.0, %v5105
  %v5107 = vmul.f32 %v5106, 1.442695
  %v5108 = vpow.pop %v5107
  %v5109 = vadd.f32 %v5108, 1.0
  %v5110 = vrcp.pop %v5109
  %v5111 = vmul.f32 %v5109, %v5110
  %v5112 = vsub.f32 1.0, %v5111
  %v5113 = vmul.f32 %v5110, %v5112
  %v5114 = vadd.f32 %v5110, %v5113
  %vm5115 = vweird.f32 %v5109
  %vm5116 = vweird.f32 %v5110
  %vm5117 = vmor %vm5115, %vm5116
  %v5118 = vsel %vm5117, %v5110, %v5114
  %v5119 = vand.u32 2147483647, %v5109
  %vm5120 = vcmp.eq.f32.partialorder %v5119, 8.507059e+37
  %v5121 = vand.u32 %v5109, 2147483648
  %v5122 = vor.u32 1.1754944e-38, %v5121
  %v5123 = vsel %vm5120, %v5122, %v5118
  %v5124 = vmul.f32 1.0, %v5123
  %5125 = vst.msk [vmem:[%s15 + $0x1] sm:$0x1] %vm5090, %v5124
  // Predicated region
  $region62: #{discriminator_forward.1} parent=0 // pred_check
    _
  $region63: #{discriminator_forward.1} parent=0 // pred_check_branch
    %5127 = sbr.rel (0) target = $region65
  $region64: #{discriminator_forward.1} parent=0 // pred_region
    _
  $region65: #{discriminator_forward.1} parent=0 // pred_fallthru
    _
  // Predicated region
  $region66: #{discriminator_forward.1} parent=0 // pred_check
    _
  $region67: #{discriminator_forward.1} parent=0 // pred_check_branch
    %5129 = sbr.rel (0) target = $region69
  $region68: #{discriminator_forward.1} parent=0 // pred_region
    _
  $region69: #{discriminator_forward.1} parent=0 // pred_fallthru
    _

</llo_original>
